<compile_context>
chip_gen: v5e
topology: v5e:2x2
jax: 0.10.0
libtpu: 0.0.40
codegen_flags: <defaults>
</compile_context>

<pallas_src>
import functools

import jax
import jax.numpy as jnp
import numpy as np
from jax.experimental import pallas as pl
from jax.experimental.pallas import tpu as pltpu

# ---------------- problem sizes ----------------------------------------------
CIN, H, W = 4, 16, 16                # Conv2d input planes (per sample)
COUT, KH, KW = 8, 3, 3               # Conv2d(4, 8, 3, padding=1)
NUM_CLASSES = 10                     # Linear(8*16*16, 10)
HW = H * W                           # 256  (lane axis, 2 lane-tiles)
TAPS = KH * KW                       # 9
CIN_PAD = 8                          # channels zero-padded 4 -> 8 (full sublane tile per tap slab)
KDIM = TAPS * CIN_PAD                # 72   im2col contraction length
FLAT = COUT * HW                     # 2048 PyTorch Flatten width
NCLS_PAD = 128                       # classes padded 10 -> 128: lane-dense logits, MXU N=128
BLOCK_B = 8                          # samples per grid step (multiple of 8).
                                     # Raise to 32-128 for real influence-analysis batches
                                     # to grow the MXU M/N tiles further.


# ---------------- fused Pallas kernel -----------------------------------------
def fused_forward_kernel(block_b, x_ref, w_ref, b_ref, fcw_ref, fcb_ref, o_ref,
                         patches_ref, feat_ref):
    """One chunk of `block_b` samples:
         Conv2d(4->8, 3x3, pad=1) + bias + ReLU + Flatten + Linear(2048->10).

    x_ref:       (block_b*CIN_PAD, HW)  per-sample channel planes (4 real + 4 zero rows)
    w_ref:       (COUT, KDIM)           conv weight, columns ordered (kh, kw, ci_pad)
    b_ref:       (COUT, 1)              conv bias
    fcw_ref:     (FLAT, NCLS_PAD)       fc weight, (in, out_padded):  y = feat @ W
    fcb_ref:     (1, NCLS_PAD)          fc bias (zero-padded)
    o_ref:       (block_b, NCLS_PAD)    logits (padded, unmasked lane-dense store)
    patches_ref: (KDIM, block_b*HW)     VMEM scratch: 8-sublane-aligned im2col slabs
    feat_ref:    (block_b, FLAT)        VMEM scratch: NCHW-flattened activations
    """
    x = x_ref[...]                                            # (block_b*8, 256) f32

    # Lane-index decomposition for the 3x3 zero-padding masks (W = 16 -> shift/and).
    col = jax.lax.broadcasted_iota(jnp.int32, x.shape, 1)     # p = h*W + w
    hh = col >> 4
    ww = col & (W - 1)

    # im2col with the conv's zero padding reproduced by lane rolls + boundary
    # masks.  Every slab written below is a full (8, 256) tile at an 8-aligned
    # sublane offset and 256-aligned lane offset -> plain aligned stores.
    taps = [(dh, dw) for dh in (-1, 0, 1) for dw in (-1, 0, 1)]
    for t, (dh, dw) in enumerate(taps):
        s = dh * W + dw
        shifted = x if s == 0 else pltpu.roll(x, shift=(-s) % HW, axis=1)
        valid = ((hh + dh >= 0) & (hh + dh < H) &
                 (ww + dw >= 0) & (ww + dw < W))
        tap = jnp.where(valid, shifted, 0.0)                  # (block_b*8, 256)
        for n in range(block_b):
            patches_ref[t * CIN_PAD:(t + 1) * CIN_PAD,
                        n * HW:(n + 1) * HW] = tap[n * CIN_PAD:(n + 1) * CIN_PAD, :]

    # Single im2col matmul: (COUT, 72) @ (72, block_b*256); lane-dense result.
    conv = jnp.dot(w_ref[...], patches_ref[...],
                   preferred_element_type=jnp.float32)        # (8, block_b*256)
    conv = jnp.maximum(conv + b_ref[...], 0.0)                # bias + ReLU

    # PyTorch NCHW Flatten: per sample the (COUT, HW) slab is (C, H, W)
    # row-major, i.e. feat[n, c*HW + p] = conv[c, n*HW + p].  Built once into
    # a VMEM scratch with small aligned copies (no concatenate-of-reshapes).
    for n in range(block_b):
        for c in range(COUT):
            feat_ref[n:n + 1, c * HW:(c + 1) * HW] = \
                conv[c:c + 1, n * HW:(n + 1) * HW]

    # Linear head: (block_b, 2048) @ (2048, 128); weights never leave VMEM,
    # output store is fully lane-dense (128 lanes).
    logits = (jnp.dot(feat_ref[...], fcw_ref[...],
                      preferred_element_type=jnp.float32) + fcb_ref[...])
    o_ref[...] = logits.astype(o_ref.dtype)


# ---------------- wrapper ------------------------------------------------------
def wrapper_net_forward(x_nchw, params, *, block_b=BLOCK_B):
    """Equivalent of WrapperNet.forward: x = seq(x); x = leaf(x).  Any batch size."""
    conv_w2d, conv_b2d, fc_w_pad, fc_b_pad = params
    assert block_b % 8 == 0
    B = x_nchw.shape[0]
    b_pad = ((B + block_b - 1) // block_b) * block_b

    # Zero-pad channels 4 -> 8 and batch -> multiple of block_b, then a pure
    # row-major reshape (no transpose).
    x_p = jnp.pad(x_nchw, ((0, b_pad - B), (0, CIN_PAD - CIN), (0, 0), (0, 0)))
    x2d = x_p.reshape(b_pad * CIN_PAD, HW)

    num_chunks = b_pad // block_b
    out = pl.pallas_call(
        functools.partial(fused_forward_kernel, block_b),
        out_shape=jax.ShapeDtypeStruct((b_pad, NCLS_PAD), jnp.float32),
        grid=(num_chunks,),
        in_specs=[
            pl.BlockSpec((block_b * CIN_PAD, HW), lambda i: (i, 0)),
            pl.BlockSpec((COUT, KDIM), lambda i: (0, 0)),
            pl.BlockSpec((COUT, 1), lambda i: (0, 0)),
            pl.BlockSpec((FLAT, NCLS_PAD), lambda i: (0, 0)),
            pl.BlockSpec((1, NCLS_PAD), lambda i: (0, 0)),
        ],
        out_specs=pl.BlockSpec((block_b, NCLS_PAD), lambda i: (i, 0)),
        scratch_shapes=[
            pltpu.VMEM((KDIM, block_b * HW), jnp.float32),    # im2col patches
            pltpu.VMEM((block_b, FLAT), jnp.float32),         # flattened features
        ],
        compiler_params=pltpu.CompilerParams(
            dimension_semantics=("parallel",)),               # v7x: 2 TCs share the batch
        cost_estimate=pl.CostEstimate(
            flops=2 * COUT * KDIM * (b_pad * HW) + 2 * b_pad * FLAT * NCLS_PAD,
            transcendentals=0,
            bytes_accessed=4 * (b_pad * CIN_PAD * HW + COUT * KDIM + COUT
                                + FLAT * NCLS_PAD + NCLS_PAD
                                + b_pad * NCLS_PAD)),
    )(x2d, conv_w2d, conv_b2d, fc_w_pad, fc_b_pad)
    return out[:B, :NUM_CLASSES]


def prepare_params(conv_w, conv_b, fc_w, fc_b):
    """One-time conversion from PyTorch parameter layouts to kernel layouts.

    conv_w: (COUT, CIN, KH, KW)   torch Conv2d.weight
    conv_b: (COUT,)               torch Conv2d.bias
    fc_w:   (NUM_CLASSES, FLAT)   torch Linear.weight  (y = x @ W.T + b)
    fc_b:   (NUM_CLASSES,)        torch Linear.bias
    """
    # Conv weight -> (COUT, KH*KW*CIN_PAD), zero columns for the pad channels.
    w = jnp.transpose(conv_w, (0, 2, 3, 1))                        # (COUT, KH, KW, CIN)
    w = jnp.pad(w, ((0, 0), (0, 0), (0, 0), (0, CIN_PAD - CIN)))   # (COUT, KH, KW, 8)
    conv_w2d = w.reshape(COUT, KDIM)
    conv_b2d = conv_b.reshape(COUT, 1)
    # FC weight -> (FLAT, NCLS_PAD): fc_w.T with zero-padded output columns.
    # No VMEM lane padding, contiguous DMA, native MXU orientation, lane-dense
    # logits; the wrapper slices the result back to NUM_CLASSES.
    fc_w_pad = jnp.zeros((FLAT, NCLS_PAD), jnp.float32).at[:, :NUM_CLASSES].set(fc_w.T)
    fc_b_pad = jnp.zeros((1, NCLS_PAD), jnp.float32).at[:, :NUM_CLASSES].set(fc_b)
    return (conv_w2d, conv_b2d, fc_w_pad, fc_b_pad)


def reference_forward(x, conv_w, conv_b, fc_w, fc_b):
    """Pure-JAX reference of the same forward (PyTorch semantics)."""
    y = jax.lax.conv_general_dilated(
        x, conv_w, window_strides=(1, 1), padding=((1, 1), (1, 1)),
        dimension_numbers=("NCHW", "OIHW", "NCHW"),
        precision=jax.lax.Precision.HIGHEST)
    y = jnp.maximum(y + conv_b[None, :, None, None], 0.0)
    flat = y.reshape(x.shape[0], FLAT)
    return jnp.dot(flat, fc_w.T, precision=jax.lax.Precision.HIGHEST) + fc_b[None, :]


# TODO(synk): WrapperNet.train()/reset()/optimizer (SGD + cross-entropy training
# loop) are training-time host logic, not part of the forward-pass kernel.

if __name__ == "__main__":
    key = jax.random.PRNGKey(0)
    k_x, k_cw, k_cb, k_fw, k_fb, k_xb = jax.random.split(key, 6)

    # deterministic synthetic parameters, in PyTorch layouts
    conv_w = 0.05 * jax.random.normal(k_cw, (COUT, CIN, KH, KW), jnp.float32)
    conv_b = 0.05 * jax.random.normal(k_cb, (COUT,), jnp.float32)
    fc_w = 0.05 * jax.random.normal(k_fw, (NUM_CLASSES, FLAT), jnp.float32)
    fc_b = 0.05 * jax.random.normal(k_fb, (NUM_CLASSES,), jnp.float32)
    params = prepare_params(conv_w, conv_b, fc_w, fc_b)   # one-time layout prep

    fwd = jax.jit(wrapper_net_forward)

    # small shape consistent with the module: batch=2, NCHW
    x = jax.random.normal(k_x, (2, CIN, H, W), jnp.float32)
    out = fwd(x, params)
    jax.block_until_ready(out)
    assert out.shape == (2, NUM_CLASSES)
    ref = reference_forward(x, conv_w, conv_b, fc_w, fc_b)
    np.testing.assert_allclose(np.asarray(out), np.asarray(ref),
                               rtol=1e-4, atol=1e-4)

    # batched path: many samples per call, grid over batch chunks ("parallel")
    xb = jax.random.normal(k_xb, (32, CIN, H, W), jnp.float32)
    outb = fwd(xb, params)
    jax.block_until_ready(outb)
    refb = reference_forward(xb, conv_w, conv_b, fc_w, fc_b)
    np.testing.assert_allclose(np.asarray(outb), np.asarray(refb),
                               rtol=1e-4, atol=1e-4)

    print("KERNEL_OK")
</pallas_src>

<mosaic_0001>
module attributes {stable_mosaic.version = 11 : i64} {
  func.func @fused_forward_kernel(%arg0: i32, %arg1: memref<64x256xf32, #tpu.memory_space<vmem>>, %arg2: memref<8x72xf32, #tpu.memory_space<vmem>>, %arg3: memref<8x1xf32, #tpu.memory_space<vmem>>, %arg4: memref<2048x128xf32, #tpu.memory_space<vmem>>, %arg5: memref<1x128xf32, #tpu.memory_space<vmem>>, %arg6: memref<8x128xf32, #tpu.memory_space<vmem>>, %arg7: memref<72x2048xf32, #tpu.memory_space<vmem>>, %arg8: memref<8x2048xf32, #tpu.memory_space<vmem>>) attributes {dimension_semantics = [#tpu.dimension_semantics<parallel>], iteration_bounds = array<i64: 1>, scalar_prefetch = 0 : i64, scratch_operands = 2 : i64, tpu.core_type = #tpu.core_type<tc>, window_params = [{transform_indices = @transform_0, window_bounds = array<i64: 64, 256>}, {pipeline_mode = #tpu.pipeline_mode<synchronous>, transform_indices = @transform_1, window_bounds = array<i64: 8, 72>}, {pipeline_mode = #tpu.pipeline_mode<synchronous>, transform_indices = @transform_2, window_bounds = array<i64: 8, 1>}, {pipeline_mode = #tpu.pipeline_mode<synchronous>, transform_indices = @transform_3, window_bounds = array<i64: 2048, 128>}, {pipeline_mode = #tpu.pipeline_mode<synchronous>, transform_indices = @transform_4, window_bounds = array<i64: 1, 128>}, {transform_indices = @transform_5, window_bounds = array<i64: 8, 128>}]} {
    %c0 = arith.constant 0 : index
    %c0_0 = arith.constant 0 : index
    %0 = vector.load %arg1[%c0, %c0_0] : memref<64x256xf32, #tpu.memory_space<vmem>>, vector<64x256xf32>
    %1 = tpu.iota {dimensions = array<i32: 1>} : vector<64x256xi32>
    %c4_i32 = arith.constant 4 : i32
    %2 = vector.broadcast %c4_i32 : i32 to vector<64x256xi32>
    %3 = arith.shrsi %1, %2 : vector<64x256xi32>
    %c15_i32 = arith.constant 15 : i32
    %4 = vector.broadcast %c15_i32 : i32 to vector<64x256xi32>
    %5 = arith.andi %1, %4 : vector<64x256xi32>
    %c17_i32 = arith.constant 17 : i32
    %6 = tpu.dynamic_rotate %0 by %c17_i32 dim 1 : vector<64x256xf32>, i32 -> vector<64x256xf32>
    %c-1_i32 = arith.constant -1 : i32
    %7 = vector.broadcast %c-1_i32 : i32 to vector<64x256xi32>
    %8 = arith.addi %3, %7 : vector<64x256xi32>
    %c0_i32 = arith.constant 0 : i32
    %9 = vector.broadcast %c0_i32 : i32 to vector<64x256xi32>
    %10 = arith.cmpi sge, %8, %9 : vector<64x256xi32>
    %c-1_i32_1 = arith.constant -1 : i32
    %11 = vector.broadcast %c-1_i32_1 : i32 to vector<64x256xi32>
    %12 = arith.addi %3, %11 : vector<64x256xi32>
    %c16_i32 = arith.constant 16 : i32
    %13 = vector.broadcast %c16_i32 : i32 to vector<64x256xi32>
    %14 = arith.cmpi slt, %12, %13 : vector<64x256xi32>
    %15 = arith.andi %10, %14 : vector<64x256xi1>
    %c-1_i32_2 = arith.constant -1 : i32
    %16 = vector.broadcast %c-1_i32_2 : i32 to vector<64x256xi32>
    %17 = arith.addi %5, %16 : vector<64x256xi32>
    %c0_i32_3 = arith.constant 0 : i32
    %18 = vector.broadcast %c0_i32_3 : i32 to vector<64x256xi32>
    %19 = arith.cmpi sge, %17, %18 : vector<64x256xi32>
    %20 = arith.andi %15, %19 : vector<64x256xi1>
    %c-1_i32_4 = arith.constant -1 : i32
    %21 = vector.broadcast %c-1_i32_4 : i32 to vector<64x256xi32>
    %22 = arith.addi %5, %21 : vector<64x256xi32>
    %c16_i32_5 = arith.constant 16 : i32
    %23 = vector.broadcast %c16_i32_5 : i32 to vector<64x256xi32>
    %24 = arith.cmpi slt, %22, %23 : vector<64x256xi32>
    %25 = arith.andi %20, %24 : vector<64x256xi1>
    %cst = arith.constant 0.000000e+00 : f32
    %26 = vector.broadcast %cst : f32 to vector<64x256xf32>
    %27 = arith.select %25, %6, %26 : vector<64x256xi1>, vector<64x256xf32>
    %28 = vector.extract_strided_slice %27 {offsets = [0, 0], sizes = [8, 256], strides = [1, 1]} : vector<64x256xf32> to vector<8x256xf32>
    %c0_6 = arith.constant 0 : index
    %c0_7 = arith.constant 0 : index
    %29 = vector.load %arg7[%c0_6, %c0_7] : memref<72x2048xf32, #tpu.memory_space<vmem>>, vector<8x256xf32>
    tpu.vector_store %arg7[%c0_6, %c0_7], %28 {strides = array<i32>} : memref<72x2048xf32, #tpu.memory_space<vmem>>, vector<8x256xf32>,
    %30 = vector.extract_strided_slice %27 {offsets = [8, 0], sizes = [8, 256], strides = [1, 1]} : vector<64x256xf32> to vector<8x256xf32>
    %c0_8 = arith.constant 0 : index
    %c256 = arith.constant 256 : index
    %31 = vector.load %arg7[%c0_8, %c256] : memref<72x2048xf32, #tpu.memory_space<vmem>>, vector<8x256xf32>
    tpu.vector_store %arg7[%c0_8, %c256], %30 {strides = array<i32>} : memref<72x2048xf32, #tpu.memory_space<vmem>>, vector<8x256xf32>,
    %32 = vector.extract_strided_slice %27 {offsets = [16, 0], sizes = [8, 256], strides = [1, 1]} : vector<64x256xf32> to vector<8x256xf32>
    %c0_9 = arith.constant 0 : index
    %c512 = arith.constant 512 : index
    %33 = vector.load %arg7[%c0_9, %c512] : memref<72x2048xf32, #tpu.memory_space<vmem>>, vector<8x256xf32>
    tpu.vector_store %arg7[%c0_9, %c512], %32 {strides = array<i32>} : memref<72x2048xf32, #tpu.memory_space<vmem>>, vector<8x256xf32>,
    %34 = vector.extract_strided_slice %27 {offsets = [24, 0], sizes = [8, 256], strides = [1, 1]} : vector<64x256xf32> to vector<8x256xf32>
    %c0_10 = arith.constant 0 : index
    %c768 = arith.constant 768 : index
    %35 = vector.load %arg7[%c0_10, %c768] : memref<72x2048xf32, #tpu.memory_space<vmem>>, vector<8x256xf32>
    tpu.vector_store %arg7[%c0_10, %c768], %34 {strides = array<i32>} : memref<72x2048xf32, #tpu.memory_space<vmem>>, vector<8x256xf32>,
    %36 = vector.extract_strided_slice %27 {offsets = [32, 0], sizes = [8, 256], strides = [1, 1]} : vector<64x256xf32> to vector<8x256xf32>
    %c0_11 = arith.constant 0 : index
    %c1024 = arith.constant 1024 : index
    %37 = vector.load %arg7[%c0_11, %c1024] : memref<72x2048xf32, #tpu.memory_space<vmem>>, vector<8x256xf32>
    tpu.vector_store %arg7[%c0_11, %c1024], %36 {strides = array<i32>} : memref<72x2048xf32, #tpu.memory_space<vmem>>, vector<8x256xf32>,
    %38 = vector.extract_strided_slice %27 {offsets = [40, 0], sizes = [8, 256], strides = [1, 1]} : vector<64x256xf32> to vector<8x256xf32>
    %c0_12 = arith.constant 0 : index
    %c1280 = arith.constant 1280 : index
    %39 = vector.load %arg7[%c0_12, %c1280] : memref<72x2048xf32, #tpu.memory_space<vmem>>, vector<8x256xf32>
    tpu.vector_store %arg7[%c0_12, %c1280], %38 {strides = array<i32>} : memref<72x2048xf32, #tpu.memory_space<vmem>>, vector<8x256xf32>,
    %40 = vector.extract_strided_slice %27 {offsets = [48, 0], sizes = [8, 256], strides = [1, 1]} : vector<64x256xf32> to vector<8x256xf32>
    %c0_13 = arith.constant 0 : index
    %c1536 = arith.constant 1536 : index
    %41 = vector.load %arg7[%c0_13, %c1536] : memref<72x2048xf32, #tpu.memory_space<vmem>>, vector<8x256xf32>
    tpu.vector_store %arg7[%c0_13, %c1536], %40 {strides = array<i32>} : memref<72x2048xf32, #tpu.memory_space<vmem>>, vector<8x256xf32>,
    %42 = vector.extract_strided_slice %27 {offsets = [56, 0], sizes = [8, 256], strides = [1, 1]} : vector<64x256xf32> to vector<8x256xf32>
    %c0_14 = arith.constant 0 : index
    %c1792 = arith.constant 1792 : index
    %43 = vector.load %arg7[%c0_14, %c1792] : memref<72x2048xf32, #tpu.memory_space<vmem>>, vector<8x256xf32>
    tpu.vector_store %arg7[%c0_14, %c1792], %42 {strides = array<i32>} : memref<72x2048xf32, #tpu.memory_space<vmem>>, vector<8x256xf32>,
    %c16_i32_15 = arith.constant 16 : i32
    %44 = tpu.dynamic_rotate %0 by %c16_i32_15 dim 1 : vector<64x256xf32>, i32 -> vector<64x256xf32>
    %c-1_i32_16 = arith.constant -1 : i32
    %45 = vector.broadcast %c-1_i32_16 : i32 to vector<64x256xi32>
    %46 = arith.addi %3, %45 : vector<64x256xi32>
    %c0_i32_17 = arith.constant 0 : i32
    %47 = vector.broadcast %c0_i32_17 : i32 to vector<64x256xi32>
    %48 = arith.cmpi sge, %46, %47 : vector<64x256xi32>
    %c-1_i32_18 = arith.constant -1 : i32
    %49 = vector.broadcast %c-1_i32_18 : i32 to vector<64x256xi32>
    %50 = arith.addi %3, %49 : vector<64x256xi32>
    %c16_i32_19 = arith.constant 16 : i32
    %51 = vector.broadcast %c16_i32_19 : i32 to vector<64x256xi32>
    %52 = arith.cmpi slt, %50, %51 : vector<64x256xi32>
    %53 = arith.andi %48, %52 : vector<64x256xi1>
    %c0_i32_20 = arith.constant 0 : i32
    %54 = vector.broadcast %c0_i32_20 : i32 to vector<64x256xi32>
    %55 = arith.addi %5, %54 : vector<64x256xi32>
    %c0_i32_21 = arith.constant 0 : i32
    %56 = vector.broadcast %c0_i32_21 : i32 to vector<64x256xi32>
    %57 = arith.cmpi sge, %55, %56 : vector<64x256xi32>
    %58 = arith.andi %53, %57 : vector<64x256xi1>
    %c0_i32_22 = arith.constant 0 : i32
    %59 = vector.broadcast %c0_i32_22 : i32 to vector<64x256xi32>
    %60 = arith.addi %5, %59 : vector<64x256xi32>
    %c16_i32_23 = arith.constant 16 : i32
    %61 = vector.broadcast %c16_i32_23 : i32 to vector<64x256xi32>
    %62 = arith.cmpi slt, %60, %61 : vector<64x256xi32>
    %63 = arith.andi %58, %62 : vector<64x256xi1>
    %cst_24 = arith.constant 0.000000e+00 : f32
    %64 = vector.broadcast %cst_24 : f32 to vector<64x256xf32>
    %65 = arith.select %63, %44, %64 : vector<64x256xi1>, vector<64x256xf32>
    %66 = vector.extract_strided_slice %65 {offsets = [0, 0], sizes = [8, 256], strides = [1, 1]} : vector<64x256xf32> to vector<8x256xf32>
    %c8 = arith.constant 8 : index
    %c0_25 = arith.constant 0 : index
    %67 = vector.load %arg7[%c8, %c0_25] : memref<72x2048xf32, #tpu.memory_space<vmem>>, vector<8x256xf32>
    tpu.vector_store %arg7[%c8, %c0_25], %66 {strides = array<i32>} : memref<72x2048xf32, #tpu.memory_space<vmem>>, vector<8x256xf32>,
    %68 = vector.extract_strided_slice %65 {offsets = [8, 0], sizes = [8, 256], strides = [1, 1]} : vector<64x256xf32> to vector<8x256xf32>
    %c8_26 = arith.constant 8 : index
    %c256_27 = arith.constant 256 : index
    %69 = vector.load %arg7[%c8_26, %c256_27] : memref<72x2048xf32, #tpu.memory_space<vmem>>, vector<8x256xf32>
    tpu.vector_store %arg7[%c8_26, %c256_27], %68 {strides = array<i32>} : memref<72x2048xf32, #tpu.memory_space<vmem>>, vector<8x256xf32>,
    %70 = vector.extract_strided_slice %65 {offsets = [16, 0], sizes = [8, 256], strides = [1, 1]} : vector<64x256xf32> to vector<8x256xf32>
    %c8_28 = arith.constant 8 : index
    %c512_29 = arith.constant 512 : index
    %71 = vector.load %arg7[%c8_28, %c512_29] : memref<72x2048xf32, #tpu.memory_space<vmem>>, vector<8x256xf32>
    tpu.vector_store %arg7[%c8_28, %c512_29], %70 {strides = array<i32>} : memref<72x2048xf32, #tpu.memory_space<vmem>>, vector<8x256xf32>,
    %72 = vector.extract_strided_slice %65 {offsets = [24, 0], sizes = [8, 256], strides = [1, 1]} : vector<64x256xf32> to vector<8x256xf32>
    %c8_30 = arith.constant 8 : index
    %c768_31 = arith.constant 768 : index
    %73 = vector.load %arg7[%c8_30, %c768_31] : memref<72x2048xf32, #tpu.memory_space<vmem>>, vector<8x256xf32>
    tpu.vector_store %arg7[%c8_30, %c768_31], %72 {strides = array<i32>} : memref<72x2048xf32, #tpu.memory_space<vmem>>, vector<8x256xf32>,
    %74 = vector.extract_strided_slice %65 {offsets = [32, 0], sizes = [8, 256], strides = [1, 1]} : vector<64x256xf32> to vector<8x256xf32>
    %c8_32 = arith.constant 8 : index
    %c1024_33 = arith.constant 1024 : index
    %75 = vector.load %arg7[%c8_32, %c1024_33] : memref<72x2048xf32, #tpu.memory_space<vmem>>, vector<8x256xf32>
    tpu.vector_store %arg7[%c8_32, %c1024_33], %74 {strides = array<i32>} : memref<72x2048xf32, #tpu.memory_space<vmem>>, vector<8x256xf32>,
    %76 = vector.extract_strided_slice %65 {offsets = [40, 0], sizes = [8, 256], strides = [1, 1]} : vector<64x256xf32> to vector<8x256xf32>
    %c8_34 = arith.constant 8 : index
    %c1280_35 = arith.constant 1280 : index
    %77 = vector.load %arg7[%c8_34, %c1280_35] : memref<72x2048xf32, #tpu.memory_space<vmem>>, vector<8x256xf32>
    tpu.vector_store %arg7[%c8_34, %c1280_35], %76 {strides = array<i32>} : memref<72x2048xf32, #tpu.memory_space<vmem>>, vector<8x256xf32>,
    %78 = vector.extract_strided_slice %65 {offsets = [48, 0], sizes = [8, 256], strides = [1, 1]} : vector<64x256xf32> to vector<8x256xf32>
    %c8_36 = arith.constant 8 : index
    %c1536_37 = arith.constant 1536 : index
    %79 = vector.load %arg7[%c8_36, %c1536_37] : memref<72x2048xf32, #tpu.memory_space<vmem>>, vector<8x256xf32>
    tpu.vector_store %arg7[%c8_36, %c1536_37], %78 {strides = array<i32>} : memref<72x2048xf32, #tpu.memory_space<vmem>>, vector<8x256xf32>,
    %80 = vector.extract_strided_slice %65 {offsets = [56, 0], sizes = [8, 256], strides = [1, 1]} : vector<64x256xf32> to vector<8x256xf32>
    %c8_38 = arith.constant 8 : index
    %c1792_39 = arith.constant 1792 : index
    %81 = vector.load %arg7[%c8_38, %c1792_39] : memref<72x2048xf32, #tpu.memory_space<vmem>>, vector<8x256xf32>
    tpu.vector_store %arg7[%c8_38, %c1792_39], %80 {strides = array<i32>} : memref<72x2048xf32, #tpu.memory_space<vmem>>, vector<8x256xf32>,
    %c15_i32_40 = arith.constant 15 : i32
    %82 = tpu.dynamic_rotate %0 by %c15_i32_40 dim 1 : vector<64x256xf32>, i32 -> vector<64x256xf32>
    %c-1_i32_41 = arith.constant -1 : i32
    %83 = vector.broadcast %c-1_i32_41 : i32 to vector<64x256xi32>
    %84 = arith.addi %3, %83 : vector<64x256xi32>
    %c0_i32_42 = arith.constant 0 : i32
    %85 = vector.broadcast %c0_i32_42 : i32 to vector<64x256xi32>
    %86 = arith.cmpi sge, %84, %85 : vector<64x256xi32>
    %c-1_i32_43 = arith.constant -1 : i32
    %87 = vector.broadcast %c-1_i32_43 : i32 to vector<64x256xi32>
    %88 = arith.addi %3, %87 : vector<64x256xi32>
    %c16_i32_44 = arith.constant 16 : i32
    %89 = vector.broadcast %c16_i32_44 : i32 to vector<64x256xi32>
    %90 = arith.cmpi slt, %88, %89 : vector<64x256xi32>
    %91 = arith.andi %86, %90 : vector<64x256xi1>
    %c1_i32 = arith.constant 1 : i32
    %92 = vector.broadcast %c1_i32 : i32 to vector<64x256xi32>
    %93 = arith.addi %5, %92 : vector<64x256xi32>
    %c0_i32_45 = arith.constant 0 : i32
    %94 = vector.broadcast %c0_i32_45 : i32 to vector<64x256xi32>
    %95 = arith.cmpi sge, %93, %94 : vector<64x256xi32>
    %96 = arith.andi %91, %95 : vector<64x256xi1>
    %c1_i32_46 = arith.constant 1 : i32
    %97 = vector.broadcast %c1_i32_46 : i32 to vector<64x256xi32>
    %98 = arith.addi %5, %97 : vector<64x256xi32>
    %c16_i32_47 = arith.constant 16 : i32
    %99 = vector.broadcast %c16_i32_47 : i32 to vector<64x256xi32>
    %100 = arith.cmpi slt, %98, %99 : vector<64x256xi32>
    %101 = arith.andi %96, %100 : vector<64x256xi1>
    %cst_48 = arith.constant 0.000000e+00 : f32
    %102 = vector.broadcast %cst_48 : f32 to vector<64x256xf32>
    %103 = arith.select %101, %82, %102 : vector<64x256xi1>, vector<64x256xf32>
    %104 = vector.extract_strided_slice %103 {offsets = [0, 0], sizes = [8, 256], strides = [1, 1]} : vector<64x256xf32> to vector<8x256xf32>
    %c16 = arith.constant 16 : index
    %c0_49 = arith.constant 0 : index
    %105 = vector.load %arg7[%c16, %c0_49] : memref<72x2048xf32, #tpu.memory_space<vmem>>, vector<8x256xf32>
    tpu.vector_store %arg7[%c16, %c0_49], %104 {strides = array<i32>} : memref<72x2048xf32, #tpu.memory_space<vmem>>, vector<8x256xf32>,
    %106 = vector.extract_strided_slice %103 {offsets = [8, 0], sizes = [8, 256], strides = [1, 1]} : vector<64x256xf32> to vector<8x256xf32>
    %c16_50 = arith.constant 16 : index
    %c256_51 = arith.constant 256 : index
    %107 = vector.load %arg7[%c16_50, %c256_51] : memref<72x2048xf32, #tpu.memory_space<vmem>>, vector<8x256xf32>
    tpu.vector_store %arg7[%c16_50, %c256_51], %106 {strides = array<i32>} : memref<72x2048xf32, #tpu.memory_space<vmem>>, vector<8x256xf32>,
    %108 = vector.extract_strided_slice %103 {offsets = [16, 0], sizes = [8, 256], strides = [1, 1]} : vector<64x256xf32> to vector<8x256xf32>
    %c16_52 = arith.constant 16 : index
    %c512_53 = arith.constant 512 : index
    %109 = vector.load %arg7[%c16_52, %c512_53] : memref<72x2048xf32, #tpu.memory_space<vmem>>, vector<8x256xf32>
    tpu.vector_store %arg7[%c16_52, %c512_53], %108 {strides = array<i32>} : memref<72x2048xf32, #tpu.memory_space<vmem>>, vector<8x256xf32>,
    %110 = vector.extract_strided_slice %103 {offsets = [24, 0], sizes = [8, 256], strides = [1, 1]} : vector<64x256xf32> to vector<8x256xf32>
    %c16_54 = arith.constant 16 : index
    %c768_55 = arith.constant 768 : index
    %111 = vector.load %arg7[%c16_54, %c768_55] : memref<72x2048xf32, #tpu.memory_space<vmem>>, vector<8x256xf32>
    tpu.vector_store %arg7[%c16_54, %c768_55], %110 {strides = array<i32>} : memref<72x2048xf32, #tpu.memory_space<vmem>>, vector<8x256xf32>,
    %112 = vector.extract_strided_slice %103 {offsets = [32, 0], sizes = [8, 256], strides = [1, 1]} : vector<64x256xf32> to vector<8x256xf32>
    %c16_56 = arith.constant 16 : index
    %c1024_57 = arith.constant 1024 : index
    %113 = vector.load %arg7[%c16_56, %c1024_57] : memref<72x2048xf32, #tpu.memory_space<vmem>>, vector<8x256xf32>
    tpu.vector_store %arg7[%c16_56, %c1024_57], %112 {strides = array<i32>} : memref<72x2048xf32, #tpu.memory_space<vmem>>, vector<8x256xf32>,
    %114 = vector.extract_strided_slice %103 {offsets = [40, 0], sizes = [8, 256], strides = [1, 1]} : vector<64x256xf32> to vector<8x256xf32>
    %c16_58 = arith.constant 16 : index
    %c1280_59 = arith.constant 1280 : index
    %115 = vector.load %arg7[%c16_58, %c1280_59] : memref<72x2048xf32, #tpu.memory_space<vmem>>, vector<8x256xf32>
    tpu.vector_store %arg7[%c16_58, %c1280_59], %114 {strides = array<i32>} : memref<72x2048xf32, #tpu.memory_space<vmem>>, vector<8x256xf32>,
    %116 = vector.extract_strided_slice %103 {offsets = [48, 0], sizes = [8, 256], strides = [1, 1]} : vector<64x256xf32> to vector<8x256xf32>
    %c16_60 = arith.constant 16 : index
    %c1536_61 = arith.constant 1536 : index
    %117 = vector.load %arg7[%c16_60, %c1536_61] : memref<72x2048xf32, #tpu.memory_space<vmem>>, vector<8x256xf32>
    tpu.vector_store %arg7[%c16_60, %c1536_61], %116 {strides = array<i32>} : memref<72x2048xf32, #tpu.memory_space<vmem>>, vector<8x256xf32>,
    %118 = vector.extract_strided_slice %103 {offsets = [56, 0], sizes = [8, 256], strides = [1, 1]} : vector<64x256xf32> to vector<8x256xf32>
    %c16_62 = arith.constant 16 : index
    %c1792_63 = arith.constant 1792 : index
    %119 = vector.load %arg7[%c16_62, %c1792_63] : memref<72x2048xf32, #tpu.memory_space<vmem>>, vector<8x256xf32>
    tpu.vector_store %arg7[%c16_62, %c1792_63], %118 {strides = array<i32>} : memref<72x2048xf32, #tpu.memory_space<vmem>>, vector<8x256xf32>,
    %c1_i32_64 = arith.constant 1 : i32
    %120 = tpu.dynamic_rotate %0 by %c1_i32_64 dim 1 : vector<64x256xf32>, i32 -> vector<64x256xf32>
    %c0_i32_65 = arith.constant 0 : i32
    %121 = vector.broadcast %c0_i32_65 : i32 to vector<64x256xi32>
    %122 = arith.addi %3, %121 : vector<64x256xi32>
    %c0_i32_66 = arith.constant 0 : i32
    %123 = vector.broadcast %c0_i32_66 : i32 to vector<64x256xi32>
    %124 = arith.cmpi sge, %122, %123 : vector<64x256xi32>
    %c0_i32_67 = arith.constant 0 : i32
    %125 = vector.broadcast %c0_i32_67 : i32 to vector<64x256xi32>
    %126 = arith.addi %3, %125 : vector<64x256xi32>
    %c16_i32_68 = arith.constant 16 : i32
    %127 = vector.broadcast %c16_i32_68 : i32 to vector<64x256xi32>
    %128 = arith.cmpi slt, %126, %127 : vector<64x256xi32>
    %129 = arith.andi %124, %128 : vector<64x256xi1>
    %c-1_i32_69 = arith.constant -1 : i32
    %130 = vector.broadcast %c-1_i32_69 : i32 to vector<64x256xi32>
    %131 = arith.addi %5, %130 : vector<64x256xi32>
    %c0_i32_70 = arith.constant 0 : i32
    %132 = vector.broadcast %c0_i32_70 : i32 to vector<64x256xi32>
    %133 = arith.cmpi sge, %131, %132 : vector<64x256xi32>
    %134 = arith.andi %129, %133 : vector<64x256xi1>
    %c-1_i32_71 = arith.constant -1 : i32
    %135 = vector.broadcast %c-1_i32_71 : i32 to vector<64x256xi32>
    %136 = arith.addi %5, %135 : vector<64x256xi32>
    %c16_i32_72 = arith.constant 16 : i32
    %137 = vector.broadcast %c16_i32_72 : i32 to vector<64x256xi32>
    %138 = arith.cmpi slt, %136, %137 : vector<64x256xi32>
    %139 = arith.andi %134, %138 : vector<64x256xi1>
    %cst_73 = arith.constant 0.000000e+00 : f32
    %140 = vector.broadcast %cst_73 : f32 to vector<64x256xf32>
    %141 = arith.select %139, %120, %140 : vector<64x256xi1>, vector<64x256xf32>
    %142 = vector.extract_strided_slice %141 {offsets = [0, 0], sizes = [8, 256], strides = [1, 1]} : vector<64x256xf32> to vector<8x256xf32>
    %c24 = arith.constant 24 : index
    %c0_74 = arith.constant 0 : index
    %143 = vector.load %arg7[%c24, %c0_74] : memref<72x2048xf32, #tpu.memory_space<vmem>>, vector<8x256xf32>
    tpu.vector_store %arg7[%c24, %c0_74], %142 {strides = array<i32>} : memref<72x2048xf32, #tpu.memory_space<vmem>>, vector<8x256xf32>,
    %144 = vector.extract_strided_slice %141 {offsets = [8, 0], sizes = [8, 256], strides = [1, 1]} : vector<64x256xf32> to vector<8x256xf32>
    %c24_75 = arith.constant 24 : index
    %c256_76 = arith.constant 256 : index
    %145 = vector.load %arg7[%c24_75, %c256_76] : memref<72x2048xf32, #tpu.memory_space<vmem>>, vector<8x256xf32>
    tpu.vector_store %arg7[%c24_75, %c256_76], %144 {strides = array<i32>} : memref<72x2048xf32, #tpu.memory_space<vmem>>, vector<8x256xf32>,
    %146 = vector.extract_strided_slice %141 {offsets = [16, 0], sizes = [8, 256], strides = [1, 1]} : vector<64x256xf32> to vector<8x256xf32>
    %c24_77 = arith.constant 24 : index
    %c512_78 = arith.constant 512 : index
    %147 = vector.load %arg7[%c24_77, %c512_78] : memref<72x2048xf32, #tpu.memory_space<vmem>>, vector<8x256xf32>
    tpu.vector_store %arg7[%c24_77, %c512_78], %146 {strides = array<i32>} : memref<72x2048xf32, #tpu.memory_space<vmem>>, vector<8x256xf32>,
    %148 = vector.extract_strided_slice %141 {offsets = [24, 0], sizes = [8, 256], strides = [1, 1]} : vector<64x256xf32> to vector<8x256xf32>
    %c24_79 = arith.constant 24 : index
    %c768_80 = arith.constant 768 : index
    %149 = vector.load %arg7[%c24_79, %c768_80] : memref<72x2048xf32, #tpu.memory_space<vmem>>, vector<8x256xf32>
    tpu.vector_store %arg7[%c24_79, %c768_80], %148 {strides = array<i32>} : memref<72x2048xf32, #tpu.memory_space<vmem>>, vector<8x256xf32>,
    %150 = vector.extract_strided_slice %141 {offsets = [32, 0], sizes = [8, 256], strides = [1, 1]} : vector<64x256xf32> to vector<8x256xf32>
    %c24_81 = arith.constant 24 : index
    %c1024_82 = arith.constant 1024 : index
    %151 = vector.load %arg7[%c24_81, %c1024_82] : memref<72x2048xf32, #tpu.memory_space<vmem>>, vector<8x256xf32>
    tpu.vector_store %arg7[%c24_81, %c1024_82], %150 {strides = array<i32>} : memref<72x2048xf32, #tpu.memory_space<vmem>>, vector<8x256xf32>,
    %152 = vector.extract_strided_slice %141 {offsets = [40, 0], sizes = [8, 256], strides = [1, 1]} : vector<64x256xf32> to vector<8x256xf32>
    %c24_83 = arith.constant 24 : index
    %c1280_84 = arith.constant 1280 : index
    %153 = vector.load %arg7[%c24_83, %c1280_84] : memref<72x2048xf32, #tpu.memory_space<vmem>>, vector<8x256xf32>
    tpu.vector_store %arg7[%c24_83, %c1280_84], %152 {strides = array<i32>} : memref<72x2048xf32, #tpu.memory_space<vmem>>, vector<8x256xf32>,
    %154 = vector.extract_strided_slice %141 {offsets = [48, 0], sizes = [8, 256], strides = [1, 1]} : vector<64x256xf32> to vector<8x256xf32>
    %c24_85 = arith.constant 24 : index
    %c1536_86 = arith.constant 1536 : index
    %155 = vector.load %arg7[%c24_85, %c1536_86] : memref<72x2048xf32, #tpu.memory_space<vmem>>, vector<8x256xf32>
    tpu.vector_store %arg7[%c24_85, %c1536_86], %154 {strides = array<i32>} : memref<72x2048xf32, #tpu.memory_space<vmem>>, vector<8x256xf32>,
    %156 = vector.extract_strided_slice %141 {offsets = [56, 0], sizes = [8, 256], strides = [1, 1]} : vector<64x256xf32> to vector<8x256xf32>
    %c24_87 = arith.constant 24 : index
    %c1792_88 = arith.constant 1792 : index
    %157 = vector.load %arg7[%c24_87, %c1792_88] : memref<72x2048xf32, #tpu.memory_space<vmem>>, vector<8x256xf32>
    tpu.vector_store %arg7[%c24_87, %c1792_88], %156 {strides = array<i32>} : memref<72x2048xf32, #tpu.memory_space<vmem>>, vector<8x256xf32>,
    %c0_i32_89 = arith.constant 0 : i32
    %158 = vector.broadcast %c0_i32_89 : i32 to vector<64x256xi32>
    %159 = arith.addi %3, %158 : vector<64x256xi32>
    %c0_i32_90 = arith.constant 0 : i32
    %160 = vector.broadcast %c0_i32_90 : i32 to vector<64x256xi32>
    %161 = arith.cmpi sge, %159, %160 : vector<64x256xi32>
    %c0_i32_91 = arith.constant 0 : i32
    %162 = vector.broadcast %c0_i32_91 : i32 to vector<64x256xi32>
    %163 = arith.addi %3, %162 : vector<64x256xi32>
    %c16_i32_92 = arith.constant 16 : i32
    %164 = vector.broadcast %c16_i32_92 : i32 to vector<64x256xi32>
    %165 = arith.cmpi slt, %163, %164 : vector<64x256xi32>
    %166 = arith.andi %161, %165 : vector<64x256xi1>
    %c0_i32_93 = arith.constant 0 : i32
    %167 = vector.broadcast %c0_i32_93 : i32 to vector<64x256xi32>
    %168 = arith.addi %5, %167 : vector<64x256xi32>
    %c0_i32_94 = arith.constant 0 : i32
    %169 = vector.broadcast %c0_i32_94 : i32 to vector<64x256xi32>
    %170 = arith.cmpi sge, %168, %169 : vector<64x256xi32>
    %171 = arith.andi %166, %170 : vector<64x256xi1>
    %c0_i32_95 = arith.constant 0 : i32
    %172 = vector.broadcast %c0_i32_95 : i32 to vector<64x256xi32>
    %173 = arith.addi %5, %172 : vector<64x256xi32>
    %c16_i32_96 = arith.constant 16 : i32
    %174 = vector.broadcast %c16_i32_96 : i32 to vector<64x256xi32>
    %175 = arith.cmpi slt, %173, %174 : vector<64x256xi32>
    %176 = arith.andi %171, %175 : vector<64x256xi1>
    %cst_97 = arith.constant 0.000000e+00 : f32
    %177 = vector.broadcast %cst_97 : f32 to vector<64x256xf32>
    %178 = arith.select %176, %0, %177 : vector<64x256xi1>, vector<64x256xf32>
    %179 = vector.extract_strided_slice %178 {offsets = [0, 0], sizes = [8, 256], strides = [1, 1]} : vector<64x256xf32> to vector<8x256xf32>
    %c32 = arith.constant 32 : index
    %c0_98 = arith.constant 0 : index
    %180 = vector.load %arg7[%c32, %c0_98] : memref<72x2048xf32, #tpu.memory_space<vmem>>, vector<8x256xf32>
    tpu.vector_store %arg7[%c32, %c0_98], %179 {strides = array<i32>} : memref<72x2048xf32, #tpu.memory_space<vmem>>, vector<8x256xf32>,
    %181 = vector.extract_strided_slice %178 {offsets = [8, 0], sizes = [8, 256], strides = [1, 1]} : vector<64x256xf32> to vector<8x256xf32>
    %c32_99 = arith.constant 32 : index
    %c256_100 = arith.constant 256 : index
    %182 = vector.load %arg7[%c32_99, %c256_100] : memref<72x2048xf32, #tpu.memory_space<vmem>>, vector<8x256xf32>
    tpu.vector_store %arg7[%c32_99, %c256_100], %181 {strides = array<i32>} : memref<72x2048xf32, #tpu.memory_space<vmem>>, vector<8x256xf32>,
    %183 = vector.extract_strided_slice %178 {offsets = [16, 0], sizes = [8, 256], strides = [1, 1]} : vector<64x256xf32> to vector<8x256xf32>
    %c32_101 = arith.constant 32 : index
    %c512_102 = arith.constant 512 : index
    %184 = vector.load %arg7[%c32_101, %c512_102] : memref<72x2048xf32, #tpu.memory_space<vmem>>, vector<8x256xf32>
    tpu.vector_store %arg7[%c32_101, %c512_102], %183 {strides = array<i32>} : memref<72x2048xf32, #tpu.memory_space<vmem>>, vector<8x256xf32>,
    %185 = vector.extract_strided_slice %178 {offsets = [24, 0], sizes = [8, 256], strides = [1, 1]} : vector<64x256xf32> to vector<8x256xf32>
    %c32_103 = arith.constant 32 : index
    %c768_104 = arith.constant 768 : index
    %186 = vector.load %arg7[%c32_103, %c768_104] : memref<72x2048xf32, #tpu.memory_space<vmem>>, vector<8x256xf32>
    tpu.vector_store %arg7[%c32_103, %c768_104], %185 {strides = array<i32>} : memref<72x2048xf32, #tpu.memory_space<vmem>>, vector<8x256xf32>,
    %187 = vector.extract_strided_slice %178 {offsets = [32, 0], sizes = [8, 256], strides = [1, 1]} : vector<64x256xf32> to vector<8x256xf32>
    %c32_105 = arith.constant 32 : index
    %c1024_106 = arith.constant 1024 : index
    %188 = vector.load %arg7[%c32_105, %c1024_106] : memref<72x2048xf32, #tpu.memory_space<vmem>>, vector<8x256xf32>
    tpu.vector_store %arg7[%c32_105, %c1024_106], %187 {strides = array<i32>} : memref<72x2048xf32, #tpu.memory_space<vmem>>, vector<8x256xf32>,
    %189 = vector.extract_strided_slice %178 {offsets = [40, 0], sizes = [8, 256], strides = [1, 1]} : vector<64x256xf32> to vector<8x256xf32>
    %c32_107 = arith.constant 32 : index
    %c1280_108 = arith.constant 1280 : index
    %190 = vector.load %arg7[%c32_107, %c1280_108] : memref<72x2048xf32, #tpu.memory_space<vmem>>, vector<8x256xf32>
    tpu.vector_store %arg7[%c32_107, %c1280_108], %189 {strides = array<i32>} : memref<72x2048xf32, #tpu.memory_space<vmem>>, vector<8x256xf32>,
    %191 = vector.extract_strided_slice %178 {offsets = [48, 0], sizes = [8, 256], strides = [1, 1]} : vector<64x256xf32> to vector<8x256xf32>
    %c32_109 = arith.constant 32 : index
    %c1536_110 = arith.constant 1536 : index
    %192 = vector.load %arg7[%c32_109, %c1536_110] : memref<72x2048xf32, #tpu.memory_space<vmem>>, vector<8x256xf32>
    tpu.vector_store %arg7[%c32_109, %c1536_110], %191 {strides = array<i32>} : memref<72x2048xf32, #tpu.memory_space<vmem>>, vector<8x256xf32>,
    %193 = vector.extract_strided_slice %178 {offsets = [56, 0], sizes = [8, 256], strides = [1, 1]} : vector<64x256xf32> to vector<8x256xf32>
    %c32_111 = arith.constant 32 : index
    %c1792_112 = arith.constant 1792 : index
    %194 = vector.load %arg7[%c32_111, %c1792_112] : memref<72x2048xf32, #tpu.memory_space<vmem>>, vector<8x256xf32>
    tpu.vector_store %arg7[%c32_111, %c1792_112], %193 {strides = array<i32>} : memref<72x2048xf32, #tpu.memory_space<vmem>>, vector<8x256xf32>,
    %c255_i32 = arith.constant 255 : i32
    %195 = tpu.dynamic_rotate %0 by %c255_i32 dim 1 : vector<64x256xf32>, i32 -> vector<64x256xf32>
    %c0_i32_113 = arith.constant 0 : i32
    %196 = vector.broadcast %c0_i32_113 : i32 to vector<64x256xi32>
    %197 = arith.addi %3, %196 : vector<64x256xi32>
    %c0_i32_114 = arith.constant 0 : i32
    %198 = vector.broadcast %c0_i32_114 : i32 to vector<64x256xi32>
    %199 = arith.cmpi sge, %197, %198 : vector<64x256xi32>
    %c0_i32_115 = arith.constant 0 : i32
    %200 = vector.broadcast %c0_i32_115 : i32 to vector<64x256xi32>
    %201 = arith.addi %3, %200 : vector<64x256xi32>
    %c16_i32_116 = arith.constant 16 : i32
    %202 = vector.broadcast %c16_i32_116 : i32 to vector<64x256xi32>
    %203 = arith.cmpi slt, %201, %202 : vector<64x256xi32>
    %204 = arith.andi %199, %203 : vector<64x256xi1>
    %c1_i32_117 = arith.constant 1 : i32
    %205 = vector.broadcast %c1_i32_117 : i32 to vector<64x256xi32>
    %206 = arith.addi %5, %205 : vector<64x256xi32>
    %c0_i32_118 = arith.constant 0 : i32
    %207 = vector.broadcast %c0_i32_118 : i32 to vector<64x256xi32>
    %208 = arith.cmpi sge, %206, %207 : vector<64x256xi32>
    %209 = arith.andi %204, %208 : vector<64x256xi1>
    %c1_i32_119 = arith.constant 1 : i32
    %210 = vector.broadcast %c1_i32_119 : i32 to vector<64x256xi32>
    %211 = arith.addi %5, %210 : vector<64x256xi32>
    %c16_i32_120 = arith.constant 16 : i32
    %212 = vector.broadcast %c16_i32_120 : i32 to vector<64x256xi32>
    %213 = arith.cmpi slt, %211, %212 : vector<64x256xi32>
    %214 = arith.andi %209, %213 : vector<64x256xi1>
    %cst_121 = arith.constant 0.000000e+00 : f32
    %215 = vector.broadcast %cst_121 : f32 to vector<64x256xf32>
    %216 = arith.select %214, %195, %215 : vector<64x256xi1>, vector<64x256xf32>
    %217 = vector.extract_strided_slice %216 {offsets = [0, 0], sizes = [8, 256], strides = [1, 1]} : vector<64x256xf32> to vector<8x256xf32>
    %c40 = arith.constant 40 : index
    %c0_122 = arith.constant 0 : index
    %218 = vector.load %arg7[%c40, %c0_122] : memref<72x2048xf32, #tpu.memory_space<vmem>>, vector<8x256xf32>
    tpu.vector_store %arg7[%c40, %c0_122], %217 {strides = array<i32>} : memref<72x2048xf32, #tpu.memory_space<vmem>>, vector<8x256xf32>,
    %219 = vector.extract_strided_slice %216 {offsets = [8, 0], sizes = [8, 256], strides = [1, 1]} : vector<64x256xf32> to vector<8x256xf32>
    %c40_123 = arith.constant 40 : index
    %c256_124 = arith.constant 256 : index
    %220 = vector.load %arg7[%c40_123, %c256_124] : memref<72x2048xf32, #tpu.memory_space<vmem>>, vector<8x256xf32>
    tpu.vector_store %arg7[%c40_123, %c256_124], %219 {strides = array<i32>} : memref<72x2048xf32, #tpu.memory_space<vmem>>, vector<8x256xf32>,
    %221 = vector.extract_strided_slice %216 {offsets = [16, 0], sizes = [8, 256], strides = [1, 1]} : vector<64x256xf32> to vector<8x256xf32>
    %c40_125 = arith.constant 40 : index
    %c512_126 = arith.constant 512 : index
    %222 = vector.load %arg7[%c40_125, %c512_126] : memref<72x2048xf32, #tpu.memory_space<vmem>>, vector<8x256xf32>
    tpu.vector_store %arg7[%c40_125, %c512_126], %221 {strides = array<i32>} : memref<72x2048xf32, #tpu.memory_space<vmem>>, vector<8x256xf32>,
    %223 = vector.extract_strided_slice %216 {offsets = [24, 0], sizes = [8, 256], strides = [1, 1]} : vector<64x256xf32> to vector<8x256xf32>
    %c40_127 = arith.constant 40 : index
    %c768_128 = arith.constant 768 : index
    %224 = vector.load %arg7[%c40_127, %c768_128] : memref<72x2048xf32, #tpu.memory_space<vmem>>, vector<8x256xf32>
    tpu.vector_store %arg7[%c40_127, %c768_128], %223 {strides = array<i32>} : memref<72x2048xf32, #tpu.memory_space<vmem>>, vector<8x256xf32>,
    %225 = vector.extract_strided_slice %216 {offsets = [32, 0], sizes = [8, 256], strides = [1, 1]} : vector<64x256xf32> to vector<8x256xf32>
    %c40_129 = arith.constant 40 : index
    %c1024_130 = arith.constant 1024 : index
    %226 = vector.load %arg7[%c40_129, %c1024_130] : memref<72x2048xf32, #tpu.memory_space<vmem>>, vector<8x256xf32>
    tpu.vector_store %arg7[%c40_129, %c1024_130], %225 {strides = array<i32>} : memref<72x2048xf32, #tpu.memory_space<vmem>>, vector<8x256xf32>,
    %227 = vector.extract_strided_slice %216 {offsets = [40, 0], sizes = [8, 256], strides = [1, 1]} : vector<64x256xf32> to vector<8x256xf32>
    %c40_131 = arith.constant 40 : index
    %c1280_132 = arith.constant 1280 : index
    %228 = vector.load %arg7[%c40_131, %c1280_132] : memref<72x2048xf32, #tpu.memory_space<vmem>>, vector<8x256xf32>
    tpu.vector_store %arg7[%c40_131, %c1280_132], %227 {strides = array<i32>} : memref<72x2048xf32, #tpu.memory_space<vmem>>, vector<8x256xf32>,
    %229 = vector.extract_strided_slice %216 {offsets = [48, 0], sizes = [8, 256], strides = [1, 1]} : vector<64x256xf32> to vector<8x256xf32>
    %c40_133 = arith.constant 40 : index
    %c1536_134 = arith.constant 1536 : index
    %230 = vector.load %arg7[%c40_133, %c1536_134] : memref<72x2048xf32, #tpu.memory_space<vmem>>, vector<8x256xf32>
    tpu.vector_store %arg7[%c40_133, %c1536_134], %229 {strides = array<i32>} : memref<72x2048xf32, #tpu.memory_space<vmem>>, vector<8x256xf32>,
    %231 = vector.extract_strided_slice %216 {offsets = [56, 0], sizes = [8, 256], strides = [1, 1]} : vector<64x256xf32> to vector<8x256xf32>
    %c40_135 = arith.constant 40 : index
    %c1792_136 = arith.constant 1792 : index
    %232 = vector.load %arg7[%c40_135, %c1792_136] : memref<72x2048xf32, #tpu.memory_space<vmem>>, vector<8x256xf32>
    tpu.vector_store %arg7[%c40_135, %c1792_136], %231 {strides = array<i32>} : memref<72x2048xf32, #tpu.memory_space<vmem>>, vector<8x256xf32>,
    %c241_i32 = arith.constant 241 : i32
    %233 = tpu.dynamic_rotate %0 by %c241_i32 dim 1 : vector<64x256xf32>, i32 -> vector<64x256xf32>
    %c1_i32_137 = arith.constant 1 : i32
    %234 = vector.broadcast %c1_i32_137 : i32 to vector<64x256xi32>
    %235 = arith.addi %3, %234 : vector<64x256xi32>
    %c0_i32_138 = arith.constant 0 : i32
    %236 = vector.broadcast %c0_i32_138 : i32 to vector<64x256xi32>
    %237 = arith.cmpi sge, %235, %236 : vector<64x256xi32>
    %c1_i32_139 = arith.constant 1 : i32
    %238 = vector.broadcast %c1_i32_139 : i32 to vector<64x256xi32>
    %239 = arith.addi %3, %238 : vector<64x256xi32>
    %c16_i32_140 = arith.constant 16 : i32
    %240 = vector.broadcast %c16_i32_140 : i32 to vector<64x256xi32>
    %241 = arith.cmpi slt, %239, %240 : vector<64x256xi32>
    %242 = arith.andi %237, %241 : vector<64x256xi1>
    %c-1_i32_141 = arith.constant -1 : i32
    %243 = vector.broadcast %c-1_i32_141 : i32 to vector<64x256xi32>
    %244 = arith.addi %5, %243 : vector<64x256xi32>
    %c0_i32_142 = arith.constant 0 : i32
    %245 = vector.broadcast %c0_i32_142 : i32 to vector<64x256xi32>
    %246 = arith.cmpi sge, %244, %245 : vector<64x256xi32>
    %247 = arith.andi %242, %246 : vector<64x256xi1>
    %c-1_i32_143 = arith.constant -1 : i32
    %248 = vector.broadcast %c-1_i32_143 : i32 to vector<64x256xi32>
    %249 = arith.addi %5, %248 : vector<64x256xi32>
    %c16_i32_144 = arith.constant 16 : i32
    %250 = vector.broadcast %c16_i32_144 : i32 to vector<64x256xi32>
    %251 = arith.cmpi slt, %249, %250 : vector<64x256xi32>
    %252 = arith.andi %247, %251 : vector<64x256xi1>
    %cst_145 = arith.constant 0.000000e+00 : f32
    %253 = vector.broadcast %cst_145 : f32 to vector<64x256xf32>
    %254 = arith.select %252, %233, %253 : vector<64x256xi1>, vector<64x256xf32>
    %255 = vector.extract_strided_slice %254 {offsets = [0, 0], sizes = [8, 256], strides = [1, 1]} : vector<64x256xf32> to vector<8x256xf32>
    %c48 = arith.constant 48 : index
    %c0_146 = arith.constant 0 : index
    %256 = vector.load %arg7[%c48, %c0_146] : memref<72x2048xf32, #tpu.memory_space<vmem>>, vector<8x256xf32>
    tpu.vector_store %arg7[%c48, %c0_146], %255 {strides = array<i32>} : memref<72x2048xf32, #tpu.memory_space<vmem>>, vector<8x256xf32>,
    %257 = vector.extract_strided_slice %254 {offsets = [8, 0], sizes = [8, 256], strides = [1, 1]} : vector<64x256xf32> to vector<8x256xf32>
    %c48_147 = arith.constant 48 : index
    %c256_148 = arith.constant 256 : index
    %258 = vector.load %arg7[%c48_147, %c256_148] : memref<72x2048xf32, #tpu.memory_space<vmem>>, vector<8x256xf32>
    tpu.vector_store %arg7[%c48_147, %c256_148], %257 {strides = array<i32>} : memref<72x2048xf32, #tpu.memory_space<vmem>>, vector<8x256xf32>,
    %259 = vector.extract_strided_slice %254 {offsets = [16, 0], sizes = [8, 256], strides = [1, 1]} : vector<64x256xf32> to vector<8x256xf32>
    %c48_149 = arith.constant 48 : index
    %c512_150 = arith.constant 512 : index
    %260 = vector.load %arg7[%c48_149, %c512_150] : memref<72x2048xf32, #tpu.memory_space<vmem>>, vector<8x256xf32>
    tpu.vector_store %arg7[%c48_149, %c512_150], %259 {strides = array<i32>} : memref<72x2048xf32, #tpu.memory_space<vmem>>, vector<8x256xf32>,
    %261 = vector.extract_strided_slice %254 {offsets = [24, 0], sizes = [8, 256], strides = [1, 1]} : vector<64x256xf32> to vector<8x256xf32>
    %c48_151 = arith.constant 48 : index
    %c768_152 = arith.constant 768 : index
    %262 = vector.load %arg7[%c48_151, %c768_152] : memref<72x2048xf32, #tpu.memory_space<vmem>>, vector<8x256xf32>
    tpu.vector_store %arg7[%c48_151, %c768_152], %261 {strides = array<i32>} : memref<72x2048xf32, #tpu.memory_space<vmem>>, vector<8x256xf32>,
    %263 = vector.extract_strided_slice %254 {offsets = [32, 0], sizes = [8, 256], strides = [1, 1]} : vector<64x256xf32> to vector<8x256xf32>
    %c48_153 = arith.constant 48 : index
    %c1024_154 = arith.constant 1024 : index
    %264 = vector.load %arg7[%c48_153, %c1024_154] : memref<72x2048xf32, #tpu.memory_space<vmem>>, vector<8x256xf32>
    tpu.vector_store %arg7[%c48_153, %c1024_154], %263 {strides = array<i32>} : memref<72x2048xf32, #tpu.memory_space<vmem>>, vector<8x256xf32>,
    %265 = vector.extract_strided_slice %254 {offsets = [40, 0], sizes = [8, 256], strides = [1, 1]} : vector<64x256xf32> to vector<8x256xf32>
    %c48_155 = arith.constant 48 : index
    %c1280_156 = arith.constant 1280 : index
    %266 = vector.load %arg7[%c48_155, %c1280_156] : memref<72x2048xf32, #tpu.memory_space<vmem>>, vector<8x256xf32>
    tpu.vector_store %arg7[%c48_155, %c1280_156], %265 {strides = array<i32>} : memref<72x2048xf32, #tpu.memory_space<vmem>>, vector<8x256xf32>,
    %267 = vector.extract_strided_slice %254 {offsets = [48, 0], sizes = [8, 256], strides = [1, 1]} : vector<64x256xf32> to vector<8x256xf32>
    %c48_157 = arith.constant 48 : index
    %c1536_158 = arith.constant 1536 : index
    %268 = vector.load %arg7[%c48_157, %c1536_158] : memref<72x2048xf32, #tpu.memory_space<vmem>>, vector<8x256xf32>
    tpu.vector_store %arg7[%c48_157, %c1536_158], %267 {strides = array<i32>} : memref<72x2048xf32, #tpu.memory_space<vmem>>, vector<8x256xf32>,
    %269 = vector.extract_strided_slice %254 {offsets = [56, 0], sizes = [8, 256], strides = [1, 1]} : vector<64x256xf32> to vector<8x256xf32>
    %c48_159 = arith.constant 48 : index
    %c1792_160 = arith.constant 1792 : index
    %270 = vector.load %arg7[%c48_159, %c1792_160] : memref<72x2048xf32, #tpu.memory_space<vmem>>, vector<8x256xf32>
    tpu.vector_store %arg7[%c48_159, %c1792_160], %269 {strides = array<i32>} : memref<72x2048xf32, #tpu.memory_space<vmem>>, vector<8x256xf32>,
    %c240_i32 = arith.constant 240 : i32
    %271 = tpu.dynamic_rotate %0 by %c240_i32 dim 1 : vector<64x256xf32>, i32 -> vector<64x256xf32>
    %c1_i32_161 = arith.constant 1 : i32
    %272 = vector.broadcast %c1_i32_161 : i32 to vector<64x256xi32>
    %273 = arith.addi %3, %272 : vector<64x256xi32>
    %c0_i32_162 = arith.constant 0 : i32
    %274 = vector.broadcast %c0_i32_162 : i32 to vector<64x256xi32>
    %275 = arith.cmpi sge, %273, %274 : vector<64x256xi32>
    %c1_i32_163 = arith.constant 1 : i32
    %276 = vector.broadcast %c1_i32_163 : i32 to vector<64x256xi32>
    %277 = arith.addi %3, %276 : vector<64x256xi32>
    %c16_i32_164 = arith.constant 16 : i32
    %278 = vector.broadcast %c16_i32_164 : i32 to vector<64x256xi32>
    %279 = arith.cmpi slt, %277, %278 : vector<64x256xi32>
    %280 = arith.andi %275, %279 : vector<64x256xi1>
    %c0_i32_165 = arith.constant 0 : i32
    %281 = vector.broadcast %c0_i32_165 : i32 to vector<64x256xi32>
    %282 = arith.addi %5, %281 : vector<64x256xi32>
    %c0_i32_166 = arith.constant 0 : i32
    %283 = vector.broadcast %c0_i32_166 : i32 to vector<64x256xi32>
    %284 = arith.cmpi sge, %282, %283 : vector<64x256xi32>
    %285 = arith.andi %280, %284 : vector<64x256xi1>
    %c0_i32_167 = arith.constant 0 : i32
    %286 = vector.broadcast %c0_i32_167 : i32 to vector<64x256xi32>
    %287 = arith.addi %5, %286 : vector<64x256xi32>
    %c16_i32_168 = arith.constant 16 : i32
    %288 = vector.broadcast %c16_i32_168 : i32 to vector<64x256xi32>
    %289 = arith.cmpi slt, %287, %288 : vector<64x256xi32>
    %290 = arith.andi %285, %289 : vector<64x256xi1>
    %cst_169 = arith.constant 0.000000e+00 : f32
    %291 = vector.broadcast %cst_169 : f32 to vector<64x256xf32>
    %292 = arith.select %290, %271, %291 : vector<64x256xi1>, vector<64x256xf32>
    %293 = vector.extract_strided_slice %292 {offsets = [0, 0], sizes = [8, 256], strides = [1, 1]} : vector<64x256xf32> to vector<8x256xf32>
    %c56 = arith.constant 56 : index
    %c0_170 = arith.constant 0 : index
    %294 = vector.load %arg7[%c56, %c0_170] : memref<72x2048xf32, #tpu.memory_space<vmem>>, vector<8x256xf32>
    tpu.vector_store %arg7[%c56, %c0_170], %293 {strides = array<i32>} : memref<72x2048xf32, #tpu.memory_space<vmem>>, vector<8x256xf32>,
    %295 = vector.extract_strided_slice %292 {offsets = [8, 0], sizes = [8, 256], strides = [1, 1]} : vector<64x256xf32> to vector<8x256xf32>
    %c56_171 = arith.constant 56 : index
    %c256_172 = arith.constant 256 : index
    %296 = vector.load %arg7[%c56_171, %c256_172] : memref<72x2048xf32, #tpu.memory_space<vmem>>, vector<8x256xf32>
    tpu.vector_store %arg7[%c56_171, %c256_172], %295 {strides = array<i32>} : memref<72x2048xf32, #tpu.memory_space<vmem>>, vector<8x256xf32>,
    %297 = vector.extract_strided_slice %292 {offsets = [16, 0], sizes = [8, 256], strides = [1, 1]} : vector<64x256xf32> to vector<8x256xf32>
    %c56_173 = arith.constant 56 : index
    %c512_174 = arith.constant 512 : index
    %298 = vector.load %arg7[%c56_173, %c512_174] : memref<72x2048xf32, #tpu.memory_space<vmem>>, vector<8x256xf32>
    tpu.vector_store %arg7[%c56_173, %c512_174], %297 {strides = array<i32>} : memref<72x2048xf32, #tpu.memory_space<vmem>>, vector<8x256xf32>,
    %299 = vector.extract_strided_slice %292 {offsets = [24, 0], sizes = [8, 256], strides = [1, 1]} : vector<64x256xf32> to vector<8x256xf32>
    %c56_175 = arith.constant 56 : index
    %c768_176 = arith.constant 768 : index
    %300 = vector.load %arg7[%c56_175, %c768_176] : memref<72x2048xf32, #tpu.memory_space<vmem>>, vector<8x256xf32>
    tpu.vector_store %arg7[%c56_175, %c768_176], %299 {strides = array<i32>} : memref<72x2048xf32, #tpu.memory_space<vmem>>, vector<8x256xf32>,
    %301 = vector.extract_strided_slice %292 {offsets = [32, 0], sizes = [8, 256], strides = [1, 1]} : vector<64x256xf32> to vector<8x256xf32>
    %c56_177 = arith.constant 56 : index
    %c1024_178 = arith.constant 1024 : index
    %302 = vector.load %arg7[%c56_177, %c1024_178] : memref<72x2048xf32, #tpu.memory_space<vmem>>, vector<8x256xf32>
    tpu.vector_store %arg7[%c56_177, %c1024_178], %301 {strides = array<i32>} : memref<72x2048xf32, #tpu.memory_space<vmem>>, vector<8x256xf32>,
    %303 = vector.extract_strided_slice %292 {offsets = [40, 0], sizes = [8, 256], strides = [1, 1]} : vector<64x256xf32> to vector<8x256xf32>
    %c56_179 = arith.constant 56 : index
    %c1280_180 = arith.constant 1280 : index
    %304 = vector.load %arg7[%c56_179, %c1280_180] : memref<72x2048xf32, #tpu.memory_space<vmem>>, vector<8x256xf32>
    tpu.vector_store %arg7[%c56_179, %c1280_180], %303 {strides = array<i32>} : memref<72x2048xf32, #tpu.memory_space<vmem>>, vector<8x256xf32>,
    %305 = vector.extract_strided_slice %292 {offsets = [48, 0], sizes = [8, 256], strides = [1, 1]} : vector<64x256xf32> to vector<8x256xf32>
    %c56_181 = arith.constant 56 : index
    %c1536_182 = arith.constant 1536 : index
    %306 = vector.load %arg7[%c56_181, %c1536_182] : memref<72x2048xf32, #tpu.memory_space<vmem>>, vector<8x256xf32>
    tpu.vector_store %arg7[%c56_181, %c1536_182], %305 {strides = array<i32>} : memref<72x2048xf32, #tpu.memory_space<vmem>>, vector<8x256xf32>,
    %307 = vector.extract_strided_slice %292 {offsets = [56, 0], sizes = [8, 256], strides = [1, 1]} : vector<64x256xf32> to vector<8x256xf32>
    %c56_183 = arith.constant 56 : index
    %c1792_184 = arith.constant 1792 : index
    %308 = vector.load %arg7[%c56_183, %c1792_184] : memref<72x2048xf32, #tpu.memory_space<vmem>>, vector<8x256xf32>
    tpu.vector_store %arg7[%c56_183, %c1792_184], %307 {strides = array<i32>} : memref<72x2048xf32, #tpu.memory_space<vmem>>, vector<8x256xf32>,
    %c239_i32 = arith.constant 239 : i32
    %309 = tpu.dynamic_rotate %0 by %c239_i32 dim 1 : vector<64x256xf32>, i32 -> vector<64x256xf32>
    %c1_i32_185 = arith.constant 1 : i32
    %310 = vector.broadcast %c1_i32_185 : i32 to vector<64x256xi32>
    %311 = arith.addi %3, %310 : vector<64x256xi32>
    %c0_i32_186 = arith.constant 0 : i32
    %312 = vector.broadcast %c0_i32_186 : i32 to vector<64x256xi32>
    %313 = arith.cmpi sge, %311, %312 : vector<64x256xi32>
    %c1_i32_187 = arith.constant 1 : i32
    %314 = vector.broadcast %c1_i32_187 : i32 to vector<64x256xi32>
    %315 = arith.addi %3, %314 : vector<64x256xi32>
    %c16_i32_188 = arith.constant 16 : i32
    %316 = vector.broadcast %c16_i32_188 : i32 to vector<64x256xi32>
    %317 = arith.cmpi slt, %315, %316 : vector<64x256xi32>
    %318 = arith.andi %313, %317 : vector<64x256xi1>
    %c1_i32_189 = arith.constant 1 : i32
    %319 = vector.broadcast %c1_i32_189 : i32 to vector<64x256xi32>
    %320 = arith.addi %5, %319 : vector<64x256xi32>
    %c0_i32_190 = arith.constant 0 : i32
    %321 = vector.broadcast %c0_i32_190 : i32 to vector<64x256xi32>
    %322 = arith.cmpi sge, %320, %321 : vector<64x256xi32>
    %323 = arith.andi %318, %322 : vector<64x256xi1>
    %c1_i32_191 = arith.constant 1 : i32
    %324 = vector.broadcast %c1_i32_191 : i32 to vector<64x256xi32>
    %325 = arith.addi %5, %324 : vector<64x256xi32>
    %c16_i32_192 = arith.constant 16 : i32
    %326 = vector.broadcast %c16_i32_192 : i32 to vector<64x256xi32>
    %327 = arith.cmpi slt, %325, %326 : vector<64x256xi32>
    %328 = arith.andi %323, %327 : vector<64x256xi1>
    %cst_193 = arith.constant 0.000000e+00 : f32
    %329 = vector.broadcast %cst_193 : f32 to vector<64x256xf32>
    %330 = arith.select %328, %309, %329 : vector<64x256xi1>, vector<64x256xf32>
    %331 = vector.extract_strided_slice %330 {offsets = [0, 0], sizes = [8, 256], strides = [1, 1]} : vector<64x256xf32> to vector<8x256xf32>
    %c64 = arith.constant 64 : index
    %c0_194 = arith.constant 0 : index
    %332 = vector.load %arg7[%c64, %c0_194] : memref<72x2048xf32, #tpu.memory_space<vmem>>, vector<8x256xf32>
    tpu.vector_store %arg7[%c64, %c0_194], %331 {strides = array<i32>} : memref<72x2048xf32, #tpu.memory_space<vmem>>, vector<8x256xf32>,
    %333 = vector.extract_strided_slice %330 {offsets = [8, 0], sizes = [8, 256], strides = [1, 1]} : vector<64x256xf32> to vector<8x256xf32>
    %c64_195 = arith.constant 64 : index
    %c256_196 = arith.constant 256 : index
    %334 = vector.load %arg7[%c64_195, %c256_196] : memref<72x2048xf32, #tpu.memory_space<vmem>>, vector<8x256xf32>
    tpu.vector_store %arg7[%c64_195, %c256_196], %333 {strides = array<i32>} : memref<72x2048xf32, #tpu.memory_space<vmem>>, vector<8x256xf32>,
    %335 = vector.extract_strided_slice %330 {offsets = [16, 0], sizes = [8, 256], strides = [1, 1]} : vector<64x256xf32> to vector<8x256xf32>
    %c64_197 = arith.constant 64 : index
    %c512_198 = arith.constant 512 : index
    %336 = vector.load %arg7[%c64_197, %c512_198] : memref<72x2048xf32, #tpu.memory_space<vmem>>, vector<8x256xf32>
    tpu.vector_store %arg7[%c64_197, %c512_198], %335 {strides = array<i32>} : memref<72x2048xf32, #tpu.memory_space<vmem>>, vector<8x256xf32>,
    %337 = vector.extract_strided_slice %330 {offsets = [24, 0], sizes = [8, 256], strides = [1, 1]} : vector<64x256xf32> to vector<8x256xf32>
    %c64_199 = arith.constant 64 : index
    %c768_200 = arith.constant 768 : index
    %338 = vector.load %arg7[%c64_199, %c768_200] : memref<72x2048xf32, #tpu.memory_space<vmem>>, vector<8x256xf32>
    tpu.vector_store %arg7[%c64_199, %c768_200], %337 {strides = array<i32>} : memref<72x2048xf32, #tpu.memory_space<vmem>>, vector<8x256xf32>,
    %339 = vector.extract_strided_slice %330 {offsets = [32, 0], sizes = [8, 256], strides = [1, 1]} : vector<64x256xf32> to vector<8x256xf32>
    %c64_201 = arith.constant 64 : index
    %c1024_202 = arith.constant 1024 : index
    %340 = vector.load %arg7[%c64_201, %c1024_202] : memref<72x2048xf32, #tpu.memory_space<vmem>>, vector<8x256xf32>
    tpu.vector_store %arg7[%c64_201, %c1024_202], %339 {strides = array<i32>} : memref<72x2048xf32, #tpu.memory_space<vmem>>, vector<8x256xf32>,
    %341 = vector.extract_strided_slice %330 {offsets = [40, 0], sizes = [8, 256], strides = [1, 1]} : vector<64x256xf32> to vector<8x256xf32>
    %c64_203 = arith.constant 64 : index
    %c1280_204 = arith.constant 1280 : index
    %342 = vector.load %arg7[%c64_203, %c1280_204] : memref<72x2048xf32, #tpu.memory_space<vmem>>, vector<8x256xf32>
    tpu.vector_store %arg7[%c64_203, %c1280_204], %341 {strides = array<i32>} : memref<72x2048xf32, #tpu.memory_space<vmem>>, vector<8x256xf32>,
    %343 = vector.extract_strided_slice %330 {offsets = [48, 0], sizes = [8, 256], strides = [1, 1]} : vector<64x256xf32> to vector<8x256xf32>
    %c64_205 = arith.constant 64 : index
    %c1536_206 = arith.constant 1536 : index
    %344 = vector.load %arg7[%c64_205, %c1536_206] : memref<72x2048xf32, #tpu.memory_space<vmem>>, vector<8x256xf32>
    tpu.vector_store %arg7[%c64_205, %c1536_206], %343 {strides = array<i32>} : memref<72x2048xf32, #tpu.memory_space<vmem>>, vector<8x256xf32>,
    %345 = vector.extract_strided_slice %330 {offsets = [56, 0], sizes = [8, 256], strides = [1, 1]} : vector<64x256xf32> to vector<8x256xf32>
    %c64_207 = arith.constant 64 : index
    %c1792_208 = arith.constant 1792 : index
    %346 = vector.load %arg7[%c64_207, %c1792_208] : memref<72x2048xf32, #tpu.memory_space<vmem>>, vector<8x256xf32>
    tpu.vector_store %arg7[%c64_207, %c1792_208], %345 {strides = array<i32>} : memref<72x2048xf32, #tpu.memory_space<vmem>>, vector<8x256xf32>,
    %c0_209 = arith.constant 0 : index
    %c0_210 = arith.constant 0 : index
    %347 = vector.load %arg2[%c0_209, %c0_210] : memref<8x72xf32, #tpu.memory_space<vmem>>, vector<8x72xf32>
    %c0_211 = arith.constant 0 : index
    %c0_212 = arith.constant 0 : index
    %348 = vector.load %arg7[%c0_211, %c0_212] : memref<72x2048xf32, #tpu.memory_space<vmem>>, vector<72x2048xf32>
    %cst_213 = arith.constant dense<0.000000e+00> : vector<8x2048xf32>
    %349 = tpu.matmul %347, %348, %cst_213 {dimension_numbers = #tpu.dot_dimension_numbers<[1], [0], [0], [1], [0, 0, 1, 1], [], []>} : vector<8x72xf32>, vector<72x2048xf32>, vector<8x2048xf32> -> vector<8x2048xf32>
    %c0_214 = arith.constant 0 : index
    %c0_215 = arith.constant 0 : index
    %350 = vector.load %arg3[%c0_214, %c0_215] : memref<8x1xf32, #tpu.memory_space<vmem>>, vector<8x1xf32>
    %351 = vector.broadcast %350 : vector<8x1xf32> to vector<8x2048xf32>
    %352 = arith.addf %349, %351 : vector<8x2048xf32>
    %cst_216 = arith.constant 0.000000e+00 : f32
    %353 = vector.broadcast %cst_216 : f32 to vector<8x2048xf32>
    %354 = arith.maximumf %352, %353 : vector<8x2048xf32>
    %355 = vector.extract_strided_slice %354 {offsets = [0, 0], sizes = [1, 256], strides = [1, 1]} : vector<8x2048xf32> to vector<1x256xf32>
    %c0_217 = arith.constant 0 : index
    %c0_218 = arith.constant 0 : index
    %356 = vector.load %arg8[%c0_217, %c0_218] : memref<8x2048xf32, #tpu.memory_space<vmem>>, vector<1x256xf32>
    tpu.vector_store %arg8[%c0_217, %c0_218], %355 {strides = array<i32>} : memref<8x2048xf32, #tpu.memory_space<vmem>>, vector<1x256xf32>,
    %357 = vector.extract_strided_slice %354 {offsets = [1, 0], sizes = [1, 256], strides = [1, 1]} : vector<8x2048xf32> to vector<1x256xf32>
    %c0_219 = arith.constant 0 : index
    %c256_220 = arith.constant 256 : index
    %358 = vector.load %arg8[%c0_219, %c256_220] : memref<8x2048xf32, #tpu.memory_space<vmem>>, vector<1x256xf32>
    tpu.vector_store %arg8[%c0_219, %c256_220], %357 {strides = array<i32>} : memref<8x2048xf32, #tpu.memory_space<vmem>>, vector<1x256xf32>,
    %359 = vector.extract_strided_slice %354 {offsets = [2, 0], sizes = [1, 256], strides = [1, 1]} : vector<8x2048xf32> to vector<1x256xf32>
    %c0_221 = arith.constant 0 : index
    %c512_222 = arith.constant 512 : index
    %360 = vector.load %arg8[%c0_221, %c512_222] : memref<8x2048xf32, #tpu.memory_space<vmem>>, vector<1x256xf32>
    tpu.vector_store %arg8[%c0_221, %c512_222], %359 {strides = array<i32>} : memref<8x2048xf32, #tpu.memory_space<vmem>>, vector<1x256xf32>,
    %361 = vector.extract_strided_slice %354 {offsets = [3, 0], sizes = [1, 256], strides = [1, 1]} : vector<8x2048xf32> to vector<1x256xf32>
    %c0_223 = arith.constant 0 : index
    %c768_224 = arith.constant 768 : index
    %362 = vector.load %arg8[%c0_223, %c768_224] : memref<8x2048xf32, #tpu.memory_space<vmem>>, vector<1x256xf32>
    tpu.vector_store %arg8[%c0_223, %c768_224], %361 {strides = array<i32>} : memref<8x2048xf32, #tpu.memory_space<vmem>>, vector<1x256xf32>,
    %363 = vector.extract_strided_slice %354 {offsets = [4, 0], sizes = [1, 256], strides = [1, 1]} : vector<8x2048xf32> to vector<1x256xf32>
    %c0_225 = arith.constant 0 : index
    %c1024_226 = arith.constant 1024 : index
    %364 = vector.load %arg8[%c0_225, %c1024_226] : memref<8x2048xf32, #tpu.memory_space<vmem>>, vector<1x256xf32>
    tpu.vector_store %arg8[%c0_225, %c1024_226], %363 {strides = array<i32>} : memref<8x2048xf32, #tpu.memory_space<vmem>>, vector<1x256xf32>,
    %365 = vector.extract_strided_slice %354 {offsets = [5, 0], sizes = [1, 256], strides = [1, 1]} : vector<8x2048xf32> to vector<1x256xf32>
    %c0_227 = arith.constant 0 : index
    %c1280_228 = arith.constant 1280 : index
    %366 = vector.load %arg8[%c0_227, %c1280_228] : memref<8x2048xf32, #tpu.memory_space<vmem>>, vector<1x256xf32>
    tpu.vector_store %arg8[%c0_227, %c1280_228], %365 {strides = array<i32>} : memref<8x2048xf32, #tpu.memory_space<vmem>>, vector<1x256xf32>,
    %367 = vector.extract_strided_slice %354 {offsets = [6, 0], sizes = [1, 256], strides = [1, 1]} : vector<8x2048xf32> to vector<1x256xf32>
    %c0_229 = arith.constant 0 : index
    %c1536_230 = arith.constant 1536 : index
    %368 = vector.load %arg8[%c0_229, %c1536_230] : memref<8x2048xf32, #tpu.memory_space<vmem>>, vector<1x256xf32>
    tpu.vector_store %arg8[%c0_229, %c1536_230], %367 {strides = array<i32>} : memref<8x2048xf32, #tpu.memory_space<vmem>>, vector<1x256xf32>,
    %369 = vector.extract_strided_slice %354 {offsets = [7, 0], sizes = [1, 256], strides = [1, 1]} : vector<8x2048xf32> to vector<1x256xf32>
    %c0_231 = arith.constant 0 : index
    %c1792_232 = arith.constant 1792 : index
    %370 = vector.load %arg8[%c0_231, %c1792_232] : memref<8x2048xf32, #tpu.memory_space<vmem>>, vector<1x256xf32>
    tpu.vector_store %arg8[%c0_231, %c1792_232], %369 {strides = array<i32>} : memref<8x2048xf32, #tpu.memory_space<vmem>>, vector<1x256xf32>,
    %371 = vector.extract_strided_slice %354 {offsets = [0, 256], sizes = [1, 256], strides = [1, 1]} : vector<8x2048xf32> to vector<1x256xf32>
    %c1 = arith.constant 1 : index
    %c0_233 = arith.constant 0 : index
    %372 = vector.load %arg8[%c1, %c0_233] : memref<8x2048xf32, #tpu.memory_space<vmem>>, vector<1x256xf32>
    tpu.vector_store %arg8[%c1, %c0_233], %371 {strides = array<i32>} : memref<8x2048xf32, #tpu.memory_space<vmem>>, vector<1x256xf32>,
    %373 = vector.extract_strided_slice %354 {offsets = [1, 256], sizes = [1, 256], strides = [1, 1]} : vector<8x2048xf32> to vector<1x256xf32>
    %c1_234 = arith.constant 1 : index
    %c256_235 = arith.constant 256 : index
    %374 = vector.load %arg8[%c1_234, %c256_235] : memref<8x2048xf32, #tpu.memory_space<vmem>>, vector<1x256xf32>
    tpu.vector_store %arg8[%c1_234, %c256_235], %373 {strides = array<i32>} : memref<8x2048xf32, #tpu.memory_space<vmem>>, vector<1x256xf32>,
    %375 = vector.extract_strided_slice %354 {offsets = [2, 256], sizes = [1, 256], strides = [1, 1]} : vector<8x2048xf32> to vector<1x256xf32>
    %c1_236 = arith.constant 1 : index
    %c512_237 = arith.constant 512 : index
    %376 = vector.load %arg8[%c1_236, %c512_237] : memref<8x2048xf32, #tpu.memory_space<vmem>>, vector<1x256xf32>
    tpu.vector_store %arg8[%c1_236, %c512_237], %375 {strides = array<i32>} : memref<8x2048xf32, #tpu.memory_space<vmem>>, vector<1x256xf32>,
    %377 = vector.extract_strided_slice %354 {offsets = [3, 256], sizes = [1, 256], strides = [1, 1]} : vector<8x2048xf32> to vector<1x256xf32>
    %c1_238 = arith.constant 1 : index
    %c768_239 = arith.constant 768 : index
    %378 = vector.load %arg8[%c1_238, %c768_239] : memref<8x2048xf32, #tpu.memory_space<vmem>>, vector<1x256xf32>
    tpu.vector_store %arg8[%c1_238, %c768_239], %377 {strides = array<i32>} : memref<8x2048xf32, #tpu.memory_space<vmem>>, vector<1x256xf32>,
    %379 = vector.extract_strided_slice %354 {offsets = [4, 256], sizes = [1, 256], strides = [1, 1]} : vector<8x2048xf32> to vector<1x256xf32>
    %c1_240 = arith.constant 1 : index
    %c1024_241 = arith.constant 1024 : index
    %380 = vector.load %arg8[%c1_240, %c1024_241] : memref<8x2048xf32, #tpu.memory_space<vmem>>, vector<1x256xf32>
    tpu.vector_store %arg8[%c1_240, %c1024_241], %379 {strides = array<i32>} : memref<8x2048xf32, #tpu.memory_space<vmem>>, vector<1x256xf32>,
    %381 = vector.extract_strided_slice %354 {offsets = [5, 256], sizes = [1, 256], strides = [1, 1]} : vector<8x2048xf32> to vector<1x256xf32>
    %c1_242 = arith.constant 1 : index
    %c1280_243 = arith.constant 1280 : index
    %382 = vector.load %arg8[%c1_242, %c1280_243] : memref<8x2048xf32, #tpu.memory_space<vmem>>, vector<1x256xf32>
    tpu.vector_store %arg8[%c1_242, %c1280_243], %381 {strides = array<i32>} : memref<8x2048xf32, #tpu.memory_space<vmem>>, vector<1x256xf32>,
    %383 = vector.extract_strided_slice %354 {offsets = [6, 256], sizes = [1, 256], strides = [1, 1]} : vector<8x2048xf32> to vector<1x256xf32>
    %c1_244 = arith.constant 1 : index
    %c1536_245 = arith.constant 1536 : index
    %384 = vector.load %arg8[%c1_244, %c1536_245] : memref<8x2048xf32, #tpu.memory_space<vmem>>, vector<1x256xf32>
    tpu.vector_store %arg8[%c1_244, %c1536_245], %383 {strides = array<i32>} : memref<8x2048xf32, #tpu.memory_space<vmem>>, vector<1x256xf32>,
    %385 = vector.extract_strided_slice %354 {offsets = [7, 256], sizes = [1, 256], strides = [1, 1]} : vector<8x2048xf32> to vector<1x256xf32>
    %c1_246 = arith.constant 1 : index
    %c1792_247 = arith.constant 1792 : index
    %386 = vector.load %arg8[%c1_246, %c1792_247] : memref<8x2048xf32, #tpu.memory_space<vmem>>, vector<1x256xf32>
    tpu.vector_store %arg8[%c1_246, %c1792_247], %385 {strides = array<i32>} : memref<8x2048xf32, #tpu.memory_space<vmem>>, vector<1x256xf32>,
    %387 = vector.extract_strided_slice %354 {offsets = [0, 512], sizes = [1, 256], strides = [1, 1]} : vector<8x2048xf32> to vector<1x256xf32>
    %c2 = arith.constant 2 : index
    %c0_248 = arith.constant 0 : index
    %388 = vector.load %arg8[%c2, %c0_248] : memref<8x2048xf32, #tpu.memory_space<vmem>>, vector<1x256xf32>
    tpu.vector_store %arg8[%c2, %c0_248], %387 {strides = array<i32>} : memref<8x2048xf32, #tpu.memory_space<vmem>>, vector<1x256xf32>,
    %389 = vector.extract_strided_slice %354 {offsets = [1, 512], sizes = [1, 256], strides = [1, 1]} : vector<8x2048xf32> to vector<1x256xf32>
    %c2_249 = arith.constant 2 : index
    %c256_250 = arith.constant 256 : index
    %390 = vector.load %arg8[%c2_249, %c256_250] : memref<8x2048xf32, #tpu.memory_space<vmem>>, vector<1x256xf32>
    tpu.vector_store %arg8[%c2_249, %c256_250], %389 {strides = array<i32>} : memref<8x2048xf32, #tpu.memory_space<vmem>>, vector<1x256xf32>,
    %391 = vector.extract_strided_slice %354 {offsets = [2, 512], sizes = [1, 256], strides = [1, 1]} : vector<8x2048xf32> to vector<1x256xf32>
    %c2_251 = arith.constant 2 : index
    %c512_252 = arith.constant 512 : index
    %392 = vector.load %arg8[%c2_251, %c512_252] : memref<8x2048xf32, #tpu.memory_space<vmem>>, vector<1x256xf32>
    tpu.vector_store %arg8[%c2_251, %c512_252], %391 {strides = array<i32>} : memref<8x2048xf32, #tpu.memory_space<vmem>>, vector<1x256xf32>,
    %393 = vector.extract_strided_slice %354 {offsets = [3, 512], sizes = [1, 256], strides = [1, 1]} : vector<8x2048xf32> to vector<1x256xf32>
    %c2_253 = arith.constant 2 : index
    %c768_254 = arith.constant 768 : index
    %394 = vector.load %arg8[%c2_253, %c768_254] : memref<8x2048xf32, #tpu.memory_space<vmem>>, vector<1x256xf32>
    tpu.vector_store %arg8[%c2_253, %c768_254], %393 {strides = array<i32>} : memref<8x2048xf32, #tpu.memory_space<vmem>>, vector<1x256xf32>,
    %395 = vector.extract_strided_slice %354 {offsets = [4, 512], sizes = [1, 256], strides = [1, 1]} : vector<8x2048xf32> to vector<1x256xf32>
    %c2_255 = arith.constant 2 : index
    %c1024_256 = arith.constant 1024 : index
    %396 = vector.load %arg8[%c2_255, %c1024_256] : memref<8x2048xf32, #tpu.memory_space<vmem>>, vector<1x256xf32>
    tpu.vector_store %arg8[%c2_255, %c1024_256], %395 {strides = array<i32>} : memref<8x2048xf32, #tpu.memory_space<vmem>>, vector<1x256xf32>,
    %397 = vector.extract_strided_slice %354 {offsets = [5, 512], sizes = [1, 256], strides = [1, 1]} : vector<8x2048xf32> to vector<1x256xf32>
    %c2_257 = arith.constant 2 : index
    %c1280_258 = arith.constant 1280 : index
    %398 = vector.load %arg8[%c2_257, %c1280_258] : memref<8x2048xf32, #tpu.memory_space<vmem>>, vector<1x256xf32>
    tpu.vector_store %arg8[%c2_257, %c1280_258], %397 {strides = array<i32>} : memref<8x2048xf32, #tpu.memory_space<vmem>>, vector<1x256xf32>,
    %399 = vector.extract_strided_slice %354 {offsets = [6, 512], sizes = [1, 256], strides = [1, 1]} : vector<8x2048xf32> to vector<1x256xf32>
    %c2_259 = arith.constant 2 : index
    %c1536_260 = arith.constant 1536 : index
    %400 = vector.load %arg8[%c2_259, %c1536_260] : memref<8x2048xf32, #tpu.memory_space<vmem>>, vector<1x256xf32>
    tpu.vector_store %arg8[%c2_259, %c1536_260], %399 {strides = array<i32>} : memref<8x2048xf32, #tpu.memory_space<vmem>>, vector<1x256xf32>,
    %401 = vector.extract_strided_slice %354 {offsets = [7, 512], sizes = [1, 256], strides = [1, 1]} : vector<8x2048xf32> to vector<1x256xf32>
    %c2_261 = arith.constant 2 : index
    %c1792_262 = arith.constant 1792 : index
    %402 = vector.load %arg8[%c2_261, %c1792_262] : memref<8x2048xf32, #tpu.memory_space<vmem>>, vector<1x256xf32>
    tpu.vector_store %arg8[%c2_261, %c1792_262], %401 {strides = array<i32>} : memref<8x2048xf32, #tpu.memory_space<vmem>>, vector<1x256xf32>,
    %403 = vector.extract_strided_slice %354 {offsets = [0, 768], sizes = [1, 256], strides = [1, 1]} : vector<8x2048xf32> to vector<1x256xf32>
    %c3 = arith.constant 3 : index
    %c0_263 = arith.constant 0 : index
    %404 = vector.load %arg8[%c3, %c0_263] : memref<8x2048xf32, #tpu.memory_space<vmem>>, vector<1x256xf32>
    tpu.vector_store %arg8[%c3, %c0_263], %403 {strides = array<i32>} : memref<8x2048xf32, #tpu.memory_space<vmem>>, vector<1x256xf32>,
    %405 = vector.extract_strided_slice %354 {offsets = [1, 768], sizes = [1, 256], strides = [1, 1]} : vector<8x2048xf32> to vector<1x256xf32>
    %c3_264 = arith.constant 3 : index
    %c256_265 = arith.constant 256 : index
    %406 = vector.load %arg8[%c3_264, %c256_265] : memref<8x2048xf32, #tpu.memory_space<vmem>>, vector<1x256xf32>
    tpu.vector_store %arg8[%c3_264, %c256_265], %405 {strides = array<i32>} : memref<8x2048xf32, #tpu.memory_space<vmem>>, vector<1x256xf32>,
    %407 = vector.extract_strided_slice %354 {offsets = [2, 768], sizes = [1, 256], strides = [1, 1]} : vector<8x2048xf32> to vector<1x256xf32>
    %c3_266 = arith.constant 3 : index
    %c512_267 = arith.constant 512 : index
    %408 = vector.load %arg8[%c3_266, %c512_267] : memref<8x2048xf32, #tpu.memory_space<vmem>>, vector<1x256xf32>
    tpu.vector_store %arg8[%c3_266, %c512_267], %407 {strides = array<i32>} : memref<8x2048xf32, #tpu.memory_space<vmem>>, vector<1x256xf32>,
    %409 = vector.extract_strided_slice %354 {offsets = [3, 768], sizes = [1, 256], strides = [1, 1]} : vector<8x2048xf32> to vector<1x256xf32>
    %c3_268 = arith.constant 3 : index
    %c768_269 = arith.constant 768 : index
    %410 = vector.load %arg8[%c3_268, %c768_269] : memref<8x2048xf32, #tpu.memory_space<vmem>>, vector<1x256xf32>
    tpu.vector_store %arg8[%c3_268, %c768_269], %409 {strides = array<i32>} : memref<8x2048xf32, #tpu.memory_space<vmem>>, vector<1x256xf32>,
    %411 = vector.extract_strided_slice %354 {offsets = [4, 768], sizes = [1, 256], strides = [1, 1]} : vector<8x2048xf32> to vector<1x256xf32>
    %c3_270 = arith.constant 3 : index
    %c1024_271 = arith.constant 1024 : index
    %412 = vector.load %arg8[%c3_270, %c1024_271] : memref<8x2048xf32, #tpu.memory_space<vmem>>, vector<1x256xf32>
    tpu.vector_store %arg8[%c3_270, %c1024_271], %411 {strides = array<i32>} : memref<8x2048xf32, #tpu.memory_space<vmem>>, vector<1x256xf32>,
    %413 = vector.extract_strided_slice %354 {offsets = [5, 768], sizes = [1, 256], strides = [1, 1]} : vector<8x2048xf32> to vector<1x256xf32>
    %c3_272 = arith.constant 3 : index
    %c1280_273 = arith.constant 1280 : index
    %414 = vector.load %arg8[%c3_272, %c1280_273] : memref<8x2048xf32, #tpu.memory_space<vmem>>, vector<1x256xf32>
    tpu.vector_store %arg8[%c3_272, %c1280_273], %413 {strides = array<i32>} : memref<8x2048xf32, #tpu.memory_space<vmem>>, vector<1x256xf32>,
    %415 = vector.extract_strided_slice %354 {offsets = [6, 768], sizes = [1, 256], strides = [1, 1]} : vector<8x2048xf32> to vector<1x256xf32>
    %c3_274 = arith.constant 3 : index
    %c1536_275 = arith.constant 1536 : index
    %416 = vector.load %arg8[%c3_274, %c1536_275] : memref<8x2048xf32, #tpu.memory_space<vmem>>, vector<1x256xf32>
    tpu.vector_store %arg8[%c3_274, %c1536_275], %415 {strides = array<i32>} : memref<8x2048xf32, #tpu.memory_space<vmem>>, vector<1x256xf32>,
    %417 = vector.extract_strided_slice %354 {offsets = [7, 768], sizes = [1, 256], strides = [1, 1]} : vector<8x2048xf32> to vector<1x256xf32>
    %c3_276 = arith.constant 3 : index
    %c1792_277 = arith.constant 1792 : index
    %418 = vector.load %arg8[%c3_276, %c1792_277] : memref<8x2048xf32, #tpu.memory_space<vmem>>, vector<1x256xf32>
    tpu.vector_store %arg8[%c3_276, %c1792_277], %417 {strides = array<i32>} : memref<8x2048xf32, #tpu.memory_space<vmem>>, vector<1x256xf32>,
    %419 = vector.extract_strided_slice %354 {offsets = [0, 1024], sizes = [1, 256], strides = [1, 1]} : vector<8x2048xf32> to vector<1x256xf32>
    %c4 = arith.constant 4 : index
    %c0_278 = arith.constant 0 : index
    %420 = vector.load %arg8[%c4, %c0_278] : memref<8x2048xf32, #tpu.memory_space<vmem>>, vector<1x256xf32>
    tpu.vector_store %arg8[%c4, %c0_278], %419 {strides = array<i32>} : memref<8x2048xf32, #tpu.memory_space<vmem>>, vector<1x256xf32>,
    %421 = vector.extract_strided_slice %354 {offsets = [1, 1024], sizes = [1, 256], strides = [1, 1]} : vector<8x2048xf32> to vector<1x256xf32>
    %c4_279 = arith.constant 4 : index
    %c256_280 = arith.constant 256 : index
    %422 = vector.load %arg8[%c4_279, %c256_280] : memref<8x2048xf32, #tpu.memory_space<vmem>>, vector<1x256xf32>
    tpu.vector_store %arg8[%c4_279, %c256_280], %421 {strides = array<i32>} : memref<8x2048xf32, #tpu.memory_space<vmem>>, vector<1x256xf32>,
    %423 = vector.extract_strided_slice %354 {offsets = [2, 1024], sizes = [1, 256], strides = [1, 1]} : vector<8x2048xf32> to vector<1x256xf32>
    %c4_281 = arith.constant 4 : index
    %c512_282 = arith.constant 512 : index
    %424 = vector.load %arg8[%c4_281, %c512_282] : memref<8x2048xf32, #tpu.memory_space<vmem>>, vector<1x256xf32>
    tpu.vector_store %arg8[%c4_281, %c512_282], %423 {strides = array<i32>} : memref<8x2048xf32, #tpu.memory_space<vmem>>, vector<1x256xf32>,
    %425 = vector.extract_strided_slice %354 {offsets = [3, 1024], sizes = [1, 256], strides = [1, 1]} : vector<8x2048xf32> to vector<1x256xf32>
    %c4_283 = arith.constant 4 : index
    %c768_284 = arith.constant 768 : index
    %426 = vector.load %arg8[%c4_283, %c768_284] : memref<8x2048xf32, #tpu.memory_space<vmem>>, vector<1x256xf32>
    tpu.vector_store %arg8[%c4_283, %c768_284], %425 {strides = array<i32>} : memref<8x2048xf32, #tpu.memory_space<vmem>>, vector<1x256xf32>,
    %427 = vector.extract_strided_slice %354 {offsets = [4, 1024], sizes = [1, 256], strides = [1, 1]} : vector<8x2048xf32> to vector<1x256xf32>
    %c4_285 = arith.constant 4 : index
    %c1024_286 = arith.constant 1024 : index
    %428 = vector.load %arg8[%c4_285, %c1024_286] : memref<8x2048xf32, #tpu.memory_space<vmem>>, vector<1x256xf32>
    tpu.vector_store %arg8[%c4_285, %c1024_286], %427 {strides = array<i32>} : memref<8x2048xf32, #tpu.memory_space<vmem>>, vector<1x256xf32>,
    %429 = vector.extract_strided_slice %354 {offsets = [5, 1024], sizes = [1, 256], strides = [1, 1]} : vector<8x2048xf32> to vector<1x256xf32>
    %c4_287 = arith.constant 4 : index
    %c1280_288 = arith.constant 1280 : index
    %430 = vector.load %arg8[%c4_287, %c1280_288] : memref<8x2048xf32, #tpu.memory_space<vmem>>, vector<1x256xf32>
    tpu.vector_store %arg8[%c4_287, %c1280_288], %429 {strides = array<i32>} : memref<8x2048xf32, #tpu.memory_space<vmem>>, vector<1x256xf32>,
    %431 = vector.extract_strided_slice %354 {offsets = [6, 1024], sizes = [1, 256], strides = [1, 1]} : vector<8x2048xf32> to vector<1x256xf32>
    %c4_289 = arith.constant 4 : index
    %c1536_290 = arith.constant 1536 : index
    %432 = vector.load %arg8[%c4_289, %c1536_290] : memref<8x2048xf32, #tpu.memory_space<vmem>>, vector<1x256xf32>
    tpu.vector_store %arg8[%c4_289, %c1536_290], %431 {strides = array<i32>} : memref<8x2048xf32, #tpu.memory_space<vmem>>, vector<1x256xf32>,
    %433 = vector.extract_strided_slice %354 {offsets = [7, 1024], sizes = [1, 256], strides = [1, 1]} : vector<8x2048xf32> to vector<1x256xf32>
    %c4_291 = arith.constant 4 : index
    %c1792_292 = arith.constant 1792 : index
    %434 = vector.load %arg8[%c4_291, %c1792_292] : memref<8x2048xf32, #tpu.memory_space<vmem>>, vector<1x256xf32>
    tpu.vector_store %arg8[%c4_291, %c1792_292], %433 {strides = array<i32>} : memref<8x2048xf32, #tpu.memory_space<vmem>>, vector<1x256xf32>,
    %435 = vector.extract_strided_slice %354 {offsets = [0, 1280], sizes = [1, 256], strides = [1, 1]} : vector<8x2048xf32> to vector<1x256xf32>
    %c5 = arith.constant 5 : index
    %c0_293 = arith.constant 0 : index
    %436 = vector.load %arg8[%c5, %c0_293] : memref<8x2048xf32, #tpu.memory_space<vmem>>, vector<1x256xf32>
    tpu.vector_store %arg8[%c5, %c0_293], %435 {strides = array<i32>} : memref<8x2048xf32, #tpu.memory_space<vmem>>, vector<1x256xf32>,
    %437 = vector.extract_strided_slice %354 {offsets = [1, 1280], sizes = [1, 256], strides = [1, 1]} : vector<8x2048xf32> to vector<1x256xf32>
    %c5_294 = arith.constant 5 : index
    %c256_295 = arith.constant 256 : index
    %438 = vector.load %arg8[%c5_294, %c256_295] : memref<8x2048xf32, #tpu.memory_space<vmem>>, vector<1x256xf32>
    tpu.vector_store %arg8[%c5_294, %c256_295], %437 {strides = array<i32>} : memref<8x2048xf32, #tpu.memory_space<vmem>>, vector<1x256xf32>,
    %439 = vector.extract_strided_slice %354 {offsets = [2, 1280], sizes = [1, 256], strides = [1, 1]} : vector<8x2048xf32> to vector<1x256xf32>
    %c5_296 = arith.constant 5 : index
    %c512_297 = arith.constant 512 : index
    %440 = vector.load %arg8[%c5_296, %c512_297] : memref<8x2048xf32, #tpu.memory_space<vmem>>, vector<1x256xf32>
    tpu.vector_store %arg8[%c5_296, %c512_297], %439 {strides = array<i32>} : memref<8x2048xf32, #tpu.memory_space<vmem>>, vector<1x256xf32>,
    %441 = vector.extract_strided_slice %354 {offsets = [3, 1280], sizes = [1, 256], strides = [1, 1]} : vector<8x2048xf32> to vector<1x256xf32>
    %c5_298 = arith.constant 5 : index
    %c768_299 = arith.constant 768 : index
    %442 = vector.load %arg8[%c5_298, %c768_299] : memref<8x2048xf32, #tpu.memory_space<vmem>>, vector<1x256xf32>
    tpu.vector_store %arg8[%c5_298, %c768_299], %441 {strides = array<i32>} : memref<8x2048xf32, #tpu.memory_space<vmem>>, vector<1x256xf32>,
    %443 = vector.extract_strided_slice %354 {offsets = [4, 1280], sizes = [1, 256], strides = [1, 1]} : vector<8x2048xf32> to vector<1x256xf32>
    %c5_300 = arith.constant 5 : index
    %c1024_301 = arith.constant 1024 : index
    %444 = vector.load %arg8[%c5_300, %c1024_301] : memref<8x2048xf32, #tpu.memory_space<vmem>>, vector<1x256xf32>
    tpu.vector_store %arg8[%c5_300, %c1024_301], %443 {strides = array<i32>} : memref<8x2048xf32, #tpu.memory_space<vmem>>, vector<1x256xf32>,
    %445 = vector.extract_strided_slice %354 {offsets = [5, 1280], sizes = [1, 256], strides = [1, 1]} : vector<8x2048xf32> to vector<1x256xf32>
    %c5_302 = arith.constant 5 : index
    %c1280_303 = arith.constant 1280 : index
    %446 = vector.load %arg8[%c5_302, %c1280_303] : memref<8x2048xf32, #tpu.memory_space<vmem>>, vector<1x256xf32>
    tpu.vector_store %arg8[%c5_302, %c1280_303], %445 {strides = array<i32>} : memref<8x2048xf32, #tpu.memory_space<vmem>>, vector<1x256xf32>,
    %447 = vector.extract_strided_slice %354 {offsets = [6, 1280], sizes = [1, 256], strides = [1, 1]} : vector<8x2048xf32> to vector<1x256xf32>
    %c5_304 = arith.constant 5 : index
    %c1536_305 = arith.constant 1536 : index
    %448 = vector.load %arg8[%c5_304, %c1536_305] : memref<8x2048xf32, #tpu.memory_space<vmem>>, vector<1x256xf32>
    tpu.vector_store %arg8[%c5_304, %c1536_305], %447 {strides = array<i32>} : memref<8x2048xf32, #tpu.memory_space<vmem>>, vector<1x256xf32>,
    %449 = vector.extract_strided_slice %354 {offsets = [7, 1280], sizes = [1, 256], strides = [1, 1]} : vector<8x2048xf32> to vector<1x256xf32>
    %c5_306 = arith.constant 5 : index
    %c1792_307 = arith.constant 1792 : index
    %450 = vector.load %arg8[%c5_306, %c1792_307] : memref<8x2048xf32, #tpu.memory_space<vmem>>, vector<1x256xf32>
    tpu.vector_store %arg8[%c5_306, %c1792_307], %449 {strides = array<i32>} : memref<8x2048xf32, #tpu.memory_space<vmem>>, vector<1x256xf32>,
    %451 = vector.extract_strided_slice %354 {offsets = [0, 1536], sizes = [1, 256], strides = [1, 1]} : vector<8x2048xf32> to vector<1x256xf32>
    %c6 = arith.constant 6 : index
    %c0_308 = arith.constant 0 : index
    %452 = vector.load %arg8[%c6, %c0_308] : memref<8x2048xf32, #tpu.memory_space<vmem>>, vector<1x256xf32>
    tpu.vector_store %arg8[%c6, %c0_308], %451 {strides = array<i32>} : memref<8x2048xf32, #tpu.memory_space<vmem>>, vector<1x256xf32>,
    %453 = vector.extract_strided_slice %354 {offsets = [1, 1536], sizes = [1, 256], strides = [1, 1]} : vector<8x2048xf32> to vector<1x256xf32>
    %c6_309 = arith.constant 6 : index
    %c256_310 = arith.constant 256 : index
    %454 = vector.load %arg8[%c6_309, %c256_310] : memref<8x2048xf32, #tpu.memory_space<vmem>>, vector<1x256xf32>
    tpu.vector_store %arg8[%c6_309, %c256_310], %453 {strides = array<i32>} : memref<8x2048xf32, #tpu.memory_space<vmem>>, vector<1x256xf32>,
    %455 = vector.extract_strided_slice %354 {offsets = [2, 1536], sizes = [1, 256], strides = [1, 1]} : vector<8x2048xf32> to vector<1x256xf32>
    %c6_311 = arith.constant 6 : index
    %c512_312 = arith.constant 512 : index
    %456 = vector.load %arg8[%c6_311, %c512_312] : memref<8x2048xf32, #tpu.memory_space<vmem>>, vector<1x256xf32>
    tpu.vector_store %arg8[%c6_311, %c512_312], %455 {strides = array<i32>} : memref<8x2048xf32, #tpu.memory_space<vmem>>, vector<1x256xf32>,
    %457 = vector.extract_strided_slice %354 {offsets = [3, 1536], sizes = [1, 256], strides = [1, 1]} : vector<8x2048xf32> to vector<1x256xf32>
    %c6_313 = arith.constant 6 : index
    %c768_314 = arith.constant 768 : index
    %458 = vector.load %arg8[%c6_313, %c768_314] : memref<8x2048xf32, #tpu.memory_space<vmem>>, vector<1x256xf32>
    tpu.vector_store %arg8[%c6_313, %c768_314], %457 {strides = array<i32>} : memref<8x2048xf32, #tpu.memory_space<vmem>>, vector<1x256xf32>,
    %459 = vector.extract_strided_slice %354 {offsets = [4, 1536], sizes = [1, 256], strides = [1, 1]} : vector<8x2048xf32> to vector<1x256xf32>
    %c6_315 = arith.constant 6 : index
    %c1024_316 = arith.constant 1024 : index
    %460 = vector.load %arg8[%c6_315, %c1024_316] : memref<8x2048xf32, #tpu.memory_space<vmem>>, vector<1x256xf32>
    tpu.vector_store %arg8[%c6_315, %c1024_316], %459 {strides = array<i32>} : memref<8x2048xf32, #tpu.memory_space<vmem>>, vector<1x256xf32>,
    %461 = vector.extract_strided_slice %354 {offsets = [5, 1536], sizes = [1, 256], strides = [1, 1]} : vector<8x2048xf32> to vector<1x256xf32>
    %c6_317 = arith.constant 6 : index
    %c1280_318 = arith.constant 1280 : index
    %462 = vector.load %arg8[%c6_317, %c1280_318] : memref<8x2048xf32, #tpu.memory_space<vmem>>, vector<1x256xf32>
    tpu.vector_store %arg8[%c6_317, %c1280_318], %461 {strides = array<i32>} : memref<8x2048xf32, #tpu.memory_space<vmem>>, vector<1x256xf32>,
    %463 = vector.extract_strided_slice %354 {offsets = [6, 1536], sizes = [1, 256], strides = [1, 1]} : vector<8x2048xf32> to vector<1x256xf32>
    %c6_319 = arith.constant 6 : index
    %c1536_320 = arith.constant 1536 : index
    %464 = vector.load %arg8[%c6_319, %c1536_320] : memref<8x2048xf32, #tpu.memory_space<vmem>>, vector<1x256xf32>
    tpu.vector_store %arg8[%c6_319, %c1536_320], %463 {strides = array<i32>} : memref<8x2048xf32, #tpu.memory_space<vmem>>, vector<1x256xf32>,
    %465 = vector.extract_strided_slice %354 {offsets = [7, 1536], sizes = [1, 256], strides = [1, 1]} : vector<8x2048xf32> to vector<1x256xf32>
    %c6_321 = arith.constant 6 : index
    %c1792_322 = arith.constant 1792 : index
    %466 = vector.load %arg8[%c6_321, %c1792_322] : memref<8x2048xf32, #tpu.memory_space<vmem>>, vector<1x256xf32>
    tpu.vector_store %arg8[%c6_321, %c1792_322], %465 {strides = array<i32>} : memref<8x2048xf32, #tpu.memory_space<vmem>>, vector<1x256xf32>,
    %467 = vector.extract_strided_slice %354 {offsets = [0, 1792], sizes = [1, 256], strides = [1, 1]} : vector<8x2048xf32> to vector<1x256xf32>
    %c7 = arith.constant 7 : index
    %c0_323 = arith.constant 0 : index
    %468 = vector.load %arg8[%c7, %c0_323] : memref<8x2048xf32, #tpu.memory_space<vmem>>, vector<1x256xf32>
    tpu.vector_store %arg8[%c7, %c0_323], %467 {strides = array<i32>} : memref<8x2048xf32, #tpu.memory_space<vmem>>, vector<1x256xf32>,
    %469 = vector.extract_strided_slice %354 {offsets = [1, 1792], sizes = [1, 256], strides = [1, 1]} : vector<8x2048xf32> to vector<1x256xf32>
    %c7_324 = arith.constant 7 : index
    %c256_325 = arith.constant 256 : index
    %470 = vector.load %arg8[%c7_324, %c256_325] : memref<8x2048xf32, #tpu.memory_space<vmem>>, vector<1x256xf32>
    tpu.vector_store %arg8[%c7_324, %c256_325], %469 {strides = array<i32>} : memref<8x2048xf32, #tpu.memory_space<vmem>>, vector<1x256xf32>,
    %471 = vector.extract_strided_slice %354 {offsets = [2, 1792], sizes = [1, 256], strides = [1, 1]} : vector<8x2048xf32> to vector<1x256xf32>
    %c7_326 = arith.constant 7 : index
    %c512_327 = arith.constant 512 : index
    %472 = vector.load %arg8[%c7_326, %c512_327] : memref<8x2048xf32, #tpu.memory_space<vmem>>, vector<1x256xf32>
    tpu.vector_store %arg8[%c7_326, %c512_327], %471 {strides = array<i32>} : memref<8x2048xf32, #tpu.memory_space<vmem>>, vector<1x256xf32>,
    %473 = vector.extract_strided_slice %354 {offsets = [3, 1792], sizes = [1, 256], strides = [1, 1]} : vector<8x2048xf32> to vector<1x256xf32>
    %c7_328 = arith.constant 7 : index
    %c768_329 = arith.constant 768 : index
    %474 = vector.load %arg8[%c7_328, %c768_329] : memref<8x2048xf32, #tpu.memory_space<vmem>>, vector<1x256xf32>
    tpu.vector_store %arg8[%c7_328, %c768_329], %473 {strides = array<i32>} : memref<8x2048xf32, #tpu.memory_space<vmem>>, vector<1x256xf32>,
    %475 = vector.extract_strided_slice %354 {offsets = [4, 1792], sizes = [1, 256], strides = [1, 1]} : vector<8x2048xf32> to vector<1x256xf32>
    %c7_330 = arith.constant 7 : index
    %c1024_331 = arith.constant 1024 : index
    %476 = vector.load %arg8[%c7_330, %c1024_331] : memref<8x2048xf32, #tpu.memory_space<vmem>>, vector<1x256xf32>
    tpu.vector_store %arg8[%c7_330, %c1024_331], %475 {strides = array<i32>} : memref<8x2048xf32, #tpu.memory_space<vmem>>, vector<1x256xf32>,
    %477 = vector.extract_strided_slice %354 {offsets = [5, 1792], sizes = [1, 256], strides = [1, 1]} : vector<8x2048xf32> to vector<1x256xf32>
    %c7_332 = arith.constant 7 : index
    %c1280_333 = arith.constant 1280 : index
    %478 = vector.load %arg8[%c7_332, %c1280_333] : memref<8x2048xf32, #tpu.memory_space<vmem>>, vector<1x256xf32>
    tpu.vector_store %arg8[%c7_332, %c1280_333], %477 {strides = array<i32>} : memref<8x2048xf32, #tpu.memory_space<vmem>>, vector<1x256xf32>,
    %479 = vector.extract_strided_slice %354 {offsets = [6, 1792], sizes = [1, 256], strides = [1, 1]} : vector<8x2048xf32> to vector<1x256xf32>
    %c7_334 = arith.constant 7 : index
    %c1536_335 = arith.constant 1536 : index
    %480 = vector.load %arg8[%c7_334, %c1536_335] : memref<8x2048xf32, #tpu.memory_space<vmem>>, vector<1x256xf32>
    tpu.vector_store %arg8[%c7_334, %c1536_335], %479 {strides = array<i32>} : memref<8x2048xf32, #tpu.memory_space<vmem>>, vector<1x256xf32>,
    %481 = vector.extract_strided_slice %354 {offsets = [7, 1792], sizes = [1, 256], strides = [1, 1]} : vector<8x2048xf32> to vector<1x256xf32>
    %c7_336 = arith.constant 7 : index
    %c1792_337 = arith.constant 1792 : index
    %482 = vector.load %arg8[%c7_336, %c1792_337] : memref<8x2048xf32, #tpu.memory_space<vmem>>, vector<1x256xf32>
    tpu.vector_store %arg8[%c7_336, %c1792_337], %481 {strides = array<i32>} : memref<8x2048xf32, #tpu.memory_space<vmem>>, vector<1x256xf32>,
    %c0_338 = arith.constant 0 : index
    %c0_339 = arith.constant 0 : index
    %483 = vector.load %arg8[%c0_338, %c0_339] : memref<8x2048xf32, #tpu.memory_space<vmem>>, vector<8x2048xf32>
    %c0_340 = arith.constant 0 : index
    %c0_341 = arith.constant 0 : index
    %484 = vector.load %arg4[%c0_340, %c0_341] : memref<2048x128xf32, #tpu.memory_space<vmem>>, vector<2048x128xf32>
    %cst_342 = arith.constant dense<0.000000e+00> : vector<8x128xf32>
    %485 = tpu.matmul %483, %484, %cst_342 {dimension_numbers = #tpu.dot_dimension_numbers<[1], [0], [0], [1], [0, 0, 1, 1], [], []>} : vector<8x2048xf32>, vector<2048x128xf32>, vector<8x128xf32> -> vector<8x128xf32>
    %c0_343 = arith.constant 0 : index
    %c0_344 = arith.constant 0 : index
    %486 = vector.load %arg5[%c0_343, %c0_344] : memref<1x128xf32, #tpu.memory_space<vmem>>, vector<1x128xf32>
    %487 = vector.broadcast %486 : vector<1x128xf32> to vector<8x128xf32>
    %488 = arith.addf %485, %487 : vector<8x128xf32>
    %c0_345 = arith.constant 0 : index
    %c0_346 = arith.constant 0 : index
    %489 = vector.load %arg6[%c0_345, %c0_346] : memref<8x128xf32, #tpu.memory_space<vmem>>, vector<8x128xf32>
    tpu.vector_store %arg6[%c0_345, %c0_346], %488 {strides = array<i32>} : memref<8x128xf32, #tpu.memory_space<vmem>>, vector<8x128xf32>,
    return
  }
  func.func @transform_0(%arg0: i32) -> (i32, i32) {
    %c0_i32 = arith.constant 0 : i32
    %c0_i32_0 = arith.constant 0 : i32
    return %arg0, %c0_i32 : i32, i32
  }
  func.func @transform_1(%arg0: i32) -> (i32, i32) {
    %c0_i32 = arith.constant 0 : i32
    %c0_i32_0 = arith.constant 0 : i32
    %c0_i32_1 = arith.constant 0 : i32
    return %c0_i32, %c0_i32_0 : i32, i32
  }
  func.func @transform_2(%arg0: i32) -> (i32, i32) {
    %c0_i32 = arith.constant 0 : i32
    %c0_i32_0 = arith.constant 0 : i32
    %c0_i32_1 = arith.constant 0 : i32
    return %c0_i32, %c0_i32_0 : i32, i32
  }
  func.func @transform_3(%arg0: i32) -> (i32, i32) {
    %c0_i32 = arith.constant 0 : i32
    %c0_i32_0 = arith.constant 0 : i32
    %c0_i32_1 = arith.constant 0 : i32
    return %c0_i32, %c0_i32_0 : i32, i32
  }
  func.func @transform_4(%arg0: i32) -> (i32, i32) {
    %c0_i32 = arith.constant 0 : i32
    %c0_i32_0 = arith.constant 0 : i32
    %c0_i32_1 = arith.constant 0 : i32
    return %c0_i32, %c0_i32_0 : i32, i32
  }
  func.func @transform_5(%arg0: i32) -> (i32, i32) {
    %c0_i32 = arith.constant 0 : i32
    %c0_i32_0 = arith.constant 0 : i32
    return %arg0, %c0_i32 : i32, i32
  }
}

</mosaic_0001>

<llo_original>
// kernel: wrapper_net_forward.1
$region0: #{wrapper_net_forward.1}
  #allocation0 [shape = 'u32[]', space=smem, size = 0x4, offset = 0x4, fixed_abs, tag = 'smem constant byte address 0x4 - core index']
  #allocation1 [shape = 'u32[72,128]{1,0:T(1,128)}', space=vmem, size = 0x9000, scoped, tag = 'internal scratch']
  #allocation2 [shape = 'f32[72,2048]{1,0:T(8,128)}', space=vmem, size = 0x90000, scoped, tag = 'scratch operand']
  #allocation3 [shape = 'f32[8,2048]{1,0:T(8,128)}', space=vmem, size = 0x10000, scoped, tag = 'scratch operand']
  %s0 = inlined_call_operand.vmem [shape: f32[64,256], index: 0, kind: input, shape index: {}]
  %s1 = inlined_call_operand.vmem [shape: f32[8,72], index: 1, kind: input, shape index: {}]
  %s2 = inlined_call_operand.vmem [shape: f32[8,1], index: 2, kind: input, shape index: {}]
  %s3 = inlined_call_operand.vmem [shape: f32[2048,128], index: 3, kind: input, shape index: {}]
  %s4 = inlined_call_operand.vmem [shape: f32[1,128], index: 4, kind: input, shape index: {}]
  %s5 = inlined_call_operand.vmem [shape: f32[8,128], index: 5, kind: output, shape index: {}]
  %s6 = sld [smem:[#allocation0]]
  $region30: #{wrapper_net_forward.1} parent=0
    _
  %s8 = ssub.s32 1, %s6
  %s9 = scalar_select 0, %s8, %s6
  // Predicated region
  $region2: #{wrapper_net_forward.1} parent=0 // pred_check
    _
  $region3: #{wrapper_net_forward.1} parent=0 // pred_check_branch
    %11 = sbr.rel (0) target = $region5
  $region4: #{wrapper_net_forward.1} parent=0 // pred_region
    _
  $region5: #{wrapper_net_forward.1} parent=0 // pred_fallthru
    _
  // Predicated region
  $region6: #{wrapper_net_forward.1} parent=0 // pred_check
    _
  $region7: #{wrapper_net_forward.1} parent=0 // pred_check_branch
    %13 = sbr.rel (0) target = $region9
  $region8: #{wrapper_net_forward.1} parent=0 // pred_region
    _
  $region9: #{wrapper_net_forward.1} parent=0 // pred_fallthru
    _
  // Predicated region
  $region10: #{wrapper_net_forward.1} parent=0 // pred_check
    _
  $region11: #{wrapper_net_forward.1} parent=0 // pred_check_branch
    %15 = sbr.rel (0) target = $region13
  $region12: #{wrapper_net_forward.1} parent=0 // pred_region
    _
  $region13: #{wrapper_net_forward.1} parent=0 // pred_fallthru
    _
  // Predicated region
  $region14: #{wrapper_net_forward.1} parent=0 // pred_check
    _
  $region15: #{wrapper_net_forward.1} parent=0 // pred_check_branch
    %17 = sbr.rel (0) target = $region17
  $region16: #{wrapper_net_forward.1} parent=0 // pred_region
    _
  $region17: #{wrapper_net_forward.1} parent=0 // pred_fallthru
    _
  // Predicated region
  $region18: #{wrapper_net_forward.1} parent=0 // pred_check
    _
  $region19: #{wrapper_net_forward.1} parent=0 // pred_check_branch
    %19 = sbr.rel (0) target = $region21
  $region20: #{wrapper_net_forward.1} parent=0 // pred_region
    _
  $region21: #{wrapper_net_forward.1} parent=0 // pred_fallthru
    _
  %v20 = vld [vmem:[%s0] sm:$0xff]
  %v21 = vld [vmem:[%s0 + $0x8] sm:$0xff]
  %v22 = vld [vmem:[%s0 + $0x10] sm:$0xff]
  %v23 = vld [vmem:[%s0 + $0x18] sm:$0xff]
  %v24 = vld [vmem:[%s0 + $0x20] sm:$0xff]
  %v25 = vld [vmem:[%s0 + $0x28] sm:$0xff]
  %v26 = vld [vmem:[%s0 + $0x30] sm:$0xff]
  %v27 = vld [vmem:[%s0 + $0x38] sm:$0xff]
  %v28 = vld [vmem:[%s0 + $0x40] sm:$0xff]
  %v29 = vld [vmem:[%s0 + $0x48] sm:$0xff]
  %v30 = vld [vmem:[%s0 + $0x50] sm:$0xff]
  %v31 = vld [vmem:[%s0 + $0x58] sm:$0xff]
  %v32 = vld [vmem:[%s0 + $0x60] sm:$0xff]
  %v33 = vld [vmem:[%s0 + $0x68] sm:$0xff]
  %v34 = vld [vmem:[%s0 + $0x70] sm:$0xff]
  %v35 = vld [vmem:[%s0 + $0x78] sm:$0xff]
  %v36 = vlaneseq
  %v37 = vand.u32 %v36, 127
  %v38 = vadd.s32 %v37, 128
  %v39 = vshra.s32 %v37, 4
  %v40 = vshra.s32 %v38, 4
  %v41 = vand.u32 %v37, 15
  %v42 = vand.u32 %v38, 15
  %43 = vrot.lane.b32.xlu0 %v20, 17
  %v44 = vpop.permute.xlu0 %43
  %45 = vrot.lane.b32.xlu0 %v22, 17
  %v46 = vpop.permute.xlu0 %45
  %47 = vrot.lane.b32.xlu0 %v24, 17
  %v48 = vpop.permute.xlu0 %47
  %49 = vrot.lane.b32.xlu0 %v26, 17
  %v50 = vpop.permute.xlu0 %49
  %51 = vrot.lane.b32.xlu0 %v28, 17
  %v52 = vpop.permute.xlu0 %51
  %53 = vrot.lane.b32.xlu0 %v30, 17
  %v54 = vpop.permute.xlu0 %53
  %55 = vrot.lane.b32.xlu0 %v32, 17
  %v56 = vpop.permute.xlu0 %55
  %57 = vrot.lane.b32.xlu0 %v34, 17
  %v58 = vpop.permute.xlu0 %57
  %59 = vrot.lane.b32.xlu0 %v21, 17
  %v60 = vpop.permute.xlu0 %59
  %61 = vrot.lane.b32.xlu0 %v23, 17
  %v62 = vpop.permute.xlu0 %61
  %63 = vrot.lane.b32.xlu0 %v25, 17
  %v64 = vpop.permute.xlu0 %63
  %65 = vrot.lane.b32.xlu0 %v27, 17
  %v66 = vpop.permute.xlu0 %65
  %67 = vrot.lane.b32.xlu0 %v29, 17
  %v68 = vpop.permute.xlu0 %67
  %69 = vrot.lane.b32.xlu0 %v31, 17
  %v70 = vpop.permute.xlu0 %69
  %71 = vrot.lane.b32.xlu0 %v33, 17
  %v72 = vpop.permute.xlu0 %71
  %73 = vrot.lane.b32.xlu0 %v35, 17
  %v74 = vpop.permute.xlu0 %73
  %vm75 = vcmp.lt.s32.totalorder %v37, 17
  %v76 = vsel %vm75, %v44, %v60
  %v77 = vsel %vm75, %v46, %v62
  %v78 = vsel %vm75, %v48, %v64
  %v79 = vsel %vm75, %v50, %v66
  %v80 = vsel %vm75, %v52, %v68
  %v81 = vsel %vm75, %v54, %v70
  %v82 = vsel %vm75, %v56, %v72
  %v83 = vsel %vm75, %v58, %v74
  %v84 = vsel %vm75, %v60, %v44
  %v85 = vsel %vm75, %v62, %v46
  %v86 = vsel %vm75, %v64, %v48
  %v87 = vsel %vm75, %v66, %v50
  %v88 = vsel %vm75, %v68, %v52
  %v89 = vsel %vm75, %v70, %v54
  %v90 = vsel %vm75, %v72, %v56
  %v91 = vsel %vm75, %v74, %v58
  %v92 = vadd.s32 %v39, 4294967295
  %v93 = vadd.s32 %v40, 4294967295
  %vm94 = vcmp.ge.s32.totalorder %v92, 0
  %vm95 = vcmp.ge.s32.totalorder %v93, 0
  %vm96 = vcmp.lt.s32.totalorder %v92, 16
  %vm97 = vcmp.lt.s32.totalorder %v93, 16
  %vm98 = vmand %vm94, %vm96
  %vm99 = vmand %vm95, %vm97
  %v100 = vadd.s32 %v41, 4294967295
  %v101 = vadd.s32 %v42, 4294967295
  %vm102 = vcmp.ge.s32.totalorder %v100, 0
  %vm103 = vcmp.ge.s32.totalorder %v101, 0
  %vm104 = vmand %vm98, %vm102
  %vm105 = vmand %vm99, %vm103
  %vm106 = vcmp.lt.s32.totalorder %v100, 16
  %vm107 = vcmp.lt.s32.totalorder %v101, 16
  %vm108 = vmand %vm104, %vm106
  %vm109 = vmand %vm105, %vm107
  %v110 = vsel %vm108, %v84, 0.0
  %v111 = vsel %vm109, %v76, 0.0
  %v112 = vsel %vm108, %v85, 0.0
  %v113 = vsel %vm109, %v77, 0.0
  %v114 = vsel %vm108, %v86, 0.0
  %v115 = vsel %vm109, %v78, 0.0
  %v116 = vsel %vm108, %v87, 0.0
  %v117 = vsel %vm109, %v79, 0.0
  %v118 = vsel %vm108, %v88, 0.0
  %v119 = vsel %vm109, %v80, 0.0
  %v120 = vsel %vm108, %v89, 0.0
  %v121 = vsel %vm109, %v81, 0.0
  %v122 = vsel %vm108, %v90, 0.0
  %v123 = vsel %vm109, %v82, 0.0
  %v124 = vsel %vm108, %v91, 0.0
  %v125 = vsel %vm109, %v83, 0.0
  %126 = vst [vmem:[#allocation2] sm:$0xff] %v110
  %127 = vst [vmem:[#allocation2 + $0x8] sm:$0xff] %v111
  %128 = vst [vmem:[#allocation2 + $0x10] sm:$0xff] %v112
  %129 = vst [vmem:[#allocation2 + $0x18] sm:$0xff] %v113
  %130 = vst [vmem:[#allocation2 + $0x20] sm:$0xff] %v114
  %131 = vst [vmem:[#allocation2 + $0x28] sm:$0xff] %v115
  %132 = vst [vmem:[#allocation2 + $0x30] sm:$0xff] %v116
  %133 = vst [vmem:[#allocation2 + $0x38] sm:$0xff] %v117
  %134 = vst [vmem:[#allocation2 + $0x40] sm:$0xff] %v118
  %135 = vst [vmem:[#allocation2 + $0x48] sm:$0xff] %v119
  %136 = vst [vmem:[#allocation2 + $0x50] sm:$0xff] %v120
  %137 = vst [vmem:[#allocation2 + $0x58] sm:$0xff] %v121
  %138 = vst [vmem:[#allocation2 + $0x60] sm:$0xff] %v122
  %139 = vst [vmem:[#allocation2 + $0x68] sm:$0xff] %v123
  %140 = vst [vmem:[#allocation2 + $0x70] sm:$0xff] %v124
  %141 = vst [vmem:[#allocation2 + $0x78] sm:$0xff] %v125
  %142 = vrot.lane.b32.xlu0 %v20, 16
  %v143 = vpop.permute.xlu0 %142
  %144 = vrot.lane.b32.xlu0 %v22, 16
  %v145 = vpop.permute.xlu0 %144
  %146 = vrot.lane.b32.xlu0 %v24, 16
  %v147 = vpop.permute.xlu0 %146
  %148 = vrot.lane.b32.xlu0 %v26, 16
  %v149 = vpop.permute.xlu0 %148
  %150 = vrot.lane.b32.xlu0 %v28, 16
  %v151 = vpop.permute.xlu0 %150
  %152 = vrot.lane.b32.xlu0 %v30, 16
  %v153 = vpop.permute.xlu0 %152
  %154 = vrot.lane.b32.xlu0 %v32, 16
  %v155 = vpop.permute.xlu0 %154
  %156 = vrot.lane.b32.xlu0 %v34, 16
  %v157 = vpop.permute.xlu0 %156
  %158 = vrot.lane.b32.xlu0 %v21, 16
  %v159 = vpop.permute.xlu0 %158
  %160 = vrot.lane.b32.xlu0 %v23, 16
  %v161 = vpop.permute.xlu0 %160
  %162 = vrot.lane.b32.xlu0 %v25, 16
  %v163 = vpop.permute.xlu0 %162
  %164 = vrot.lane.b32.xlu0 %v27, 16
  %v165 = vpop.permute.xlu0 %164
  %166 = vrot.lane.b32.xlu0 %v29, 16
  %v167 = vpop.permute.xlu0 %166
  %168 = vrot.lane.b32.xlu0 %v31, 16
  %v169 = vpop.permute.xlu0 %168
  %170 = vrot.lane.b32.xlu0 %v33, 16
  %v171 = vpop.permute.xlu0 %170
  %172 = vrot.lane.b32.xlu0 %v35, 16
  %v173 = vpop.permute.xlu0 %172
  %vm174 = vcmp.lt.s32.totalorder %v37, 16
  %v175 = vsel %vm174, %v143, %v159
  %v176 = vsel %vm174, %v145, %v161
  %v177 = vsel %vm174, %v147, %v163
  %v178 = vsel %vm174, %v149, %v165
  %v179 = vsel %vm174, %v151, %v167
  %v180 = vsel %vm174, %v153, %v169
  %v181 = vsel %vm174, %v155, %v171
  %v182 = vsel %vm174, %v157, %v173
  %v183 = vsel %vm174, %v159, %v143
  %v184 = vsel %vm174, %v161, %v145
  %v185 = vsel %vm174, %v163, %v147
  %v186 = vsel %vm174, %v165, %v149
  %v187 = vsel %vm174, %v167, %v151
  %v188 = vsel %vm174, %v169, %v153
  %v189 = vsel %vm174, %v171, %v155
  %v190 = vsel %vm174, %v173, %v157
  %vm191 = vcmp.ge.s32.totalorder %v41, 0
  %vm192 = vcmp.ge.s32.totalorder %v42, 0
  %vm193 = vmand %vm98, %vm191
  %vm194 = vmand %vm99, %vm192
  %vm195 = vcmp.lt.s32.totalorder %v41, 16
  %vm196 = vcmp.lt.s32.totalorder %v42, 16
  %vm197 = vmand %vm193, %vm195
  %vm198 = vmand %vm194, %vm196
  %v199 = vsel %vm197, %v183, 0.0
  %v200 = vsel %vm198, %v175, 0.0
  %v201 = vsel %vm197, %v184, 0.0
  %v202 = vsel %vm198, %v176, 0.0
  %v203 = vsel %vm197, %v185, 0.0
  %v204 = vsel %vm198, %v177, 0.0
  %v205 = vsel %vm197, %v186, 0.0
  %v206 = vsel %vm198, %v178, 0.0
  %v207 = vsel %vm197, %v187, 0.0
  %v208 = vsel %vm198, %v179, 0.0
  %v209 = vsel %vm197, %v188, 0.0
  %v210 = vsel %vm198, %v180, 0.0
  %v211 = vsel %vm197, %v189, 0.0
  %v212 = vsel %vm198, %v181, 0.0
  %v213 = vsel %vm197, %v190, 0.0
  %v214 = vsel %vm198, %v182, 0.0
  %215 = vst [vmem:[#allocation2 + $0x80] sm:$0xff] %v199
  %216 = vst [vmem:[#allocation2 + $0x88] sm:$0xff] %v200
  %217 = vst [vmem:[#allocation2 + $0x90] sm:$0xff] %v201
  %218 = vst [vmem:[#allocation2 + $0x98] sm:$0xff] %v202
  %219 = vst [vmem:[#allocation2 + $0xa0] sm:$0xff] %v203
  %220 = vst [vmem:[#allocation2 + $0xa8] sm:$0xff] %v204
  %221 = vst [vmem:[#allocation2 + $0xb0] sm:$0xff] %v205
  %222 = vst [vmem:[#allocation2 + $0xb8] sm:$0xff] %v206
  %223 = vst [vmem:[#allocation2 + $0xc0] sm:$0xff] %v207
  %224 = vst [vmem:[#allocation2 + $0xc8] sm:$0xff] %v208
  %225 = vst [vmem:[#allocation2 + $0xd0] sm:$0xff] %v209
  %226 = vst [vmem:[#allocation2 + $0xd8] sm:$0xff] %v210
  %227 = vst [vmem:[#allocation2 + $0xe0] sm:$0xff] %v211
  %228 = vst [vmem:[#allocation2 + $0xe8] sm:$0xff] %v212
  %229 = vst [vmem:[#allocation2 + $0xf0] sm:$0xff] %v213
  %230 = vst [vmem:[#allocation2 + $0xf8] sm:$0xff] %v214
  %231 = vrot.lane.b32.xlu0 %v20, 15
  %v232 = vpop.permute.xlu0 %231
  %233 = vrot.lane.b32.xlu0 %v22, 15
  %v234 = vpop.permute.xlu0 %233
  %235 = vrot.lane.b32.xlu0 %v24, 15
  %v236 = vpop.permute.xlu0 %235
  %237 = vrot.lane.b32.xlu0 %v26, 15
  %v238 = vpop.permute.xlu0 %237
  %239 = vrot.lane.b32.xlu0 %v28, 15
  %v240 = vpop.permute.xlu0 %239
  %241 = vrot.lane.b32.xlu0 %v30, 15
  %v242 = vpop.permute.xlu0 %241
  %243 = vrot.lane.b32.xlu0 %v32, 15
  %v244 = vpop.permute.xlu0 %243
  %245 = vrot.lane.b32.xlu0 %v34, 15
  %v246 = vpop.permute.xlu0 %245
  %247 = vrot.lane.b32.xlu0 %v21, 15
  %v248 = vpop.permute.xlu0 %247
  %249 = vrot.lane.b32.xlu0 %v23, 15
  %v250 = vpop.permute.xlu0 %249
  %251 = vrot.lane.b32.xlu0 %v25, 15
  %v252 = vpop.permute.xlu0 %251
  %253 = vrot.lane.b32.xlu0 %v27, 15
  %v254 = vpop.permute.xlu0 %253
  %255 = vrot.lane.b32.xlu0 %v29, 15
  %v256 = vpop.permute.xlu0 %255
  %257 = vrot.lane.b32.xlu0 %v31, 15
  %v258 = vpop.permute.xlu0 %257
  %259 = vrot.lane.b32.xlu0 %v33, 15
  %v260 = vpop.permute.xlu0 %259
  %261 = vrot.lane.b32.xlu0 %v35, 15
  %v262 = vpop.permute.xlu0 %261
  %vm263 = vcmp.lt.s32.totalorder %v37, 15
  %v264 = vsel %vm263, %v232, %v248
  %v265 = vsel %vm263, %v234, %v250
  %v266 = vsel %vm263, %v236, %v252
  %v267 = vsel %vm263, %v238, %v254
  %v268 = vsel %vm263, %v240, %v256
  %v269 = vsel %vm263, %v242, %v258
  %v270 = vsel %vm263, %v244, %v260
  %v271 = vsel %vm263, %v246, %v262
  %v272 = vsel %vm263, %v248, %v232
  %v273 = vsel %vm263, %v250, %v234
  %v274 = vsel %vm263, %v252, %v236
  %v275 = vsel %vm263, %v254, %v238
  %v276 = vsel %vm263, %v256, %v240
  %v277 = vsel %vm263, %v258, %v242
  %v278 = vsel %vm263, %v260, %v244
  %v279 = vsel %vm263, %v262, %v246
  %v280 = vadd.s32 %v41, 1
  %v281 = vadd.s32 %v42, 1
  %vm282 = vcmp.ge.s32.totalorder %v280, 0
  %vm283 = vcmp.ge.s32.totalorder %v281, 0
  %vm284 = vmand %vm98, %vm282
  %vm285 = vmand %vm99, %vm283
  %vm286 = vcmp.lt.s32.totalorder %v280, 16
  %vm287 = vcmp.lt.s32.totalorder %v281, 16
  %vm288 = vmand %vm284, %vm286
  %vm289 = vmand %vm285, %vm287
  %v290 = vsel %vm288, %v272, 0.0
  %v291 = vsel %vm289, %v264, 0.0
  %v292 = vsel %vm288, %v273, 0.0
  %v293 = vsel %vm289, %v265, 0.0
  %v294 = vsel %vm288, %v274, 0.0
  %v295 = vsel %vm289, %v266, 0.0
  %v296 = vsel %vm288, %v275, 0.0
  %v297 = vsel %vm289, %v267, 0.0
  %v298 = vsel %vm288, %v276, 0.0
  %v299 = vsel %vm289, %v268, 0.0
  %v300 = vsel %vm288, %v277, 0.0
  %v301 = vsel %vm289, %v269, 0.0
  %v302 = vsel %vm288, %v278, 0.0
  %v303 = vsel %vm289, %v270, 0.0
  %v304 = vsel %vm288, %v279, 0.0
  %v305 = vsel %vm289, %v271, 0.0
  %306 = vst [vmem:[#allocation2 + $0x100] sm:$0xff] %v290
  %307 = vst [vmem:[#allocation2 + $0x108] sm:$0xff] %v291
  %308 = vst [vmem:[#allocation2 + $0x110] sm:$0xff] %v292
  %309 = vst [vmem:[#allocation2 + $0x118] sm:$0xff] %v293
  %310 = vst [vmem:[#allocation2 + $0x120] sm:$0xff] %v294
  %311 = vst [vmem:[#allocation2 + $0x128] sm:$0xff] %v295
  %312 = vst [vmem:[#allocation2 + $0x130] sm:$0xff] %v296
  %313 = vst [vmem:[#allocation2 + $0x138] sm:$0xff] %v297
  %314 = vst [vmem:[#allocation2 + $0x140] sm:$0xff] %v298
  %315 = vst [vmem:[#allocation2 + $0x148] sm:$0xff] %v299
  %316 = vst [vmem:[#allocation2 + $0x150] sm:$0xff] %v300
  %317 = vst [vmem:[#allocation2 + $0x158] sm:$0xff] %v301
  %318 = vst [vmem:[#allocation2 + $0x160] sm:$0xff] %v302
  %319 = vst [vmem:[#allocation2 + $0x168] sm:$0xff] %v303
  %320 = vst [vmem:[#allocation2 + $0x170] sm:$0xff] %v304
  %321 = vst [vmem:[#allocation2 + $0x178] sm:$0xff] %v305
  %322 = vrot.lane.b32.xlu0 %v20, 1
  %v323 = vpop.permute.xlu0 %322
  %324 = vrot.lane.b32.xlu0 %v22, 1
  %v325 = vpop.permute.xlu0 %324
  %326 = vrot.lane.b32.xlu0 %v24, 1
  %v327 = vpop.permute.xlu0 %326
  %328 = vrot.lane.b32.xlu0 %v26, 1
  %v329 = vpop.permute.xlu0 %328
  %330 = vrot.lane.b32.xlu0 %v28, 1
  %v331 = vpop.permute.xlu0 %330
  %332 = vrot.lane.b32.xlu0 %v30, 1
  %v333 = vpop.permute.xlu0 %332
  %334 = vrot.lane.b32.xlu0 %v32, 1
  %v335 = vpop.permute.xlu0 %334
  %336 = vrot.lane.b32.xlu0 %v34, 1
  %v337 = vpop.permute.xlu0 %336
  %338 = vrot.lane.b32.xlu0 %v21, 1
  %v339 = vpop.permute.xlu0 %338
  %340 = vrot.lane.b32.xlu0 %v23, 1
  %v341 = vpop.permute.xlu0 %340
  %342 = vrot.lane.b32.xlu0 %v25, 1
  %v343 = vpop.permute.xlu0 %342
  %344 = vrot.lane.b32.xlu0 %v27, 1
  %v345 = vpop.permute.xlu0 %344
  %346 = vrot.lane.b32.xlu0 %v29, 1
  %v347 = vpop.permute.xlu0 %346
  %348 = vrot.lane.b32.xlu0 %v31, 1
  %v349 = vpop.permute.xlu0 %348
  %350 = vrot.lane.b32.xlu0 %v33, 1
  %v351 = vpop.permute.xlu0 %350
  %352 = vrot.lane.b32.xlu0 %v35, 1
  %v353 = vpop.permute.xlu0 %352
  %vm354 = vcmp.lt.s32.totalorder %v37, 1
  %v355 = vsel %vm354, %v323, %v339
  %v356 = vsel %vm354, %v325, %v341
  %v357 = vsel %vm354, %v327, %v343
  %v358 = vsel %vm354, %v329, %v345
  %v359 = vsel %vm354, %v331, %v347
  %v360 = vsel %vm354, %v333, %v349
  %v361 = vsel %vm354, %v335, %v351
  %v362 = vsel %vm354, %v337, %v353
  %v363 = vsel %vm354, %v339, %v323
  %v364 = vsel %vm354, %v341, %v325
  %v365 = vsel %vm354, %v343, %v327
  %v366 = vsel %vm354, %v345, %v329
  %v367 = vsel %vm354, %v347, %v331
  %v368 = vsel %vm354, %v349, %v333
  %v369 = vsel %vm354, %v351, %v335
  %v370 = vsel %vm354, %v353, %v337
  %vm371 = vcmp.ge.s32.totalorder %v39, 0
  %vm372 = vcmp.ge.s32.totalorder %v40, 0
  %vm373 = vcmp.lt.s32.totalorder %v39, 16
  %vm374 = vcmp.lt.s32.totalorder %v40, 16
  %vm375 = vmand %vm371, %vm373
  %vm376 = vmand %vm372, %vm374
  %vm377 = vmand %vm375, %vm102
  %vm378 = vmand %vm376, %vm103
  %vm379 = vmand %vm377, %vm106
  %vm380 = vmand %vm378, %vm107
  %v381 = vsel %vm379, %v363, 0.0
  %v382 = vsel %vm380, %v355, 0.0
  %v383 = vsel %vm379, %v364, 0.0
  %v384 = vsel %vm380, %v356, 0.0
  %v385 = vsel %vm379, %v365, 0.0
  %v386 = vsel %vm380, %v357, 0.0
  %v387 = vsel %vm379, %v366, 0.0
  %v388 = vsel %vm380, %v358, 0.0
  %v389 = vsel %vm379, %v367, 0.0
  %v390 = vsel %vm380, %v359, 0.0
  %v391 = vsel %vm379, %v368, 0.0
  %v392 = vsel %vm380, %v360, 0.0
  %v393 = vsel %vm379, %v369, 0.0
  %v394 = vsel %vm380, %v361, 0.0
  %v395 = vsel %vm379, %v370, 0.0
  %v396 = vsel %vm380, %v362, 0.0
  %397 = vst [vmem:[#allocation2 + $0x180] sm:$0xff] %v381
  %398 = vst [vmem:[#allocation2 + $0x188] sm:$0xff] %v382
  %399 = vst [vmem:[#allocation2 + $0x190] sm:$0xff] %v383
  %400 = vst [vmem:[#allocation2 + $0x198] sm:$0xff] %v384
  %401 = vst [vmem:[#allocation2 + $0x1a0] sm:$0xff] %v385
  %402 = vst [vmem:[#allocation2 + $0x1a8] sm:$0xff] %v386
  %403 = vst [vmem:[#allocation2 + $0x1b0] sm:$0xff] %v387
  %404 = vst [vmem:[#allocation2 + $0x1b8] sm:$0xff] %v388
  %405 = vst [vmem:[#allocation2 + $0x1c0] sm:$0xff] %v389
  %406 = vst [vmem:[#allocation2 + $0x1c8] sm:$0xff] %v390
  %407 = vst [vmem:[#allocation2 + $0x1d0] sm:$0xff] %v391
  %408 = vst [vmem:[#allocation2 + $0x1d8] sm:$0xff] %v392
  %409 = vst [vmem:[#allocation2 + $0x1e0] sm:$0xff] %v393
  %410 = vst [vmem:[#allocation2 + $0x1e8] sm:$0xff] %v394
  %411 = vst [vmem:[#allocation2 + $0x1f0] sm:$0xff] %v395
  %412 = vst [vmem:[#allocation2 + $0x1f8] sm:$0xff] %v396
  %vm413 = vmand %vm375, %vm191
  %vm414 = vmand %vm376, %vm192
  %vm415 = vmand %vm413, %vm195
  %vm416 = vmand %vm414, %vm196
  %v417 = vsel %vm415, %v20, 0.0
  %v418 = vsel %vm416, %v21, 0.0
  %v419 = vsel %vm415, %v22, 0.0
  %v420 = vsel %vm416, %v23, 0.0
  %v421 = vsel %vm415, %v24, 0.0
  %v422 = vsel %vm416, %v25, 0.0
  %v423 = vsel %vm415, %v26, 0.0
  %v424 = vsel %vm416, %v27, 0.0
  %v425 = vsel %vm415, %v28, 0.0
  %v426 = vsel %vm416, %v29, 0.0
  %v427 = vsel %vm415, %v30, 0.0
  %v428 = vsel %vm416, %v31, 0.0
  %v429 = vsel %vm415, %v32, 0.0
  %v430 = vsel %vm416, %v33, 0.0
  %v431 = vsel %vm415, %v34, 0.0
  %v432 = vsel %vm416, %v35, 0.0
  %433 = vst [vmem:[#allocation2 + $0x200] sm:$0xff] %v417
  %434 = vst [vmem:[#allocation2 + $0x208] sm:$0xff] %v418
  %435 = vst [vmem:[#allocation2 + $0x210] sm:$0xff] %v419
  %436 = vst [vmem:[#allocation2 + $0x218] sm:$0xff] %v420
  %437 = vst [vmem:[#allocation2 + $0x220] sm:$0xff] %v421
  %438 = vst [vmem:[#allocation2 + $0x228] sm:$0xff] %v422
  %439 = vst [vmem:[#allocation2 + $0x230] sm:$0xff] %v423
  %440 = vst [vmem:[#allocation2 + $0x238] sm:$0xff] %v424
  %441 = vst [vmem:[#allocation2 + $0x240] sm:$0xff] %v425
  %442 = vst [vmem:[#allocation2 + $0x248] sm:$0xff] %v426
  %443 = vst [vmem:[#allocation2 + $0x250] sm:$0xff] %v427
  %444 = vst [vmem:[#allocation2 + $0x258] sm:$0xff] %v428
  %445 = vst [vmem:[#allocation2 + $0x260] sm:$0xff] %v429
  %446 = vst [vmem:[#allocation2 + $0x268] sm:$0xff] %v430
  %447 = vst [vmem:[#allocation2 + $0x270] sm:$0xff] %v431
  %448 = vst [vmem:[#allocation2 + $0x278] sm:$0xff] %v432
  %449 = vrot.lane.b32.xlu0 %v20, 127
  %v450 = vpop.permute.xlu0 %449
  %451 = vrot.lane.b32.xlu0 %v22, 127
  %v452 = vpop.permute.xlu0 %451
  %453 = vrot.lane.b32.xlu0 %v24, 127
  %v454 = vpop.permute.xlu0 %453
  %455 = vrot.lane.b32.xlu0 %v26, 127
  %v456 = vpop.permute.xlu0 %455
  %457 = vrot.lane.b32.xlu0 %v28, 127
  %v458 = vpop.permute.xlu0 %457
  %459 = vrot.lane.b32.xlu0 %v30, 127
  %v460 = vpop.permute.xlu0 %459
  %461 = vrot.lane.b32.xlu0 %v32, 127
  %v462 = vpop.permute.xlu0 %461
  %463 = vrot.lane.b32.xlu0 %v34, 127
  %v464 = vpop.permute.xlu0 %463
  %465 = vrot.lane.b32.xlu0 %v21, 127
  %v466 = vpop.permute.xlu0 %465
  %467 = vrot.lane.b32.xlu0 %v23, 127
  %v468 = vpop.permute.xlu0 %467
  %469 = vrot.lane.b32.xlu0 %v25, 127
  %v470 = vpop.permute.xlu0 %469
  %471 = vrot.lane.b32.xlu0 %v27, 127
  %v472 = vpop.permute.xlu0 %471
  %473 = vrot.lane.b32.xlu0 %v29, 127
  %v474 = vpop.permute.xlu0 %473
  %475 = vrot.lane.b32.xlu0 %v31, 127
  %v476 = vpop.permute.xlu0 %475
  %477 = vrot.lane.b32.xlu0 %v33, 127
  %v478 = vpop.permute.xlu0 %477
  %479 = vrot.lane.b32.xlu0 %v35, 127
  %v480 = vpop.permute.xlu0 %479
  %vm481 = vcmp.lt.s32.totalorder %v37, 127
  %v482 = vsel %vm481, %v450, %v466
  %v483 = vsel %vm481, %v452, %v468
  %v484 = vsel %vm481, %v454, %v470
  %v485 = vsel %vm481, %v456, %v472
  %v486 = vsel %vm481, %v458, %v474
  %v487 = vsel %vm481, %v460, %v476
  %v488 = vsel %vm481, %v462, %v478
  %v489 = vsel %vm481, %v464, %v480
  %v490 = vsel %vm481, %v466, %v450
  %v491 = vsel %vm481, %v468, %v452
  %v492 = vsel %vm481, %v470, %v454
  %v493 = vsel %vm481, %v472, %v456
  %v494 = vsel %vm481, %v474, %v458
  %v495 = vsel %vm481, %v476, %v460
  %v496 = vsel %vm481, %v478, %v462
  %v497 = vsel %vm481, %v480, %v464
  %vm498 = vmand %vm375, %vm282
  %vm499 = vmand %vm376, %vm283
  %vm500 = vmand %vm498, %vm286
  %vm501 = vmand %vm499, %vm287
  %v502 = vsel %vm500, %v482, 0.0
  %v503 = vsel %vm501, %v490, 0.0
  %v504 = vsel %vm500, %v483, 0.0
  %v505 = vsel %vm501, %v491, 0.0
  %v506 = vsel %vm500, %v484, 0.0
  %v507 = vsel %vm501, %v492, 0.0
  %v508 = vsel %vm500, %v485, 0.0
  %v509 = vsel %vm501, %v493, 0.0
  %v510 = vsel %vm500, %v486, 0.0
  %v511 = vsel %vm501, %v494, 0.0
  %v512 = vsel %vm500, %v487, 0.0
  %v513 = vsel %vm501, %v495, 0.0
  %v514 = vsel %vm500, %v488, 0.0
  %v515 = vsel %vm501, %v496, 0.0
  %v516 = vsel %vm500, %v489, 0.0
  %v517 = vsel %vm501, %v497, 0.0
  %518 = vst [vmem:[#allocation2 + $0x280] sm:$0xff] %v502
  %519 = vst [vmem:[#allocation2 + $0x288] sm:$0xff] %v503
  %520 = vst [vmem:[#allocation2 + $0x290] sm:$0xff] %v504
  %521 = vst [vmem:[#allocation2 + $0x298] sm:$0xff] %v505
  %522 = vst [vmem:[#allocation2 + $0x2a0] sm:$0xff] %v506
  %523 = vst [vmem:[#allocation2 + $0x2a8] sm:$0xff] %v507
  %524 = vst [vmem:[#allocation2 + $0x2b0] sm:$0xff] %v508
  %525 = vst [vmem:[#allocation2 + $0x2b8] sm:$0xff] %v509
  %526 = vst [vmem:[#allocation2 + $0x2c0] sm:$0xff] %v510
  %527 = vst [vmem:[#allocation2 + $0x2c8] sm:$0xff] %v511
  %528 = vst [vmem:[#allocation2 + $0x2d0] sm:$0xff] %v512
  %529 = vst [vmem:[#allocation2 + $0x2d8] sm:$0xff] %v513
  %530 = vst [vmem:[#allocation2 + $0x2e0] sm:$0xff] %v514
  %531 = vst [vmem:[#allocation2 + $0x2e8] sm:$0xff] %v515
  %532 = vst [vmem:[#allocation2 + $0x2f0] sm:$0xff] %v516
  %533 = vst [vmem:[#allocation2 + $0x2f8] sm:$0xff] %v517
  %534 = vrot.lane.b32.xlu0 %v20, 113
  %v535 = vpop.permute.xlu0 %534
  %536 = vrot.lane.b32.xlu0 %v22, 113
  %v537 = vpop.permute.xlu0 %536
  %538 = vrot.lane.b32.xlu0 %v24, 113
  %v539 = vpop.permute.xlu0 %538
  %540 = vrot.lane.b32.xlu0 %v26, 113
  %v541 = vpop.permute.xlu0 %540
  %542 = vrot.lane.b32.xlu0 %v28, 113
  %v543 = vpop.permute.xlu0 %542
  %544 = vrot.lane.b32.xlu0 %v30, 113
  %v545 = vpop.permute.xlu0 %544
  %546 = vrot.lane.b32.xlu0 %v32, 113
  %v547 = vpop.permute.xlu0 %546
  %548 = vrot.lane.b32.xlu0 %v34, 113
  %v549 = vpop.permute.xlu0 %548
  %550 = vrot.lane.b32.xlu0 %v21, 113
  %v551 = vpop.permute.xlu0 %550
  %552 = vrot.lane.b32.xlu0 %v23, 113
  %v553 = vpop.permute.xlu0 %552
  %554 = vrot.lane.b32.xlu0 %v25, 113
  %v555 = vpop.permute.xlu0 %554
  %556 = vrot.lane.b32.xlu0 %v27, 113
  %v557 = vpop.permute.xlu0 %556
  %558 = vrot.lane.b32.xlu0 %v29, 113
  %v559 = vpop.permute.xlu0 %558
  %560 = vrot.lane.b32.xlu0 %v31, 113
  %v561 = vpop.permute.xlu0 %560
  %562 = vrot.lane.b32.xlu0 %v33, 113
  %v563 = vpop.permute.xlu0 %562
  %564 = vrot.lane.b32.xlu0 %v35, 113
  %v565 = vpop.permute.xlu0 %564
  %vm566 = vcmp.lt.s32.totalorder %v37, 113
  %v567 = vsel %vm566, %v535, %v551
  %v568 = vsel %vm566, %v537, %v553
  %v569 = vsel %vm566, %v539, %v555
  %v570 = vsel %vm566, %v541, %v557
  %v571 = vsel %vm566, %v543, %v559
  %v572 = vsel %vm566, %v545, %v561
  %v573 = vsel %vm566, %v547, %v563
  %v574 = vsel %vm566, %v549, %v565
  %v575 = vsel %vm566, %v551, %v535
  %v576 = vsel %vm566, %v553, %v537
  %v577 = vsel %vm566, %v555, %v539
  %v578 = vsel %vm566, %v557, %v541
  %v579 = vsel %vm566, %v559, %v543
  %v580 = vsel %vm566, %v561, %v545
  %v581 = vsel %vm566, %v563, %v547
  %v582 = vsel %vm566, %v565, %v549
  %v583 = vadd.s32 %v39, 1
  %v584 = vadd.s32 %v40, 1
  %vm585 = vcmp.ge.s32.totalorder %v583, 0
  %vm586 = vcmp.ge.s32.totalorder %v584, 0
  %vm587 = vcmp.lt.s32.totalorder %v583, 16
  %vm588 = vcmp.lt.s32.totalorder %v584, 16
  %vm589 = vmand %vm585, %vm587
  %vm590 = vmand %vm586, %vm588
  %vm591 = vmand %vm589, %vm102
  %vm592 = vmand %vm590, %vm103
  %vm593 = vmand %vm591, %vm106
  %vm594 = vmand %vm592, %vm107
  %v595 = vsel %vm593, %v567, 0.0
  %v596 = vsel %vm594, %v575, 0.0
  %v597 = vsel %vm593, %v568, 0.0
  %v598 = vsel %vm594, %v576, 0.0
  %v599 = vsel %vm593, %v569, 0.0
  %v600 = vsel %vm594, %v577, 0.0
  %v601 = vsel %vm593, %v570, 0.0
  %v602 = vsel %vm594, %v578, 0.0
  %v603 = vsel %vm593, %v571, 0.0
  %v604 = vsel %vm594, %v579, 0.0
  %v605 = vsel %vm593, %v572, 0.0
  %v606 = vsel %vm594, %v580, 0.0
  %v607 = vsel %vm593, %v573, 0.0
  %v608 = vsel %vm594, %v581, 0.0
  %v609 = vsel %vm593, %v574, 0.0
  %v610 = vsel %vm594, %v582, 0.0
  %611 = vst [vmem:[#allocation2 + $0x300] sm:$0xff] %v595
  %612 = vst [vmem:[#allocation2 + $0x308] sm:$0xff] %v596
  %613 = vst [vmem:[#allocation2 + $0x310] sm:$0xff] %v597
  %614 = vst [vmem:[#allocation2 + $0x318] sm:$0xff] %v598
  %615 = vst [vmem:[#allocation2 + $0x320] sm:$0xff] %v599
  %616 = vst [vmem:[#allocation2 + $0x328] sm:$0xff] %v600
  %617 = vst [vmem:[#allocation2 + $0x330] sm:$0xff] %v601
  %618 = vst [vmem:[#allocation2 + $0x338] sm:$0xff] %v602
  %619 = vst [vmem:[#allocation2 + $0x340] sm:$0xff] %v603
  %620 = vst [vmem:[#allocation2 + $0x348] sm:$0xff] %v604
  %621 = vst [vmem:[#allocation2 + $0x350] sm:$0xff] %v605
  %622 = vst [vmem:[#allocation2 + $0x358] sm:$0xff] %v606
  %623 = vst [vmem:[#allocation2 + $0x360] sm:$0xff] %v607
  %624 = vst [vmem:[#allocation2 + $0x368] sm:$0xff] %v608
  %625 = vst [vmem:[#allocation2 + $0x370] sm:$0xff] %v609
  %626 = vst [vmem:[#allocation2 + $0x378] sm:$0xff] %v610
  %627 = vrot.lane.b32.xlu0 %v20, 112
  %v628 = vpop.permute.xlu0 %627
  %629 = vrot.lane.b32.xlu0 %v22, 112
  %v630 = vpop.permute.xlu0 %629
  %631 = vrot.lane.b32.xlu0 %v24, 112
  %v632 = vpop.permute.xlu0 %631
  %633 = vrot.lane.b32.xlu0 %v26, 112
  %v634 = vpop.permute.xlu0 %633
  %635 = vrot.lane.b32.xlu0 %v28, 112
  %v636 = vpop.permute.xlu0 %635
  %637 = vrot.lane.b32.xlu0 %v30, 112
  %v638 = vpop.permute.xlu0 %637
  %639 = vrot.lane.b32.xlu0 %v32, 112
  %v640 = vpop.permute.xlu0 %639
  %641 = vrot.lane.b32.xlu0 %v34, 112
  %v642 = vpop.permute.xlu0 %641
  %643 = vrot.lane.b32.xlu0 %v21, 112
  %v644 = vpop.permute.xlu0 %643
  %645 = vrot.lane.b32.xlu0 %v23, 112
  %v646 = vpop.permute.xlu0 %645
  %647 = vrot.lane.b32.xlu0 %v25, 112
  %v648 = vpop.permute.xlu0 %647
  %649 = vrot.lane.b32.xlu0 %v27, 112
  %v650 = vpop.permute.xlu0 %649
  %651 = vrot.lane.b32.xlu0 %v29, 112
  %v652 = vpop.permute.xlu0 %651
  %653 = vrot.lane.b32.xlu0 %v31, 112
  %v654 = vpop.permute.xlu0 %653
  %655 = vrot.lane.b32.xlu0 %v33, 112
  %v656 = vpop.permute.xlu0 %655
  %657 = vrot.lane.b32.xlu0 %v35, 112
  %v658 = vpop.permute.xlu0 %657
  %vm659 = vcmp.lt.s32.totalorder %v37, 112
  %v660 = vsel %vm659, %v628, %v644
  %v661 = vsel %vm659, %v630, %v646
  %v662 = vsel %vm659, %v632, %v648
  %v663 = vsel %vm659, %v634, %v650
  %v664 = vsel %vm659, %v636, %v652
  %v665 = vsel %vm659, %v638, %v654
  %v666 = vsel %vm659, %v640, %v656
  %v667 = vsel %vm659, %v642, %v658
  %v668 = vsel %vm659, %v644, %v628
  %v669 = vsel %vm659, %v646, %v630
  %v670 = vsel %vm659, %v648, %v632
  %v671 = vsel %vm659, %v650, %v634
  %v672 = vsel %vm659, %v652, %v636
  %v673 = vsel %vm659, %v654, %v638
  %v674 = vsel %vm659, %v656, %v640
  %v675 = vsel %vm659, %v658, %v642
  %vm676 = vmand %vm589, %vm191
  %vm677 = vmand %vm590, %vm192
  %vm678 = vmand %vm676, %vm195
  %vm679 = vmand %vm677, %vm196
  %v680 = vsel %vm678, %v660, 0.0
  %v681 = vsel %vm679, %v668, 0.0
  %v682 = vsel %vm678, %v661, 0.0
  %v683 = vsel %vm679, %v669, 0.0
  %v684 = vsel %vm678, %v662, 0.0
  %v685 = vsel %vm679, %v670, 0.0
  %v686 = vsel %vm678, %v663, 0.0
  %v687 = vsel %vm679, %v671, 0.0
  %v688 = vsel %vm678, %v664, 0.0
  %v689 = vsel %vm679, %v672, 0.0
  %v690 = vsel %vm678, %v665, 0.0
  %v691 = vsel %vm679, %v673, 0.0
  %v692 = vsel %vm678, %v666, 0.0
  %v693 = vsel %vm679, %v674, 0.0
  %v694 = vsel %vm678, %v667, 0.0
  %v695 = vsel %vm679, %v675, 0.0
  %696 = vst [vmem:[#allocation2 + $0x380] sm:$0xff] %v680
  %697 = vst [vmem:[#allocation2 + $0x388] sm:$0xff] %v681
  %698 = vst [vmem:[#allocation2 + $0x390] sm:$0xff] %v682
  %699 = vst [vmem:[#allocation2 + $0x398] sm:$0xff] %v683
  %700 = vst [vmem:[#allocation2 + $0x3a0] sm:$0xff] %v684
  %701 = vst [vmem:[#allocation2 + $0x3a8] sm:$0xff] %v685
  %702 = vst [vmem:[#allocation2 + $0x3b0] sm:$0xff] %v686
  %703 = vst [vmem:[#allocation2 + $0x3b8] sm:$0xff] %v687
  %704 = vst [vmem:[#allocation2 + $0x3c0] sm:$0xff] %v688
  %705 = vst [vmem:[#allocation2 + $0x3c8] sm:$0xff] %v689
  %706 = vst [vmem:[#allocation2 + $0x3d0] sm:$0xff] %v690
  %707 = vst [vmem:[#allocation2 + $0x3d8] sm:$0xff] %v691
  %708 = vst [vmem:[#allocation2 + $0x3e0] sm:$0xff] %v692
  %709 = vst [vmem:[#allocation2 + $0x3e8] sm:$0xff] %v693
  %710 = vst [vmem:[#allocation2 + $0x3f0] sm:$0xff] %v694
  %711 = vst [vmem:[#allocation2 + $0x3f8] sm:$0xff] %v695
  %712 = vrot.lane.b32.xlu0 %v20, 111
  %v713 = vpop.permute.xlu0 %712
  %714 = vrot.lane.b32.xlu0 %v22, 111
  %v715 = vpop.permute.xlu0 %714
  %716 = vrot.lane.b32.xlu0 %v24, 111
  %v717 = vpop.permute.xlu0 %716
  %718 = vrot.lane.b32.xlu0 %v26, 111
  %v719 = vpop.permute.xlu0 %718
  %720 = vrot.lane.b32.xlu0 %v28, 111
  %v721 = vpop.permute.xlu0 %720
  %722 = vrot.lane.b32.xlu0 %v30, 111
  %v723 = vpop.permute.xlu0 %722
  %724 = vrot.lane.b32.xlu0 %v32, 111
  %v725 = vpop.permute.xlu0 %724
  %726 = vrot.lane.b32.xlu0 %v34, 111
  %v727 = vpop.permute.xlu0 %726
  %728 = vrot.lane.b32.xlu0 %v21, 111
  %v729 = vpop.permute.xlu0 %728
  %730 = vrot.lane.b32.xlu0 %v23, 111
  %v731 = vpop.permute.xlu0 %730
  %732 = vrot.lane.b32.xlu0 %v25, 111
  %v733 = vpop.permute.xlu0 %732
  %734 = vrot.lane.b32.xlu0 %v27, 111
  %v735 = vpop.permute.xlu0 %734
  %736 = vrot.lane.b32.xlu0 %v29, 111
  %v737 = vpop.permute.xlu0 %736
  %738 = vrot.lane.b32.xlu0 %v31, 111
  %v739 = vpop.permute.xlu0 %738
  %740 = vrot.lane.b32.xlu0 %v33, 111
  %v741 = vpop.permute.xlu0 %740
  %742 = vrot.lane.b32.xlu0 %v35, 111
  %v743 = vpop.permute.xlu0 %742
  %vm744 = vcmp.lt.s32.totalorder %v37, 111
  %v745 = vsel %vm744, %v713, %v729
  %v746 = vsel %vm744, %v715, %v731
  %v747 = vsel %vm744, %v717, %v733
  %v748 = vsel %vm744, %v719, %v735
  %v749 = vsel %vm744, %v721, %v737
  %v750 = vsel %vm744, %v723, %v739
  %v751 = vsel %vm744, %v725, %v741
  %v752 = vsel %vm744, %v727, %v743
  %v753 = vsel %vm744, %v729, %v713
  %v754 = vsel %vm744, %v731, %v715
  %v755 = vsel %vm744, %v733, %v717
  %v756 = vsel %vm744, %v735, %v719
  %v757 = vsel %vm744, %v737, %v721
  %v758 = vsel %vm744, %v739, %v723
  %v759 = vsel %vm744, %v741, %v725
  %v760 = vsel %vm744, %v743, %v727
  %vm761 = vmand %vm589, %vm282
  %vm762 = vmand %vm590, %vm283
  %vm763 = vmand %vm761, %vm286
  %vm764 = vmand %vm762, %vm287
  %v765 = vsel %vm763, %v745, 0.0
  %v766 = vsel %vm764, %v753, 0.0
  %v767 = vsel %vm763, %v746, 0.0
  %v768 = vsel %vm764, %v754, 0.0
  %v769 = vsel %vm763, %v747, 0.0
  %v770 = vsel %vm764, %v755, 0.0
  %v771 = vsel %vm763, %v748, 0.0
  %v772 = vsel %vm764, %v756, 0.0
  %v773 = vsel %vm763, %v749, 0.0
  %v774 = vsel %vm764, %v757, 0.0
  %v775 = vsel %vm763, %v750, 0.0
  %v776 = vsel %vm764, %v758, 0.0
  %v777 = vsel %vm763, %v751, 0.0
  %v778 = vsel %vm764, %v759, 0.0
  %v779 = vsel %vm763, %v752, 0.0
  %v780 = vsel %vm764, %v760, 0.0
  %781 = vst [vmem:[#allocation2 + $0x400] sm:$0xff] %v765
  %782 = vst [vmem:[#allocation2 + $0x408] sm:$0xff] %v766
  %783 = vst [vmem:[#allocation2 + $0x410] sm:$0xff] %v767
  %784 = vst [vmem:[#allocation2 + $0x418] sm:$0xff] %v768
  %785 = vst [vmem:[#allocation2 + $0x420] sm:$0xff] %v769
  %786 = vst [vmem:[#allocation2 + $0x428] sm:$0xff] %v770
  %787 = vst [vmem:[#allocation2 + $0x430] sm:$0xff] %v771
  %788 = vst [vmem:[#allocation2 + $0x438] sm:$0xff] %v772
  %789 = vst [vmem:[#allocation2 + $0x440] sm:$0xff] %v773
  %790 = vst [vmem:[#allocation2 + $0x448] sm:$0xff] %v774
  %791 = vst [vmem:[#allocation2 + $0x450] sm:$0xff] %v775
  %792 = vst [vmem:[#allocation2 + $0x458] sm:$0xff] %v776
  %793 = vst [vmem:[#allocation2 + $0x460] sm:$0xff] %v777
  %794 = vst [vmem:[#allocation2 + $0x468] sm:$0xff] %v778
  %795 = vst [vmem:[#allocation2 + $0x470] sm:$0xff] %v779
  %796 = vst [vmem:[#allocation2 + $0x478] sm:$0xff] %v780
  %v797 = vld [vmem:[%s1] sm:$0xff]
  %v798 = vld [vmem:[#allocation2] sm:$0xff]
  %v799 = vld [vmem:[#allocation2 + $0x8] sm:$0xff]
  %v800 = vld [vmem:[#allocation2 + $0x10] sm:$0xff]
  %v801 = vld [vmem:[#allocation2 + $0x18] sm:$0xff]
  %v802 = vld [vmem:[#allocation2 + $0x20] sm:$0xff]
  %v803 = vld [vmem:[#allocation2 + $0x28] sm:$0xff]
  %v804 = vld [vmem:[#allocation2 + $0x30] sm:$0xff]
  %v805 = vld [vmem:[#allocation2 + $0x38] sm:$0xff]
  %v806 = vld [vmem:[#allocation2 + $0x40] sm:$0xff]
  %v807 = vld [vmem:[#allocation2 + $0x48] sm:$0xff]
  %v808 = vld [vmem:[#allocation2 + $0x50] sm:$0xff]
  %v809 = vld [vmem:[#allocation2 + $0x58] sm:$0xff]
  %v810 = vld [vmem:[#allocation2 + $0x60] sm:$0xff]
  %v811 = vld [vmem:[#allocation2 + $0x68] sm:$0xff]
  %v812 = vld [vmem:[#allocation2 + $0x70] sm:$0xff]
  %v813 = vld [vmem:[#allocation2 + $0x78] sm:$0xff]
  %v814 = vld [vmem:[#allocation2 + $0x80] sm:$0xff]
  %v815 = vld [vmem:[#allocation2 + $0x88] sm:$0xff]
  %v816 = vld [vmem:[#allocation2 + $0x90] sm:$0xff]
  %v817 = vld [vmem:[#allocation2 + $0x98] sm:$0xff]
  %v818 = vld [vmem:[#allocation2 + $0xa0] sm:$0xff]
  %v819 = vld [vmem:[#allocation2 + $0xa8] sm:$0xff]
  %v820 = vld [vmem:[#allocation2 + $0xb0] sm:$0xff]
  %v821 = vld [vmem:[#allocation2 + $0xb8] sm:$0xff]
  %v822 = vld [vmem:[#allocation2 + $0xc0] sm:$0xff]
  %v823 = vld [vmem:[#allocation2 + $0xc8] sm:$0xff]
  %v824 = vld [vmem:[#allocation2 + $0xd0] sm:$0xff]
  %v825 = vld [vmem:[#allocation2 + $0xd8] sm:$0xff]
  %v826 = vld [vmem:[#allocation2 + $0xe0] sm:$0xff]
  %v827 = vld [vmem:[#allocation2 + $0xe8] sm:$0xff]
  %v828 = vld [vmem:[#allocation2 + $0xf0] sm:$0xff]
  %v829 = vld [vmem:[#allocation2 + $0xf8] sm:$0xff]
  %v830 = vld [vmem:[#allocation2 + $0x100] sm:$0xff]
  %v831 = vld [vmem:[#allocation2 + $0x108] sm:$0xff]
  %v832 = vld [vmem:[#allocation2 + $0x110] sm:$0xff]
  %v833 = vld [vmem:[#allocation2 + $0x118] sm:$0xff]
  %v834 = vld [vmem:[#allocation2 + $0x120] sm:$0xff]
  %v835 = vld [vmem:[#allocation2 + $0x128] sm:$0xff]
  %v836 = vld [vmem:[#allocation2 + $0x130] sm:$0xff]
  %v837 = vld [vmem:[#allocation2 + $0x138] sm:$0xff]
  %v838 = vld [vmem:[#allocation2 + $0x140] sm:$0xff]
  %v839 = vld [vmem:[#allocation2 + $0x148] sm:$0xff]
  %v840 = vld [vmem:[#allocation2 + $0x150] sm:$0xff]
  %v841 = vld [vmem:[#allocation2 + $0x158] sm:$0xff]
  %v842 = vld [vmem:[#allocation2 + $0x160] sm:$0xff]
  %v843 = vld [vmem:[#allocation2 + $0x168] sm:$0xff]
  %v844 = vld [vmem:[#allocation2 + $0x170] sm:$0xff]
  %v845 = vld [vmem:[#allocation2 + $0x178] sm:$0xff]
  %v846 = vld [vmem:[#allocation2 + $0x180] sm:$0xff]
  %v847 = vld [vmem:[#allocation2 + $0x188] sm:$0xff]
  %v848 = vld [vmem:[#allocation2 + $0x190] sm:$0xff]
  %v849 = vld [vmem:[#allocation2 + $0x198] sm:$0xff]
  %v850 = vld [vmem:[#allocation2 + $0x1a0] sm:$0xff]
  %v851 = vld [vmem:[#allocation2 + $0x1a8] sm:$0xff]
  %v852 = vld [vmem:[#allocation2 + $0x1b0] sm:$0xff]
  %v853 = vld [vmem:[#allocation2 + $0x1b8] sm:$0xff]
  %v854 = vld [vmem:[#allocation2 + $0x1c0] sm:$0xff]
  %v855 = vld [vmem:[#allocation2 + $0x1c8] sm:$0xff]
  %v856 = vld [vmem:[#allocation2 + $0x1d0] sm:$0xff]
  %v857 = vld [vmem:[#allocation2 + $0x1d8] sm:$0xff]
  %v858 = vld [vmem:[#allocation2 + $0x1e0] sm:$0xff]
  %v859 = vld [vmem:[#allocation2 + $0x1e8] sm:$0xff]
  %v860 = vld [vmem:[#allocation2 + $0x1f0] sm:$0xff]
  %v861 = vld [vmem:[#allocation2 + $0x1f8] sm:$0xff]
  %v862 = vld [vmem:[#allocation2 + $0x200] sm:$0xff]
  %v863 = vld [vmem:[#allocation2 + $0x208] sm:$0xff]
  %v864 = vld [vmem:[#allocation2 + $0x210] sm:$0xff]
  %v865 = vld [vmem:[#allocation2 + $0x218] sm:$0xff]
  %v866 = vld [vmem:[#allocation2 + $0x220] sm:$0xff]
  %v867 = vld [vmem:[#allocation2 + $0x228] sm:$0xff]
  %v868 = vld [vmem:[#allocation2 + $0x230] sm:$0xff]
  %v869 = vld [vmem:[#allocation2 + $0x238] sm:$0xff]
  %v870 = vld [vmem:[#allocation2 + $0x240] sm:$0xff]
  %v871 = vld [vmem:[#allocation2 + $0x248] sm:$0xff]
  %v872 = vld [vmem:[#allocation2 + $0x250] sm:$0xff]
  %v873 = vld [vmem:[#allocation2 + $0x258] sm:$0xff]
  %v874 = vld [vmem:[#allocation2 + $0x260] sm:$0xff]
  %v875 = vld [vmem:[#allocation2 + $0x268] sm:$0xff]
  %v876 = vld [vmem:[#allocation2 + $0x270] sm:$0xff]
  %v877 = vld [vmem:[#allocation2 + $0x278] sm:$0xff]
  %v878 = vld [vmem:[#allocation2 + $0x280] sm:$0xff]
  %v879 = vld [vmem:[#allocation2 + $0x288] sm:$0xff]
  %v880 = vld [vmem:[#allocation2 + $0x290] sm:$0xff]
  %v881 = vld [vmem:[#allocation2 + $0x298] sm:$0xff]
  %v882 = vld [vmem:[#allocation2 + $0x2a0] sm:$0xff]
  %v883 = vld [vmem:[#allocation2 + $0x2a8] sm:$0xff]
  %v884 = vld [vmem:[#allocation2 + $0x2b0] sm:$0xff]
  %v885 = vld [vmem:[#allocation2 + $0x2b8] sm:$0xff]
  %v886 = vld [vmem:[#allocation2 + $0x2c0] sm:$0xff]
  %v887 = vld [vmem:[#allocation2 + $0x2c8] sm:$0xff]
  %v888 = vld [vmem:[#allocation2 + $0x2d0] sm:$0xff]
  %v889 = vld [vmem:[#allocation2 + $0x2d8] sm:$0xff]
  %v890 = vld [vmem:[#allocation2 + $0x2e0] sm:$0xff]
  %v891 = vld [vmem:[#allocation2 + $0x2e8] sm:$0xff]
  %v892 = vld [vmem:[#allocation2 + $0x2f0] sm:$0xff]
  %v893 = vld [vmem:[#allocation2 + $0x2f8] sm:$0xff]
  %v894 = vld [vmem:[#allocation2 + $0x300] sm:$0xff]
  %v895 = vld [vmem:[#allocation2 + $0x308] sm:$0xff]
  %v896 = vld [vmem:[#allocation2 + $0x310] sm:$0xff]
  %v897 = vld [vmem:[#allocation2 + $0x318] sm:$0xff]
  %v898 = vld [vmem:[#allocation2 + $0x320] sm:$0xff]
  %v899 = vld [vmem:[#allocation2 + $0x328] sm:$0xff]
  %v900 = vld [vmem:[#allocation2 + $0x330] sm:$0xff]
  %v901 = vld [vmem:[#allocation2 + $0x338] sm:$0xff]
  %v902 = vld [vmem:[#allocation2 + $0x340] sm:$0xff]
  %v903 = vld [vmem:[#allocation2 + $0x348] sm:$0xff]
  %v904 = vld [vmem:[#allocation2 + $0x350] sm:$0xff]
  %v905 = vld [vmem:[#allocation2 + $0x358] sm:$0xff]
  %v906 = vld [vmem:[#allocation2 + $0x360] sm:$0xff]
  %v907 = vld [vmem:[#allocation2 + $0x368] sm:$0xff]
  %v908 = vld [vmem:[#allocation2 + $0x370] sm:$0xff]
  %v909 = vld [vmem:[#allocation2 + $0x378] sm:$0xff]
  %v910 = vld [vmem:[#allocation2 + $0x380] sm:$0xff]
  %v911 = vld [vmem:[#allocation2 + $0x388] sm:$0xff]
  %v912 = vld [vmem:[#allocation2 + $0x390] sm:$0xff]
  %v913 = vld [vmem:[#allocation2 + $0x398] sm:$0xff]
  %v914 = vld [vmem:[#allocation2 + $0x3a0] sm:$0xff]
  %v915 = vld [vmem:[#allocation2 + $0x3a8] sm:$0xff]
  %v916 = vld [vmem:[#allocation2 + $0x3b0] sm:$0xff]
  %v917 = vld [vmem:[#allocation2 + $0x3b8] sm:$0xff]
  %v918 = vld [vmem:[#allocation2 + $0x3c0] sm:$0xff]
  %v919 = vld [vmem:[#allocation2 + $0x3c8] sm:$0xff]
  %v920 = vld [vmem:[#allocation2 + $0x3d0] sm:$0xff]
  %v921 = vld [vmem:[#allocation2 + $0x3d8] sm:$0xff]
  %v922 = vld [vmem:[#allocation2 + $0x3e0] sm:$0xff]
  %v923 = vld [vmem:[#allocation2 + $0x3e8] sm:$0xff]
  %v924 = vld [vmem:[#allocation2 + $0x3f0] sm:$0xff]
  %v925 = vld [vmem:[#allocation2 + $0x3f8] sm:$0xff]
  %v926 = vld [vmem:[#allocation2 + $0x400] sm:$0xff]
  %v927 = vld [vmem:[#allocation2 + $0x408] sm:$0xff]
  %v928 = vld [vmem:[#allocation2 + $0x410] sm:$0xff]
  %v929 = vld [vmem:[#allocation2 + $0x418] sm:$0xff]
  %v930 = vld [vmem:[#allocation2 + $0x420] sm:$0xff]
  %v931 = vld [vmem:[#allocation2 + $0x428] sm:$0xff]
  %v932 = vld [vmem:[#allocation2 + $0x430] sm:$0xff]
  %v933 = vld [vmem:[#allocation2 + $0x438] sm:$0xff]
  %v934 = vld [vmem:[#allocation2 + $0x440] sm:$0xff]
  %v935 = vld [vmem:[#allocation2 + $0x448] sm:$0xff]
  %v936 = vld [vmem:[#allocation2 + $0x450] sm:$0xff]
  %v937 = vld [vmem:[#allocation2 + $0x458] sm:$0xff]
  %v938 = vld [vmem:[#allocation2 + $0x460] sm:$0xff]
  %v939 = vld [vmem:[#allocation2 + $0x468] sm:$0xff]
  %v940 = vld [vmem:[#allocation2 + $0x470] sm:$0xff]
  %v941 = vld [vmem:[#allocation2 + $0x478] sm:$0xff]
  %v942 = vld [vmem:[%s2] sm:$0xff]
  %944 = vset.pattern.permute.xlu0 0
  %945 = vperm.xlu0 %944, %v942
  %v946 = vpop.permute.xlu0 %945
  %vm948 = vcmask 588800
  %v950 = vsel %vm948, %v797, 0
  %952 = vmatpush.msra.mxu0 0.0
  %953 = vmatpush.msra.mxu0 0.0
  %954 = vmatpush.msra.mxu0 0.0
  %955 = vmatpush.msra.mxu0 0.0
  %956 = vmatpush.msra.mxu0 0.0
  %957 = vmatpush.msra.mxu0 0.0
  %958 = vmatpush.msra.mxu0 0.0
  %959 = vmatpush.msra.mxu0 %v926
  %960 = vmatpush.msra.mxu0 %v910
  %961 = vmatpush.msra.mxu0 %v894
  %962 = vmatpush.msra.mxu0 %v878
  %963 = vmatpush.msra.mxu0 %v862
  %964 = vmatpush.msra.mxu0 %v846
  %965 = vmatpush.msra.mxu0 %v830
  %966 = vmatpush.msra.mxu0 %v814
  %967 = vmatpush.msra.mxu0 %v798
  %968 = vmatmul.f32.gmra.mxu0 %v950
  %v969 = vpop.f32.mrf.mxu0
  %v970 = vadd.f32 %v946, %v969
  %971 = vdwg.mxu0
  %972 = vmatpush.msra.mxu0 0.0
  %973 = vmatpush.msra.mxu0 0.0
  %974 = vmatpush.msra.mxu0 0.0
  %975 = vmatpush.msra.mxu0 0.0
  %976 = vmatpush.msra.mxu0 0.0
  %977 = vmatpush.msra.mxu0 0.0
  %978 = vmatpush.msra.mxu0 0.0
  %979 = vmatpush.msra.mxu0 %v927
  %980 = vmatpush.msra.mxu0 %v911
  %981 = vmatpush.msra.mxu0 %v895
  %982 = vmatpush.msra.mxu0 %v879
  %983 = vmatpush.msra.mxu0 %v863
  %984 = vmatpush.msra.mxu0 %v847
  %985 = vmatpush.msra.mxu0 %v831
  %986 = vmatpush.msra.mxu0 %v815
  %987 = vmatpush.msra.mxu0 %v799
  %988 = vmatmul.f32.gmra.mxu0 %v950
  %v989 = vpop.f32.mrf.mxu0
  %v990 = vadd.f32 %v946, %v989
  %991 = vdwg.mxu0
  %992 = vmatpush.msra.mxu0 0.0
  %993 = vmatpush.msra.mxu0 0.0
  %994 = vmatpush.msra.mxu0 0.0
  %995 = vmatpush.msra.mxu0 0.0
  %996 = vmatpush.msra.mxu0 0.0
  %997 = vmatpush.msra.mxu0 0.0
  %998 = vmatpush.msra.mxu0 0.0
  %999 = vmatpush.msra.mxu0 %v928
  %1000 = vmatpush.msra.mxu0 %v912
  %1001 = vmatpush.msra.mxu0 %v896
  %1002 = vmatpush.msra.mxu0 %v880
  %1003 = vmatpush.msra.mxu0 %v864
  %1004 = vmatpush.msra.mxu0 %v848
  %1005 = vmatpush.msra.mxu0 %v832
  %1006 = vmatpush.msra.mxu0 %v816
  %1007 = vmatpush.msra.mxu0 %v800
  %1008 = vmatmul.f32.gmra.mxu0 %v950
  %v1009 = vpop.f32.mrf.mxu0
  %v1010 = vadd.f32 %v946, %v1009
  %1011 = vdwg.mxu0
  %1012 = vmatpush.msra.mxu0 0.0
  %1013 = vmatpush.msra.mxu0 0.0
  %1014 = vmatpush.msra.mxu0 0.0
  %1015 = vmatpush.msra.mxu0 0.0
  %1016 = vmatpush.msra.mxu0 0.0
  %1017 = vmatpush.msra.mxu0 0.0
  %1018 = vmatpush.msra.mxu0 0.0
  %1019 = vmatpush.msra.mxu0 %v929
  %1020 = vmatpush.msra.mxu0 %v913
  %1021 = vmatpush.msra.mxu0 %v897
  %1022 = vmatpush.msra.mxu0 %v881
  %1023 = vmatpush.msra.mxu0 %v865
  %1024 = vmatpush.msra.mxu0 %v849
  %1025 = vmatpush.msra.mxu0 %v833
  %1026 = vmatpush.msra.mxu0 %v817
  %1027 = vmatpush.msra.mxu0 %v801
  %1028 = vmatmul.f32.gmra.mxu0 %v950
  %v1029 = vpop.f32.mrf.mxu0
  %v1030 = vadd.f32 %v946, %v1029
  %1031 = vdwg.mxu0
  %1032 = vmatpush.msra.mxu0 0.0
  %1033 = vmatpush.msra.mxu0 0.0
  %1034 = vmatpush.msra.mxu0 0.0
  %1035 = vmatpush.msra.mxu0 0.0
  %1036 = vmatpush.msra.mxu0 0.0
  %1037 = vmatpush.msra.mxu0 0.0
  %1038 = vmatpush.msra.mxu0 0.0
  %1039 = vmatpush.msra.mxu0 %v930
  %1040 = vmatpush.msra.mxu0 %v914
  %1041 = vmatpush.msra.mxu0 %v898
  %1042 = vmatpush.msra.mxu0 %v882
  %1043 = vmatpush.msra.mxu0 %v866
  %1044 = vmatpush.msra.mxu0 %v850
  %1045 = vmatpush.msra.mxu0 %v834
  %1046 = vmatpush.msra.mxu0 %v818
  %1047 = vmatpush.msra.mxu0 %v802
  %1048 = vmatmul.f32.gmra.mxu0 %v950
  %v1049 = vpop.f32.mrf.mxu0
  %v1050 = vadd.f32 %v946, %v1049
  %1051 = vdwg.mxu0
  %1052 = vmatpush.msra.mxu0 0.0
  %1053 = vmatpush.msra.mxu0 0.0
  %1054 = vmatpush.msra.mxu0 0.0
  %1055 = vmatpush.msra.mxu0 0.0
  %1056 = vmatpush.msra.mxu0 0.0
  %1057 = vmatpush.msra.mxu0 0.0
  %1058 = vmatpush.msra.mxu0 0.0
  %1059 = vmatpush.msra.mxu0 %v931
  %1060 = vmatpush.msra.mxu0 %v915
  %1061 = vmatpush.msra.mxu0 %v899
  %1062 = vmatpush.msra.mxu0 %v883
  %1063 = vmatpush.msra.mxu0 %v867
  %1064 = vmatpush.msra.mxu0 %v851
  %1065 = vmatpush.msra.mxu0 %v835
  %1066 = vmatpush.msra.mxu0 %v819
  %1067 = vmatpush.msra.mxu0 %v803
  %1068 = vmatmul.f32.gmra.mxu0 %v950
  %v1069 = vpop.f32.mrf.mxu0
  %v1070 = vadd.f32 %v946, %v1069
  %1071 = vdwg.mxu0
  %1072 = vmatpush.msra.mxu0 0.0
  %1073 = vmatpush.msra.mxu0 0.0
  %1074 = vmatpush.msra.mxu0 0.0
  %1075 = vmatpush.msra.mxu0 0.0
  %1076 = vmatpush.msra.mxu0 0.0
  %1077 = vmatpush.msra.mxu0 0.0
  %1078 = vmatpush.msra.mxu0 0.0
  %1079 = vmatpush.msra.mxu0 %v932
  %1080 = vmatpush.msra.mxu0 %v916
  %1081 = vmatpush.msra.mxu0 %v900
  %1082 = vmatpush.msra.mxu0 %v884
  %1083 = vmatpush.msra.mxu0 %v868
  %1084 = vmatpush.msra.mxu0 %v852
  %1085 = vmatpush.msra.mxu0 %v836
  %1086 = vmatpush.msra.mxu0 %v820
  %1087 = vmatpush.msra.mxu0 %v804
  %1088 = vmatmul.f32.gmra.mxu0 %v950
  %v1089 = vpop.f32.mrf.mxu0
  %v1090 = vadd.f32 %v946, %v1089
  %1091 = vdwg.mxu0
  %1092 = vmatpush.msra.mxu0 0.0
  %1093 = vmatpush.msra.mxu0 0.0
  %1094 = vmatpush.msra.mxu0 0.0
  %1095 = vmatpush.msra.mxu0 0.0
  %1096 = vmatpush.msra.mxu0 0.0
  %1097 = vmatpush.msra.mxu0 0.0
  %1098 = vmatpush.msra.mxu0 0.0
  %1099 = vmatpush.msra.mxu0 %v933
  %1100 = vmatpush.msra.mxu0 %v917
  %1101 = vmatpush.msra.mxu0 %v901
  %1102 = vmatpush.msra.mxu0 %v885
  %1103 = vmatpush.msra.mxu0 %v869
  %1104 = vmatpush.msra.mxu0 %v853
  %1105 = vmatpush.msra.mxu0 %v837
  %1106 = vmatpush.msra.mxu0 %v821
  %1107 = vmatpush.msra.mxu0 %v805
  %1108 = vmatmul.f32.gmra.mxu0 %v950
  %v1109 = vpop.f32.mrf.mxu0
  %v1110 = vadd.f32 %v946, %v1109
  %1111 = vdwg.mxu0
  %1112 = vmatpush.msra.mxu0 0.0
  %1113 = vmatpush.msra.mxu0 0.0
  %1114 = vmatpush.msra.mxu0 0.0
  %1115 = vmatpush.msra.mxu0 0.0
  %1116 = vmatpush.msra.mxu0 0.0
  %1117 = vmatpush.msra.mxu0 0.0
  %1118 = vmatpush.msra.mxu0 0.0
  %1119 = vmatpush.msra.mxu0 %v934
  %1120 = vmatpush.msra.mxu0 %v918
  %1121 = vmatpush.msra.mxu0 %v902
  %1122 = vmatpush.msra.mxu0 %v886
  %1123 = vmatpush.msra.mxu0 %v870
  %1124 = vmatpush.msra.mxu0 %v854
  %1125 = vmatpush.msra.mxu0 %v838
  %1126 = vmatpush.msra.mxu0 %v822
  %1127 = vmatpush.msra.mxu0 %v806
  %1128 = vmatmul.f32.gmra.mxu0 %v950
  %v1129 = vpop.f32.mrf.mxu0
  %v1130 = vadd.f32 %v946, %v1129
  %1131 = vdwg.mxu0
  %1132 = vmatpush.msra.mxu0 0.0
  %1133 = vmatpush.msra.mxu0 0.0
  %1134 = vmatpush.msra.mxu0 0.0
  %1135 = vmatpush.msra.mxu0 0.0
  %1136 = vmatpush.msra.mxu0 0.0
  %1137 = vmatpush.msra.mxu0 0.0
  %1138 = vmatpush.msra.mxu0 0.0
  %1139 = vmatpush.msra.mxu0 %v935
  %1140 = vmatpush.msra.mxu0 %v919
  %1141 = vmatpush.msra.mxu0 %v903
  %1142 = vmatpush.msra.mxu0 %v887
  %1143 = vmatpush.msra.mxu0 %v871
  %1144 = vmatpush.msra.mxu0 %v855
  %1145 = vmatpush.msra.mxu0 %v839
  %1146 = vmatpush.msra.mxu0 %v823
  %1147 = vmatpush.msra.mxu0 %v807
  %1148 = vmatmul.f32.gmra.mxu0 %v950
  %v1149 = vpop.f32.mrf.mxu0
  %v1150 = vadd.f32 %v946, %v1149
  %1151 = vdwg.mxu0
  %1152 = vmatpush.msra.mxu0 0.0
  %1153 = vmatpush.msra.mxu0 0.0
  %1154 = vmatpush.msra.mxu0 0.0
  %1155 = vmatpush.msra.mxu0 0.0
  %1156 = vmatpush.msra.mxu0 0.0
  %1157 = vmatpush.msra.mxu0 0.0
  %1158 = vmatpush.msra.mxu0 0.0
  %1159 = vmatpush.msra.mxu0 %v936
  %1160 = vmatpush.msra.mxu0 %v920
  %1161 = vmatpush.msra.mxu0 %v904
  %1162 = vmatpush.msra.mxu0 %v888
  %1163 = vmatpush.msra.mxu0 %v872
  %1164 = vmatpush.msra.mxu0 %v856
  %1165 = vmatpush.msra.mxu0 %v840
  %1166 = vmatpush.msra.mxu0 %v824
  %1167 = vmatpush.msra.mxu0 %v808
  %1168 = vmatmul.f32.gmra.mxu0 %v950
  %v1169 = vpop.f32.mrf.mxu0
  %v1170 = vadd.f32 %v946, %v1169
  %1171 = vdwg.mxu0
  %1172 = vmatpush.msra.mxu0 0.0
  %1173 = vmatpush.msra.mxu0 0.0
  %1174 = vmatpush.msra.mxu0 0.0
  %1175 = vmatpush.msra.mxu0 0.0
  %1176 = vmatpush.msra.mxu0 0.0
  %1177 = vmatpush.msra.mxu0 0.0
  %1178 = vmatpush.msra.mxu0 0.0
  %1179 = vmatpush.msra.mxu0 %v937
  %1180 = vmatpush.msra.mxu0 %v921
  %1181 = vmatpush.msra.mxu0 %v905
  %1182 = vmatpush.msra.mxu0 %v889
  %1183 = vmatpush.msra.mxu0 %v873
  %1184 = vmatpush.msra.mxu0 %v857
  %1185 = vmatpush.msra.mxu0 %v841
  %1186 = vmatpush.msra.mxu0 %v825
  %1187 = vmatpush.msra.mxu0 %v809
  %1188 = vmatmul.f32.gmra.mxu0 %v950
  %v1189 = vpop.f32.mrf.mxu0
  %v1190 = vadd.f32 %v946, %v1189
  %1191 = vdwg.mxu0
  %1192 = vmatpush.msra.mxu0 0.0
  %1193 = vmatpush.msra.mxu0 0.0
  %1194 = vmatpush.msra.mxu0 0.0
  %1195 = vmatpush.msra.mxu0 0.0
  %1196 = vmatpush.msra.mxu0 0.0
  %1197 = vmatpush.msra.mxu0 0.0
  %1198 = vmatpush.msra.mxu0 0.0
  %1199 = vmatpush.msra.mxu0 %v938
  %1200 = vmatpush.msra.mxu0 %v922
  %1201 = vmatpush.msra.mxu0 %v906
  %1202 = vmatpush.msra.mxu0 %v890
  %1203 = vmatpush.msra.mxu0 %v874
  %1204 = vmatpush.msra.mxu0 %v858
  %1205 = vmatpush.msra.mxu0 %v842
  %1206 = vmatpush.msra.mxu0 %v826
  %1207 = vmatpush.msra.mxu0 %v810
  %1208 = vmatmul.f32.gmra.mxu0 %v950
  %v1209 = vpop.f32.mrf.mxu0
  %v1210 = vadd.f32 %v946, %v1209
  %1211 = vdwg.mxu0
  %1212 = vmatpush.msra.mxu0 0.0
  %1213 = vmatpush.msra.mxu0 0.0
  %1214 = vmatpush.msra.mxu0 0.0
  %1215 = vmatpush.msra.mxu0 0.0
  %1216 = vmatpush.msra.mxu0 0.0
  %1217 = vmatpush.msra.mxu0 0.0
  %1218 = vmatpush.msra.mxu0 0.0
  %1219 = vmatpush.msra.mxu0 %v939
  %1220 = vmatpush.msra.mxu0 %v923
  %1221 = vmatpush.msra.mxu0 %v907
  %1222 = vmatpush.msra.mxu0 %v891
  %1223 = vmatpush.msra.mxu0 %v875
  %1224 = vmatpush.msra.mxu0 %v859
  %1225 = vmatpush.msra.mxu0 %v843
  %1226 = vmatpush.msra.mxu0 %v827
  %1227 = vmatpush.msra.mxu0 %v811
  %1228 = vmatmul.f32.gmra.mxu0 %v950
  %v1229 = vpop.f32.mrf.mxu0
  %v1230 = vadd.f32 %v946, %v1229
  %1231 = vdwg.mxu0
  %1232 = vmatpush.msra.mxu0 0.0
  %1233 = vmatpush.msra.mxu0 0.0
  %1234 = vmatpush.msra.mxu0 0.0
  %1235 = vmatpush.msra.mxu0 0.0
  %1236 = vmatpush.msra.mxu0 0.0
  %1237 = vmatpush.msra.mxu0 0.0
  %1238 = vmatpush.msra.mxu0 0.0
  %1239 = vmatpush.msra.mxu0 %v940
  %1240 = vmatpush.msra.mxu0 %v924
  %1241 = vmatpush.msra.mxu0 %v908
  %1242 = vmatpush.msra.mxu0 %v892
  %1243 = vmatpush.msra.mxu0 %v876
  %1244 = vmatpush.msra.mxu0 %v860
  %1245 = vmatpush.msra.mxu0 %v844
  %1246 = vmatpush.msra.mxu0 %v828
  %1247 = vmatpush.msra.mxu0 %v812
  %1248 = vmatmul.f32.gmra.mxu0 %v950
  %v1249 = vpop.f32.mrf.mxu0
  %v1250 = vadd.f32 %v946, %v1249
  %1251 = vdwg.mxu0
  %1252 = vmatpush.msra.mxu0 0.0
  %1253 = vmatpush.msra.mxu0 0.0
  %1254 = vmatpush.msra.mxu0 0.0
  %1255 = vmatpush.msra.mxu0 0.0
  %1256 = vmatpush.msra.mxu0 0.0
  %1257 = vmatpush.msra.mxu0 0.0
  %1258 = vmatpush.msra.mxu0 0.0
  %1259 = vmatpush.msra.mxu0 %v941
  %1260 = vmatpush.msra.mxu0 %v925
  %1261 = vmatpush.msra.mxu0 %v909
  %1262 = vmatpush.msra.mxu0 %v893
  %1263 = vmatpush.msra.mxu0 %v877
  %1264 = vmatpush.msra.mxu0 %v861
  %1265 = vmatpush.msra.mxu0 %v845
  %1266 = vmatpush.msra.mxu0 %v829
  %1267 = vmatpush.msra.mxu0 %v813
  %1268 = vmatmul.f32.gmra.mxu0 %v950
  %v1269 = vpop.f32.mrf.mxu0
  %v1270 = vadd.f32 %v946, %v1269
  %1271 = vdwg.mxu0
  %v1272 = vmax.f32 %v970, 0.0
  %v1273 = vmax.f32 %v990, 0.0
  %v1274 = vmax.f32 %v1010, 0.0
  %v1275 = vmax.f32 %v1030, 0.0
  %v1276 = vmax.f32 %v1050, 0.0
  %v1277 = vmax.f32 %v1070, 0.0
  %v1278 = vmax.f32 %v1090, 0.0
  %v1279 = vmax.f32 %v1110, 0.0
  %v1280 = vmax.f32 %v1130, 0.0
  %v1281 = vmax.f32 %v1150, 0.0
  %v1282 = vmax.f32 %v1170, 0.0
  %v1283 = vmax.f32 %v1190, 0.0
  %v1284 = vmax.f32 %v1210, 0.0
  %v1285 = vmax.f32 %v1230, 0.0
  %v1286 = vmax.f32 %v1250, 0.0
  %v1287 = vmax.f32 %v1270, 0.0
  %v1290 = vrot.slane %v1273, 7
  %vm1291 = vcmask 1040384
  %v1292 = vsel %vm1291, %v1272, %v1290
  %v1294 = vlaneseq
  %vm1295 = vcmp.ge.s32.totalorder %v1294, 0
  %vm1296 = vcmp.lt.s32.totalorder %v1294, 256
  %vm1297 = vmand %vm1295, %vm1296
  %1298 = vst.msk [vmem:[#allocation3] ss:$8 sm:$0x3] %vm1297, %v1292
  %1299 = vst.msk [vmem:[#allocation3] ss:$8 sm:$0x0] %vm1297, %v1292
  %1300 = vst [vmem:[#allocation1] sm:$0xff] %v1272
  %1301 = vst [vmem:[#allocation1 + $0x9] sm:$0xff] %v1273
  %s1302 = scalar_lea.vmem [#allocation1], 1
  %v1303 = vld [vmem:[%s1302] ss:$9 sm:$0xff]
  %s1305 = scalar_lea.vmem [#allocation3], 16
  %1306 = vst.msk [vmem:[%s1305] ss:$8 sm:$0x3] %vm1297, %v1303
  %1307 = vst.msk [vmem:[%s1305] ss:$8 sm:$0x0] %vm1297, %v1303
  %1308 = vst [vmem:[#allocation1] sm:$0xff] %v1272
  %1309 = vst [vmem:[#allocation1 + $0x9] sm:$0xff] %v1273
  %s1310 = scalar_lea.vmem [#allocation1], 2
  %v1311 = vld [vmem:[%s1310] ss:$9 sm:$0xff]
  %s1313 = scalar_lea.vmem [#allocation3], 32
  %1314 = vst.msk [vmem:[%s1313] ss:$8 sm:$0x3] %vm1297, %v1311
  %1315 = vst.msk [vmem:[%s1313] ss:$8 sm:$0x0] %vm1297, %v1311
  %1316 = vst [vmem:[#allocation1] sm:$0xff] %v1272
  %1317 = vst [vmem:[#allocation1 + $0x9] sm:$0xff] %v1273
  %s1318 = scalar_lea.vmem [#allocation1], 3
  %v1319 = vld [vmem:[%s1318] ss:$9 sm:$0xff]
  %s1321 = scalar_lea.vmem [#allocation3], 48
  %1322 = vst.msk [vmem:[%s1321] ss:$8 sm:$0x3] %vm1297, %v1319
  %1323 = vst.msk [vmem:[%s1321] ss:$8 sm:$0x0] %vm1297, %v1319
  %1324 = vst [vmem:[#allocation1] sm:$0xff] %v1272
  %1325 = vst [vmem:[#allocation1 + $0x9] sm:$0xff] %v1273
  %s1326 = scalar_lea.vmem [#allocation1], 4
  %v1327 = vld [vmem:[%s1326] ss:$9 sm:$0xff]
  %s1329 = scalar_lea.vmem [#allocation3], 64
  %1330 = vst.msk [vmem:[%s1329] ss:$8 sm:$0x3] %vm1297, %v1327
  %1331 = vst.msk [vmem:[%s1329] ss:$8 sm:$0x0] %vm1297, %v1327
  %1332 = vst [vmem:[#allocation1] sm:$0xff] %v1272
  %1333 = vst [vmem:[#allocation1 + $0x9] sm:$0xff] %v1273
  %s1334 = scalar_lea.vmem [#allocation1], 5
  %v1335 = vld [vmem:[%s1334] ss:$9 sm:$0xff]
  %s1337 = scalar_lea.vmem [#allocation3], 80
  %1338 = vst.msk [vmem:[%s1337] ss:$8 sm:$0x3] %vm1297, %v1335
  %1339 = vst.msk [vmem:[%s1337] ss:$8 sm:$0x0] %vm1297, %v1335
  %1340 = vst [vmem:[#allocation1] sm:$0xff] %v1272
  %1341 = vst [vmem:[#allocation1 + $0x9] sm:$0xff] %v1273
  %s1342 = scalar_lea.vmem [#allocation1], 6
  %v1343 = vld [vmem:[%s1342] ss:$9 sm:$0xff]
  %s1345 = scalar_lea.vmem [#allocation3], 96
  %1346 = vst.msk [vmem:[%s1345] ss:$8 sm:$0x3] %vm1297, %v1343
  %1347 = vst.msk [vmem:[%s1345] ss:$8 sm:$0x0] %vm1297, %v1343
  %1348 = vst [vmem:[#allocation1] sm:$0xff] %v1272
  %1349 = vst [vmem:[#allocation1 + $0x9] sm:$0xff] %v1273
  %s1350 = scalar_lea.vmem [#allocation1], 7
  %v1351 = vld [vmem:[%s1350] ss:$9 sm:$0xff]
  %s1353 = scalar_lea.vmem [#allocation3], 112
  %1354 = vst.msk [vmem:[%s1353] ss:$8 sm:$0x3] %vm1297, %v1351
  %1355 = vst.msk [vmem:[%s1353] ss:$8 sm:$0x0] %vm1297, %v1351
  %v1358 = vrot.slane %v1275, 7
  %v1359 = vsel %vm1291, %v1274, %v1358
  %s1361 = scalar_lea.vmem [#allocation3], 1
  %1362 = vst.msk [vmem:[%s1361] ss:$8 sm:$0x3] %vm1297, %v1359
  %1363 = vst.msk [vmem:[%s1361] ss:$8 sm:$0x0] %vm1297, %v1359
  %1364 = vst [vmem:[#allocation1] sm:$0xff] %v1274
  %1365 = vst [vmem:[#allocation1 + $0x9] sm:$0xff] %v1275
  %s1366 = scalar_lea.vmem [#allocation1], 1
  %v1367 = vld [vmem:[%s1366] ss:$9 sm:$0xff]
  %s1369 = scalar_lea.vmem [#allocation3], 17
  %1370 = vst.msk [vmem:[%s1369] ss:$8 sm:$0x3] %vm1297, %v1367
  %1371 = vst.msk [vmem:[%s1369] ss:$8 sm:$0x0] %vm1297, %v1367
  %1372 = vst [vmem:[#allocation1] sm:$0xff] %v1274
  %1373 = vst [vmem:[#allocation1 + $0x9] sm:$0xff] %v1275
  %s1374 = scalar_lea.vmem [#allocation1], 2
  %v1375 = vld [vmem:[%s1374] ss:$9 sm:$0xff]
  %s1377 = scalar_lea.vmem [#allocation3], 33
  %1378 = vst.msk [vmem:[%s1377] ss:$8 sm:$0x3] %vm1297, %v1375
  %1379 = vst.msk [vmem:[%s1377] ss:$8 sm:$0x0] %vm1297, %v1375
  %1380 = vst [vmem:[#allocation1] sm:$0xff] %v1274
  %1381 = vst [vmem:[#allocation1 + $0x9] sm:$0xff] %v1275
  %s1382 = scalar_lea.vmem [#allocation1], 3
  %v1383 = vld [vmem:[%s1382] ss:$9 sm:$0xff]
  %s1385 = scalar_lea.vmem [#allocation3], 49
  %1386 = vst.msk [vmem:[%s1385] ss:$8 sm:$0x3] %vm1297, %v1383
  %1387 = vst.msk [vmem:[%s1385] ss:$8 sm:$0x0] %vm1297, %v1383
  %1388 = vst [vmem:[#allocation1] sm:$0xff] %v1274
  %1389 = vst [vmem:[#allocation1 + $0x9] sm:$0xff] %v1275
  %s1390 = scalar_lea.vmem [#allocation1], 4
  %v1391 = vld [vmem:[%s1390] ss:$9 sm:$0xff]
  %s1393 = scalar_lea.vmem [#allocation3], 65
  %1394 = vst.msk [vmem:[%s1393] ss:$8 sm:$0x3] %vm1297, %v1391
  %1395 = vst.msk [vmem:[%s1393] ss:$8 sm:$0x0] %vm1297, %v1391
  %1396 = vst [vmem:[#allocation1] sm:$0xff] %v1274
  %1397 = vst [vmem:[#allocation1 + $0x9] sm:$0xff] %v1275
  %s1398 = scalar_lea.vmem [#allocation1], 5
  %v1399 = vld [vmem:[%s1398] ss:$9 sm:$0xff]
  %s1401 = scalar_lea.vmem [#allocation3], 81
  %1402 = vst.msk [vmem:[%s1401] ss:$8 sm:$0x3] %vm1297, %v1399
  %1403 = vst.msk [vmem:[%s1401] ss:$8 sm:$0x0] %vm1297, %v1399
  %1404 = vst [vmem:[#allocation1] sm:$0xff] %v1274
  %1405 = vst [vmem:[#allocation1 + $0x9] sm:$0xff] %v1275
  %s1406 = scalar_lea.vmem [#allocation1], 6
  %v1407 = vld [vmem:[%s1406] ss:$9 sm:$0xff]
  %s1409 = scalar_lea.vmem [#allocation3], 97
  %1410 = vst.msk [vmem:[%s1409] ss:$8 sm:$0x3] %vm1297, %v1407
  %1411 = vst.msk [vmem:[%s1409] ss:$8 sm:$0x0] %vm1297, %v1407
  %1412 = vst [vmem:[#allocation1] sm:$0xff] %v1274
  %1413 = vst [vmem:[#allocation1 + $0x9] sm:$0xff] %v1275
  %s1414 = scalar_lea.vmem [#allocation1], 7
  %v1415 = vld [vmem:[%s1414] ss:$9 sm:$0xff]
  %s1417 = scalar_lea.vmem [#allocation3], 113
  %1418 = vst.msk [vmem:[%s1417] ss:$8 sm:$0x3] %vm1297, %v1415
  %1419 = vst.msk [vmem:[%s1417] ss:$8 sm:$0x0] %vm1297, %v1415
  %v1422 = vrot.slane %v1277, 7
  %v1423 = vsel %vm1291, %v1276, %v1422
  %s1425 = scalar_lea.vmem [#allocation3], 2
  %1426 = vst.msk [vmem:[%s1425] ss:$8 sm:$0x3] %vm1297, %v1423
  %1427 = vst.msk [vmem:[%s1425] ss:$8 sm:$0x0] %vm1297, %v1423
  %1428 = vst [vmem:[#allocation1] sm:$0xff] %v1276
  %1429 = vst [vmem:[#allocation1 + $0x9] sm:$0xff] %v1277
  %s1430 = scalar_lea.vmem [#allocation1], 1
  %v1431 = vld [vmem:[%s1430] ss:$9 sm:$0xff]
  %s1433 = scalar_lea.vmem [#allocation3], 18
  %1434 = vst.msk [vmem:[%s1433] ss:$8 sm:$0x3] %vm1297, %v1431
  %1435 = vst.msk [vmem:[%s1433] ss:$8 sm:$0x0] %vm1297, %v1431
  %1436 = vst [vmem:[#allocation1] sm:$0xff] %v1276
  %1437 = vst [vmem:[#allocation1 + $0x9] sm:$0xff] %v1277
  %s1438 = scalar_lea.vmem [#allocation1], 2
  %v1439 = vld [vmem:[%s1438] ss:$9 sm:$0xff]
  %s1441 = scalar_lea.vmem [#allocation3], 34
  %1442 = vst.msk [vmem:[%s1441] ss:$8 sm:$0x3] %vm1297, %v1439
  %1443 = vst.msk [vmem:[%s1441] ss:$8 sm:$0x0] %vm1297, %v1439
  %1444 = vst [vmem:[#allocation1] sm:$0xff] %v1276
  %1445 = vst [vmem:[#allocation1 + $0x9] sm:$0xff] %v1277
  %s1446 = scalar_lea.vmem [#allocation1], 3
  %v1447 = vld [vmem:[%s1446] ss:$9 sm:$0xff]
  %s1449 = scalar_lea.vmem [#allocation3], 50
  %1450 = vst.msk [vmem:[%s1449] ss:$8 sm:$0x3] %vm1297, %v1447
  %1451 = vst.msk [vmem:[%s1449] ss:$8 sm:$0x0] %vm1297, %v1447
  %1452 = vst [vmem:[#allocation1] sm:$0xff] %v1276
  %1453 = vst [vmem:[#allocation1 + $0x9] sm:$0xff] %v1277
  %s1454 = scalar_lea.vmem [#allocation1], 4
  %v1455 = vld [vmem:[%s1454] ss:$9 sm:$0xff]
  %s1457 = scalar_lea.vmem [#allocation3], 66
  %1458 = vst.msk [vmem:[%s1457] ss:$8 sm:$0x3] %vm1297, %v1455
  %1459 = vst.msk [vmem:[%s1457] ss:$8 sm:$0x0] %vm1297, %v1455
  %1460 = vst [vmem:[#allocation1] sm:$0xff] %v1276
  %1461 = vst [vmem:[#allocation1 + $0x9] sm:$0xff] %v1277
  %s1462 = scalar_lea.vmem [#allocation1], 5
  %v1463 = vld [vmem:[%s1462] ss:$9 sm:$0xff]
  %s1465 = scalar_lea.vmem [#allocation3], 82
  %1466 = vst.msk [vmem:[%s1465] ss:$8 sm:$0x3] %vm1297, %v1463
  %1467 = vst.msk [vmem:[%s1465] ss:$8 sm:$0x0] %vm1297, %v1463
  %1468 = vst [vmem:[#allocation1] sm:$0xff] %v1276
  %1469 = vst [vmem:[#allocation1 + $0x9] sm:$0xff] %v1277
  %s1470 = scalar_lea.vmem [#allocation1], 6
  %v1471 = vld [vmem:[%s1470] ss:$9 sm:$0xff]
  %s1473 = scalar_lea.vmem [#allocation3], 98
  %1474 = vst.msk [vmem:[%s1473] ss:$8 sm:$0x3] %vm1297, %v1471
  %1475 = vst.msk [vmem:[%s1473] ss:$8 sm:$0x0] %vm1297, %v1471
  %1476 = vst [vmem:[#allocation1] sm:$0xff] %v1276
  %1477 = vst [vmem:[#allocation1 + $0x9] sm:$0xff] %v1277
  %s1478 = scalar_lea.vmem [#allocation1], 7
  %v1479 = vld [vmem:[%s1478] ss:$9 sm:$0xff]
  %s1481 = scalar_lea.vmem [#allocation3], 114
  %1482 = vst.msk [vmem:[%s1481] ss:$8 sm:$0x3] %vm1297, %v1479
  %1483 = vst.msk [vmem:[%s1481] ss:$8 sm:$0x0] %vm1297, %v1479
  %v1486 = vrot.slane %v1279, 7
  %v1487 = vsel %vm1291, %v1278, %v1486
  %s1489 = scalar_lea.vmem [#allocation3], 3
  %1490 = vst.msk [vmem:[%s1489] ss:$8 sm:$0x3] %vm1297, %v1487
  %1491 = vst.msk [vmem:[%s1489] ss:$8 sm:$0x0] %vm1297, %v1487
  %1492 = vst [vmem:[#allocation1] sm:$0xff] %v1278
  %1493 = vst [vmem:[#allocation1 + $0x9] sm:$0xff] %v1279
  %s1494 = scalar_lea.vmem [#allocation1], 1
  %v1495 = vld [vmem:[%s1494] ss:$9 sm:$0xff]
  %s1497 = scalar_lea.vmem [#allocation3], 19
  %1498 = vst.msk [vmem:[%s1497] ss:$8 sm:$0x3] %vm1297, %v1495
  %1499 = vst.msk [vmem:[%s1497] ss:$8 sm:$0x0] %vm1297, %v1495
  %1500 = vst [vmem:[#allocation1] sm:$0xff] %v1278
  %1501 = vst [vmem:[#allocation1 + $0x9] sm:$0xff] %v1279
  %s1502 = scalar_lea.vmem [#allocation1], 2
  %v1503 = vld [vmem:[%s1502] ss:$9 sm:$0xff]
  %s1505 = scalar_lea.vmem [#allocation3], 35
  %1506 = vst.msk [vmem:[%s1505] ss:$8 sm:$0x3] %vm1297, %v1503
  %1507 = vst.msk [vmem:[%s1505] ss:$8 sm:$0x0] %vm1297, %v1503
  %1508 = vst [vmem:[#allocation1] sm:$0xff] %v1278
  %1509 = vst [vmem:[#allocation1 + $0x9] sm:$0xff] %v1279
  %s1510 = scalar_lea.vmem [#allocation1], 3
  %v1511 = vld [vmem:[%s1510] ss:$9 sm:$0xff]
  %s1513 = scalar_lea.vmem [#allocation3], 51
  %1514 = vst.msk [vmem:[%s1513] ss:$8 sm:$0x3] %vm1297, %v1511
  %1515 = vst.msk [vmem:[%s1513] ss:$8 sm:$0x0] %vm1297, %v1511
  %1516 = vst [vmem:[#allocation1] sm:$0xff] %v1278
  %1517 = vst [vmem:[#allocation1 + $0x9] sm:$0xff] %v1279
  %s1518 = scalar_lea.vmem [#allocation1], 4
  %v1519 = vld [vmem:[%s1518] ss:$9 sm:$0xff]
  %s1521 = scalar_lea.vmem [#allocation3], 67
  %1522 = vst.msk [vmem:[%s1521] ss:$8 sm:$0x3] %vm1297, %v1519
  %1523 = vst.msk [vmem:[%s1521] ss:$8 sm:$0x0] %vm1297, %v1519
  %1524 = vst [vmem:[#allocation1] sm:$0xff] %v1278
  %1525 = vst [vmem:[#allocation1 + $0x9] sm:$0xff] %v1279
  %s1526 = scalar_lea.vmem [#allocation1], 5
  %v1527 = vld [vmem:[%s1526] ss:$9 sm:$0xff]
  %s1529 = scalar_lea.vmem [#allocation3], 83
  %1530 = vst.msk [vmem:[%s1529] ss:$8 sm:$0x3] %vm1297, %v1527
  %1531 = vst.msk [vmem:[%s1529] ss:$8 sm:$0x0] %vm1297, %v1527
  %1532 = vst [vmem:[#allocation1] sm:$0xff] %v1278
  %1533 = vst [vmem:[#allocation1 + $0x9] sm:$0xff] %v1279
  %s1534 = scalar_lea.vmem [#allocation1], 6
  %v1535 = vld [vmem:[%s1534] ss:$9 sm:$0xff]
  %s1537 = scalar_lea.vmem [#allocation3], 99
  %1538 = vst.msk [vmem:[%s1537] ss:$8 sm:$0x3] %vm1297, %v1535
  %1539 = vst.msk [vmem:[%s1537] ss:$8 sm:$0x0] %vm1297, %v1535
  %1540 = vst [vmem:[#allocation1] sm:$0xff] %v1278
  %1541 = vst [vmem:[#allocation1 + $0x9] sm:$0xff] %v1279
  %s1542 = scalar_lea.vmem [#allocation1], 7
  %v1543 = vld [vmem:[%s1542] ss:$9 sm:$0xff]
  %s1545 = scalar_lea.vmem [#allocation3], 115
  %1546 = vst.msk [vmem:[%s1545] ss:$8 sm:$0x3] %vm1297, %v1543
  %1547 = vst.msk [vmem:[%s1545] ss:$8 sm:$0x0] %vm1297, %v1543
  %v1550 = vrot.slane %v1281, 7
  %v1551 = vsel %vm1291, %v1280, %v1550
  %s1553 = scalar_lea.vmem [#allocation3], 4
  %1554 = vst.msk [vmem:[%s1553] ss:$8 sm:$0x3] %vm1297, %v1551
  %1555 = vst.msk [vmem:[%s1553] ss:$8 sm:$0x0] %vm1297, %v1551
  %1556 = vst [vmem:[#allocation1] sm:$0xff] %v1280
  %1557 = vst [vmem:[#allocation1 + $0x9] sm:$0xff] %v1281
  %s1558 = scalar_lea.vmem [#allocation1], 1
  %v1559 = vld [vmem:[%s1558] ss:$9 sm:$0xff]
  %s1561 = scalar_lea.vmem [#allocation3], 20
  %1562 = vst.msk [vmem:[%s1561] ss:$8 sm:$0x3] %vm1297, %v1559
  %1563 = vst.msk [vmem:[%s1561] ss:$8 sm:$0x0] %vm1297, %v1559
  %1564 = vst [vmem:[#allocation1] sm:$0xff] %v1280
  %1565 = vst [vmem:[#allocation1 + $0x9] sm:$0xff] %v1281
  %s1566 = scalar_lea.vmem [#allocation1], 2
  %v1567 = vld [vmem:[%s1566] ss:$9 sm:$0xff]
  %s1569 = scalar_lea.vmem [#allocation3], 36
  %1570 = vst.msk [vmem:[%s1569] ss:$8 sm:$0x3] %vm1297, %v1567
  %1571 = vst.msk [vmem:[%s1569] ss:$8 sm:$0x0] %vm1297, %v1567
  %1572 = vst [vmem:[#allocation1] sm:$0xff] %v1280
  %1573 = vst [vmem:[#allocation1 + $0x9] sm:$0xff] %v1281
  %s1574 = scalar_lea.vmem [#allocation1], 3
  %v1575 = vld [vmem:[%s1574] ss:$9 sm:$0xff]
  %s1577 = scalar_lea.vmem [#allocation3], 52
  %1578 = vst.msk [vmem:[%s1577] ss:$8 sm:$0x3] %vm1297, %v1575
  %1579 = vst.msk [vmem:[%s1577] ss:$8 sm:$0x0] %vm1297, %v1575
  %1580 = vst [vmem:[#allocation1] sm:$0xff] %v1280
  %1581 = vst [vmem:[#allocation1 + $0x9] sm:$0xff] %v1281
  %s1582 = scalar_lea.vmem [#allocation1], 4
  %v1583 = vld [vmem:[%s1582] ss:$9 sm:$0xff]
  %s1585 = scalar_lea.vmem [#allocation3], 68
  %1586 = vst.msk [vmem:[%s1585] ss:$8 sm:$0x3] %vm1297, %v1583
  %1587 = vst.msk [vmem:[%s1585] ss:$8 sm:$0x0] %vm1297, %v1583
  %1588 = vst [vmem:[#allocation1] sm:$0xff] %v1280
  %1589 = vst [vmem:[#allocation1 + $0x9] sm:$0xff] %v1281
  %s1590 = scalar_lea.vmem [#allocation1], 5
  %v1591 = vld [vmem:[%s1590] ss:$9 sm:$0xff]
  %s1593 = scalar_lea.vmem [#allocation3], 84
  %1594 = vst.msk [vmem:[%s1593] ss:$8 sm:$0x3] %vm1297, %v1591
  %1595 = vst.msk [vmem:[%s1593] ss:$8 sm:$0x0] %vm1297, %v1591
  %1596 = vst [vmem:[#allocation1] sm:$0xff] %v1280
  %1597 = vst [vmem:[#allocation1 + $0x9] sm:$0xff] %v1281
  %s1598 = scalar_lea.vmem [#allocation1], 6
  %v1599 = vld [vmem:[%s1598] ss:$9 sm:$0xff]
  %s1601 = scalar_lea.vmem [#allocation3], 100
  %1602 = vst.msk [vmem:[%s1601] ss:$8 sm:$0x3] %vm1297, %v1599
  %1603 = vst.msk [vmem:[%s1601] ss:$8 sm:$0x0] %vm1297, %v1599
  %1604 = vst [vmem:[#allocation1] sm:$0xff] %v1280
  %1605 = vst [vmem:[#allocation1 + $0x9] sm:$0xff] %v1281
  %s1606 = scalar_lea.vmem [#allocation1], 7
  %v1607 = vld [vmem:[%s1606] ss:$9 sm:$0xff]
  %s1609 = scalar_lea.vmem [#allocation3], 116
  %1610 = vst.msk [vmem:[%s1609] ss:$8 sm:$0x3] %vm1297, %v1607
  %1611 = vst.msk [vmem:[%s1609] ss:$8 sm:$0x0] %vm1297, %v1607
  %v1614 = vrot.slane %v1283, 7
  %v1615 = vsel %vm1291, %v1282, %v1614
  %s1617 = scalar_lea.vmem [#allocation3], 5
  %1618 = vst.msk [vmem:[%s1617] ss:$8 sm:$0x3] %vm1297, %v1615
  %1619 = vst.msk [vmem:[%s1617] ss:$8 sm:$0x0] %vm1297, %v1615
  %1620 = vst [vmem:[#allocation1] sm:$0xff] %v1282
  %1621 = vst [vmem:[#allocation1 + $0x9] sm:$0xff] %v1283
  %s1622 = scalar_lea.vmem [#allocation1], 1
  %v1623 = vld [vmem:[%s1622] ss:$9 sm:$0xff]
  %s1625 = scalar_lea.vmem [#allocation3], 21
  %1626 = vst.msk [vmem:[%s1625] ss:$8 sm:$0x3] %vm1297, %v1623
  %1627 = vst.msk [vmem:[%s1625] ss:$8 sm:$0x0] %vm1297, %v1623
  %1628 = vst [vmem:[#allocation1] sm:$0xff] %v1282
  %1629 = vst [vmem:[#allocation1 + $0x9] sm:$0xff] %v1283
  %s1630 = scalar_lea.vmem [#allocation1], 2
  %v1631 = vld [vmem:[%s1630] ss:$9 sm:$0xff]
  %s1633 = scalar_lea.vmem [#allocation3], 37
  %1634 = vst.msk [vmem:[%s1633] ss:$8 sm:$0x3] %vm1297, %v1631
  %1635 = vst.msk [vmem:[%s1633] ss:$8 sm:$0x0] %vm1297, %v1631
  %1636 = vst [vmem:[#allocation1] sm:$0xff] %v1282
  %1637 = vst [vmem:[#allocation1 + $0x9] sm:$0xff] %v1283
  %s1638 = scalar_lea.vmem [#allocation1], 3
  %v1639 = vld [vmem:[%s1638] ss:$9 sm:$0xff]
  %s1641 = scalar_lea.vmem [#allocation3], 53
  %1642 = vst.msk [vmem:[%s1641] ss:$8 sm:$0x3] %vm1297, %v1639
  %1643 = vst.msk [vmem:[%s1641] ss:$8 sm:$0x0] %vm1297, %v1639
  %1644 = vst [vmem:[#allocation1] sm:$0xff] %v1282
  %1645 = vst [vmem:[#allocation1 + $0x9] sm:$0xff] %v1283
  %s1646 = scalar_lea.vmem [#allocation1], 4
  %v1647 = vld [vmem:[%s1646] ss:$9 sm:$0xff]
  %s1649 = scalar_lea.vmem [#allocation3], 69
  %1650 = vst.msk [vmem:[%s1649] ss:$8 sm:$0x3] %vm1297, %v1647
  %1651 = vst.msk [vmem:[%s1649] ss:$8 sm:$0x0] %vm1297, %v1647
  %1652 = vst [vmem:[#allocation1] sm:$0xff] %v1282
  %1653 = vst [vmem:[#allocation1 + $0x9] sm:$0xff] %v1283
  %s1654 = scalar_lea.vmem [#allocation1], 5
  %v1655 = vld [vmem:[%s1654] ss:$9 sm:$0xff]
  %s1657 = scalar_lea.vmem [#allocation3], 85
  %1658 = vst.msk [vmem:[%s1657] ss:$8 sm:$0x3] %vm1297, %v1655
  %1659 = vst.msk [vmem:[%s1657] ss:$8 sm:$0x0] %vm1297, %v1655
  %1660 = vst [vmem:[#allocation1] sm:$0xff] %v1282
  %1661 = vst [vmem:[#allocation1 + $0x9] sm:$0xff] %v1283
  %s1662 = scalar_lea.vmem [#allocation1], 6
  %v1663 = vld [vmem:[%s1662] ss:$9 sm:$0xff]
  %s1665 = scalar_lea.vmem [#allocation3], 101
  %1666 = vst.msk [vmem:[%s1665] ss:$8 sm:$0x3] %vm1297, %v1663
  %1667 = vst.msk [vmem:[%s1665] ss:$8 sm:$0x0] %vm1297, %v1663
  %1668 = vst [vmem:[#allocation1] sm:$0xff] %v1282
  %1669 = vst [vmem:[#allocation1 + $0x9] sm:$0xff] %v1283
  %s1670 = scalar_lea.vmem [#allocation1], 7
  %v1671 = vld [vmem:[%s1670] ss:$9 sm:$0xff]
  %s1673 = scalar_lea.vmem [#allocation3], 117
  %1674 = vst.msk [vmem:[%s1673] ss:$8 sm:$0x3] %vm1297, %v1671
  %1675 = vst.msk [vmem:[%s1673] ss:$8 sm:$0x0] %vm1297, %v1671
  %v1678 = vrot.slane %v1285, 7
  %v1679 = vsel %vm1291, %v1284, %v1678
  %s1681 = scalar_lea.vmem [#allocation3], 6
  %1682 = vst.msk [vmem:[%s1681] ss:$8 sm:$0x3] %vm1297, %v1679
  %1683 = vst.msk [vmem:[%s1681] ss:$8 sm:$0x0] %vm1297, %v1679
  %1684 = vst [vmem:[#allocation1] sm:$0xff] %v1284
  %1685 = vst [vmem:[#allocation1 + $0x9] sm:$0xff] %v1285
  %s1686 = scalar_lea.vmem [#allocation1], 1
  %v1687 = vld [vmem:[%s1686] ss:$9 sm:$0xff]
  %s1689 = scalar_lea.vmem [#allocation3], 22
  %1690 = vst.msk [vmem:[%s1689] ss:$8 sm:$0x3] %vm1297, %v1687
  %1691 = vst.msk [vmem:[%s1689] ss:$8 sm:$0x0] %vm1297, %v1687
  %1692 = vst [vmem:[#allocation1] sm:$0xff] %v1284
  %1693 = vst [vmem:[#allocation1 + $0x9] sm:$0xff] %v1285
  %s1694 = scalar_lea.vmem [#allocation1], 2
  %v1695 = vld [vmem:[%s1694] ss:$9 sm:$0xff]
  %s1697 = scalar_lea.vmem [#allocation3], 38
  %1698 = vst.msk [vmem:[%s1697] ss:$8 sm:$0x3] %vm1297, %v1695
  %1699 = vst.msk [vmem:[%s1697] ss:$8 sm:$0x0] %vm1297, %v1695
  %1700 = vst [vmem:[#allocation1] sm:$0xff] %v1284
  %1701 = vst [vmem:[#allocation1 + $0x9] sm:$0xff] %v1285
  %s1702 = scalar_lea.vmem [#allocation1], 3
  %v1703 = vld [vmem:[%s1702] ss:$9 sm:$0xff]
  %s1705 = scalar_lea.vmem [#allocation3], 54
  %1706 = vst.msk [vmem:[%s1705] ss:$8 sm:$0x3] %vm1297, %v1703
  %1707 = vst.msk [vmem:[%s1705] ss:$8 sm:$0x0] %vm1297, %v1703
  %1708 = vst [vmem:[#allocation1] sm:$0xff] %v1284
  %1709 = vst [vmem:[#allocation1 + $0x9] sm:$0xff] %v1285
  %s1710 = scalar_lea.vmem [#allocation1], 4
  %v1711 = vld [vmem:[%s1710] ss:$9 sm:$0xff]
  %s1713 = scalar_lea.vmem [#allocation3], 70
  %1714 = vst.msk [vmem:[%s1713] ss:$8 sm:$0x3] %vm1297, %v1711
  %1715 = vst.msk [vmem:[%s1713] ss:$8 sm:$0x0] %vm1297, %v1711
  %1716 = vst [vmem:[#allocation1] sm:$0xff] %v1284
  %1717 = vst [vmem:[#allocation1 + $0x9] sm:$0xff] %v1285
  %s1718 = scalar_lea.vmem [#allocation1], 5
  %v1719 = vld [vmem:[%s1718] ss:$9 sm:$0xff]
  %s1721 = scalar_lea.vmem [#allocation3], 86
  %1722 = vst.msk [vmem:[%s1721] ss:$8 sm:$0x3] %vm1297, %v1719
  %1723 = vst.msk [vmem:[%s1721] ss:$8 sm:$0x0] %vm1297, %v1719
  %1724 = vst [vmem:[#allocation1] sm:$0xff] %v1284
  %1725 = vst [vmem:[#allocation1 + $0x9] sm:$0xff] %v1285
  %s1726 = scalar_lea.vmem [#allocation1], 6
  %v1727 = vld [vmem:[%s1726] ss:$9 sm:$0xff]
  %s1729 = scalar_lea.vmem [#allocation3], 102
  %1730 = vst.msk [vmem:[%s1729] ss:$8 sm:$0x3] %vm1297, %v1727
  %1731 = vst.msk [vmem:[%s1729] ss:$8 sm:$0x0] %vm1297, %v1727
  %1732 = vst [vmem:[#allocation1] sm:$0xff] %v1284
  %1733 = vst [vmem:[#allocation1 + $0x9] sm:$0xff] %v1285
  %s1734 = scalar_lea.vmem [#allocation1], 7
  %v1735 = vld [vmem:[%s1734] ss:$9 sm:$0xff]
  %s1737 = scalar_lea.vmem [#allocation3], 118
  %1738 = vst.msk [vmem:[%s1737] ss:$8 sm:$0x3] %vm1297, %v1735
  %1739 = vst.msk [vmem:[%s1737] ss:$8 sm:$0x0] %vm1297, %v1735
  %v1742 = vrot.slane %v1287, 7
  %v1743 = vsel %vm1291, %v1286, %v1742
  %s1745 = scalar_lea.vmem [#allocation3], 7
  %1746 = vst.msk [vmem:[%s1745] ss:$8 sm:$0x3] %vm1297, %v1743
  %1747 = vst.msk [vmem:[%s1745] ss:$8 sm:$0x0] %vm1297, %v1743
  %1748 = vst [vmem:[#allocation1] sm:$0xff] %v1286
  %1749 = vst [vmem:[#allocation1 + $0x9] sm:$0xff] %v1287
  %s1750 = scalar_lea.vmem [#allocation1], 1
  %v1751 = vld [vmem:[%s1750] ss:$9 sm:$0xff]
  %s1753 = scalar_lea.vmem [#allocation3], 23
  %1754 = vst.msk [vmem:[%s1753] ss:$8 sm:$0x3] %vm1297, %v1751
  %1755 = vst.msk [vmem:[%s1753] ss:$8 sm:$0x0] %vm1297, %v1751
  %1756 = vst [vmem:[#allocation1] sm:$0xff] %v1286
  %1757 = vst [vmem:[#allocation1 + $0x9] sm:$0xff] %v1287
  %s1758 = scalar_lea.vmem [#allocation1], 2
  %v1759 = vld [vmem:[%s1758] ss:$9 sm:$0xff]
  %s1761 = scalar_lea.vmem [#allocation3], 39
  %1762 = vst.msk [vmem:[%s1761] ss:$8 sm:$0x3] %vm1297, %v1759
  %1763 = vst.msk [vmem:[%s1761] ss:$8 sm:$0x0] %vm1297, %v1759
  %1764 = vst [vmem:[#allocation1] sm:$0xff] %v1286
  %1765 = vst [vmem:[#allocation1 + $0x9] sm:$0xff] %v1287
  %s1766 = scalar_lea.vmem [#allocation1], 3
  %v1767 = vld [vmem:[%s1766] ss:$9 sm:$0xff]
  %s1769 = scalar_lea.vmem [#allocation3], 55
  %1770 = vst.msk [vmem:[%s1769] ss:$8 sm:$0x3] %vm1297, %v1767
  %1771 = vst.msk [vmem:[%s1769] ss:$8 sm:$0x0] %vm1297, %v1767
  %1772 = vst [vmem:[#allocation1] sm:$0xff] %v1286
  %1773 = vst [vmem:[#allocation1 + $0x9] sm:$0xff] %v1287
  %s1774 = scalar_lea.vmem [#allocation1], 4
  %v1775 = vld [vmem:[%s1774] ss:$9 sm:$0xff]
  %s1777 = scalar_lea.vmem [#allocation3], 71
  %1778 = vst.msk [vmem:[%s1777] ss:$8 sm:$0x3] %vm1297, %v1775
  %1779 = vst.msk [vmem:[%s1777] ss:$8 sm:$0x0] %vm1297, %v1775
  %1780 = vst [vmem:[#allocation1] sm:$0xff] %v1286
  %1781 = vst [vmem:[#allocation1 + $0x9] sm:$0xff] %v1287
  %s1782 = scalar_lea.vmem [#allocation1], 5
  %v1783 = vld [vmem:[%s1782] ss:$9 sm:$0xff]
  %s1785 = scalar_lea.vmem [#allocation3], 87
  %1786 = vst.msk [vmem:[%s1785] ss:$8 sm:$0x3] %vm1297, %v1783
  %1787 = vst.msk [vmem:[%s1785] ss:$8 sm:$0x0] %vm1297, %v1783
  %1788 = vst [vmem:[#allocation1] sm:$0xff] %v1286
  %1789 = vst [vmem:[#allocation1 + $0x9] sm:$0xff] %v1287
  %s1790 = scalar_lea.vmem [#allocation1], 6
  %v1791 = vld [vmem:[%s1790] ss:$9 sm:$0xff]
  %s1793 = scalar_lea.vmem [#allocation3], 103
  %1794 = vst.msk [vmem:[%s1793] ss:$8 sm:$0x3] %vm1297, %v1791
  %1795 = vst.msk [vmem:[%s1793] ss:$8 sm:$0x0] %vm1297, %v1791
  %1796 = vst [vmem:[#allocation1] sm:$0xff] %v1286
  %1797 = vst [vmem:[#allocation1 + $0x9] sm:$0xff] %v1287
  %s1798 = scalar_lea.vmem [#allocation1], 7
  %v1799 = vld [vmem:[%s1798] ss:$9 sm:$0xff]
  %s1801 = scalar_lea.vmem [#allocation3], 119
  %1802 = vst.msk [vmem:[%s1801] ss:$8 sm:$0x3] %vm1297, %v1799
  %1803 = vst.msk [vmem:[%s1801] ss:$8 sm:$0x0] %vm1297, %v1799
  %v1804 = vld [vmem:[#allocation3] sm:$0xff]
  %v1805 = vld [vmem:[#allocation3 + $0x8] sm:$0xff]
  %v1806 = vld [vmem:[#allocation3 + $0x10] sm:$0xff]
  %v1807 = vld [vmem:[#allocation3 + $0x18] sm:$0xff]
  %v1808 = vld [vmem:[#allocation3 + $0x20] sm:$0xff]
  %v1809 = vld [vmem:[#allocation3 + $0x28] sm:$0xff]
  %v1810 = vld [vmem:[#allocation3 + $0x30] sm:$0xff]
  %v1811 = vld [vmem:[#allocation3 + $0x38] sm:$0xff]
  %v1812 = vld [vmem:[#allocation3 + $0x40] sm:$0xff]
  %v1813 = vld [vmem:[#allocation3 + $0x48] sm:$0xff]
  %v1814 = vld [vmem:[#allocation3 + $0x50] sm:$0xff]
  %v1815 = vld [vmem:[#allocation3 + $0x58] sm:$0xff]
  %v1816 = vld [vmem:[#allocation3 + $0x60] sm:$0xff]
  %v1817 = vld [vmem:[#allocation3 + $0x68] sm:$0xff]
  %v1818 = vld [vmem:[#allocation3 + $0x70] sm:$0xff]
  %v1819 = vld [vmem:[#allocation3 + $0x78] sm:$0xff]
  %v1820 = vld [vmem:[%s3] sm:$0xff]
  %v1821 = vld [vmem:[%s3 + $0x8] sm:$0xff]
  %v1822 = vld [vmem:[%s3 + $0x10] sm:$0xff]
  %v1823 = vld [vmem:[%s3 + $0x18] sm:$0xff]
  %v1824 = vld [vmem:[%s3 + $0x20] sm:$0xff]
  %v1825 = vld [vmem:[%s3 + $0x28] sm:$0xff]
  %v1826 = vld [vmem:[%s3 + $0x30] sm:$0xff]
  %v1827 = vld [vmem:[%s3 + $0x38] sm:$0xff]
  %v1828 = vld [vmem:[%s3 + $0x40] sm:$0xff]
  %v1829 = vld [vmem:[%s3 + $0x48] sm:$0xff]
  %v1830 = vld [vmem:[%s3 + $0x50] sm:$0xff]
  %v1831 = vld [vmem:[%s3 + $0x58] sm:$0xff]
  %v1832 = vld [vmem:[%s3 + $0x60] sm:$0xff]
  %v1833 = vld [vmem:[%s3 + $0x68] sm:$0xff]
  %v1834 = vld [vmem:[%s3 + $0x70] sm:$0xff]
  %v1835 = vld [vmem:[%s3 + $0x78] sm:$0xff]
  %v1836 = vld [vmem:[%s3 + $0x80] sm:$0xff]
  %v1837 = vld [vmem:[%s3 + $0x88] sm:$0xff]
  %v1838 = vld [vmem:[%s3 + $0x90] sm:$0xff]
  %v1839 = vld [vmem:[%s3 + $0x98] sm:$0xff]
  %v1840 = vld [vmem:[%s3 + $0xa0] sm:$0xff]
  %v1841 = vld [vmem:[%s3 + $0xa8] sm:$0xff]
  %v1842 = vld [vmem:[%s3 + $0xb0] sm:$0xff]
  %v1843 = vld [vmem:[%s3 + $0xb8] sm:$0xff]
  %v1844 = vld [vmem:[%s3 + $0xc0] sm:$0xff]
  %v1845 = vld [vmem:[%s3 + $0xc8] sm:$0xff]
  %v1846 = vld [vmem:[%s3 + $0xd0] sm:$0xff]
  %v1847 = vld [vmem:[%s3 + $0xd8] sm:$0xff]
  %v1848 = vld [vmem:[%s3 + $0xe0] sm:$0xff]
  %v1849 = vld [vmem:[%s3 + $0xe8] sm:$0xff]
  %v1850 = vld [vmem:[%s3 + $0xf0] sm:$0xff]
  %v1851 = vld [vmem:[%s3 + $0xf8] sm:$0xff]
  %v1852 = vld [vmem:[%s3 + $0x100] sm:$0xff]
  %v1853 = vld [vmem:[%s3 + $0x108] sm:$0xff]
  %v1854 = vld [vmem:[%s3 + $0x110] sm:$0xff]
  %v1855 = vld [vmem:[%s3 + $0x118] sm:$0xff]
  %v1856 = vld [vmem:[%s3 + $0x120] sm:$0xff]
  %v1857 = vld [vmem:[%s3 + $0x128] sm:$0xff]
  %v1858 = vld [vmem:[%s3 + $0x130] sm:$0xff]
  %v1859 = vld [vmem:[%s3 + $0x138] sm:$0xff]
  %v1860 = vld [vmem:[%s3 + $0x140] sm:$0xff]
  %v1861 = vld [vmem:[%s3 + $0x148] sm:$0xff]
  %v1862 = vld [vmem:[%s3 + $0x150] sm:$0xff]
  %v1863 = vld [vmem:[%s3 + $0x158] sm:$0xff]
  %v1864 = vld [vmem:[%s3 + $0x160] sm:$0xff]
  %v1865 = vld [vmem:[%s3 + $0x168] sm:$0xff]
  %v1866 = vld [vmem:[%s3 + $0x170] sm:$0xff]
  %v1867 = vld [vmem:[%s3 + $0x178] sm:$0xff]
  %v1868 = vld [vmem:[%s3 + $0x180] sm:$0xff]
  %v1869 = vld [vmem:[%s3 + $0x188] sm:$0xff]
  %v1870 = vld [vmem:[%s3 + $0x190] sm:$0xff]
  %v1871 = vld [vmem:[%s3 + $0x198] sm:$0xff]
  %v1872 = vld [vmem:[%s3 + $0x1a0] sm:$0xff]
  %v1873 = vld [vmem:[%s3 + $0x1a8] sm:$0xff]
  %v1874 = vld [vmem:[%s3 + $0x1b0] sm:$0xff]
  %v1875 = vld [vmem:[%s3 + $0x1b8] sm:$0xff]
  %v1876 = vld [vmem:[%s3 + $0x1c0] sm:$0xff]
  %v1877 = vld [vmem:[%s3 + $0x1c8] sm:$0xff]
  %v1878 = vld [vmem:[%s3 + $0x1d0] sm:$0xff]
  %v1879 = vld [vmem:[%s3 + $0x1d8] sm:$0xff]
  %v1880 = vld [vmem:[%s3 + $0x1e0] sm:$0xff]
  %v1881 = vld [vmem:[%s3 + $0x1e8] sm:$0xff]
  %v1882 = vld [vmem:[%s3 + $0x1f0] sm:$0xff]
  %v1883 = vld [vmem:[%s3 + $0x1f8] sm:$0xff]
  %v1884 = vld [vmem:[%s3 + $0x200] sm:$0xff]
  %v1885 = vld [vmem:[%s3 + $0x208] sm:$0xff]
  %v1886 = vld [vmem:[%s3 + $0x210] sm:$0xff]
  %v1887 = vld [vmem:[%s3 + $0x218] sm:$0xff]
  %v1888 = vld [vmem:[%s3 + $0x220] sm:$0xff]
  %v1889 = vld [vmem:[%s3 + $0x228] sm:$0xff]
  %v1890 = vld [vmem:[%s3 + $0x230] sm:$0xff]
  %v1891 = vld [vmem:[%s3 + $0x238] sm:$0xff]
  %v1892 = vld [vmem:[%s3 + $0x240] sm:$0xff]
  %v1893 = vld [vmem:[%s3 + $0x248] sm:$0xff]
  %v1894 = vld [vmem:[%s3 + $0x250] sm:$0xff]
  %v1895 = vld [vmem:[%s3 + $0x258] sm:$0xff]
  %v1896 = vld [vmem:[%s3 + $0x260] sm:$0xff]
  %v1897 = vld [vmem:[%s3 + $0x268] sm:$0xff]
  %v1898 = vld [vmem:[%s3 + $0x270] sm:$0xff]
  %v1899 = vld [vmem:[%s3 + $0x278] sm:$0xff]
  %v1900 = vld [vmem:[%s3 + $0x280] sm:$0xff]
  %v1901 = vld [vmem:[%s3 + $0x288] sm:$0xff]
  %v1902 = vld [vmem:[%s3 + $0x290] sm:$0xff]
  %v1903 = vld [vmem:[%s3 + $0x298] sm:$0xff]
  %v1904 = vld [vmem:[%s3 + $0x2a0] sm:$0xff]
  %v1905 = vld [vmem:[%s3 + $0x2a8] sm:$0xff]
  %v1906 = vld [vmem:[%s3 + $0x2b0] sm:$0xff]
  %v1907 = vld [vmem:[%s3 + $0x2b8] sm:$0xff]
  %v1908 = vld [vmem:[%s3 + $0x2c0] sm:$0xff]
  %v1909 = vld [vmem:[%s3 + $0x2c8] sm:$0xff]
  %v1910 = vld [vmem:[%s3 + $0x2d0] sm:$0xff]
  %v1911 = vld [vmem:[%s3 + $0x2d8] sm:$0xff]
  %v1912 = vld [vmem:[%s3 + $0x2e0] sm:$0xff]
  %v1913 = vld [vmem:[%s3 + $0x2e8] sm:$0xff]
  %v1914 = vld [vmem:[%s3 + $0x2f0] sm:$0xff]
  %v1915 = vld [vmem:[%s3 + $0x2f8] sm:$0xff]
  %v1916 = vld [vmem:[%s3 + $0x300] sm:$0xff]
  %v1917 = vld [vmem:[%s3 + $0x308] sm:$0xff]
  %v1918 = vld [vmem:[%s3 + $0x310] sm:$0xff]
  %v1919 = vld [vmem:[%s3 + $0x318] sm:$0xff]
  %v1920 = vld [vmem:[%s3 + $0x320] sm:$0xff]
  %v1921 = vld [vmem:[%s3 + $0x328] sm:$0xff]
  %v1922 = vld [vmem:[%s3 + $0x330] sm:$0xff]
  %v1923 = vld [vmem:[%s3 + $0x338] sm:$0xff]
  %v1924 = vld [vmem:[%s3 + $0x340] sm:$0xff]
  %v1925 = vld [vmem:[%s3 + $0x348] sm:$0xff]
  %v1926 = vld [vmem:[%s3 + $0x350] sm:$0xff]
  %v1927 = vld [vmem:[%s3 + $0x358] sm:$0xff]
  %v1928 = vld [vmem:[%s3 + $0x360] sm:$0xff]
  %v1929 = vld [vmem:[%s3 + $0x368] sm:$0xff]
  %v1930 = vld [vmem:[%s3 + $0x370] sm:$0xff]
  %v1931 = vld [vmem:[%s3 + $0x378] sm:$0xff]
  %v1932 = vld [vmem:[%s3 + $0x380] sm:$0xff]
  %v1933 = vld [vmem:[%s3 + $0x388] sm:$0xff]
  %v1934 = vld [vmem:[%s3 + $0x390] sm:$0xff]
  %v1935 = vld [vmem:[%s3 + $0x398] sm:$0xff]
  %v1936 = vld [vmem:[%s3 + $0x3a0] sm:$0xff]
  %v1937 = vld [vmem:[%s3 + $0x3a8] sm:$0xff]
  %v1938 = vld [vmem:[%s3 + $0x3b0] sm:$0xff]
  %v1939 = vld [vmem:[%s3 + $0x3b8] sm:$0xff]
  %v1940 = vld [vmem:[%s3 + $0x3c0] sm:$0xff]
  %v1941 = vld [vmem:[%s3 + $0x3c8] sm:$0xff]
  %v1942 = vld [vmem:[%s3 + $0x3d0] sm:$0xff]
  %v1943 = vld [vmem:[%s3 + $0x3d8] sm:$0xff]
  %v1944 = vld [vmem:[%s3 + $0x3e0] sm:$0xff]
  %v1945 = vld [vmem:[%s3 + $0x3e8] sm:$0xff]
  %v1946 = vld [vmem:[%s3 + $0x3f0] sm:$0xff]
  %v1947 = vld [vmem:[%s3 + $0x3f8] sm:$0xff]
  %v1948 = vld [vmem:[%s3 + $0x400] sm:$0xff]
  %v1949 = vld [vmem:[%s3 + $0x408] sm:$0xff]
  %v1950 = vld [vmem:[%s3 + $0x410] sm:$0xff]
  %v1951 = vld [vmem:[%s3 + $0x418] sm:$0xff]
  %v1952 = vld [vmem:[%s3 + $0x420] sm:$0xff]
  %v1953 = vld [vmem:[%s3 + $0x428] sm:$0xff]
  %v1954 = vld [vmem:[%s3 + $0x430] sm:$0xff]
  %v1955 = vld [vmem:[%s3 + $0x438] sm:$0xff]
  %v1956 = vld [vmem:[%s3 + $0x440] sm:$0xff]
  %v1957 = vld [vmem:[%s3 + $0x448] sm:$0xff]
  %v1958 = vld [vmem:[%s3 + $0x450] sm:$0xff]
  %v1959 = vld [vmem:[%s3 + $0x458] sm:$0xff]
  %v1960 = vld [vmem:[%s3 + $0x460] sm:$0xff]
  %v1961 = vld [vmem:[%s3 + $0x468] sm:$0xff]
  %v1962 = vld [vmem:[%s3 + $0x470] sm:$0xff]
  %v1963 = vld [vmem:[%s3 + $0x478] sm:$0xff]
  %v1964 = vld [vmem:[%s3 + $0x480] sm:$0xff]
  %v1965 = vld [vmem:[%s3 + $0x488] sm:$0xff]
  %v1966 = vld [vmem:[%s3 + $0x490] sm:$0xff]
  %v1967 = vld [vmem:[%s3 + $0x498] sm:$0xff]
  %v1968 = vld [vmem:[%s3 + $0x4a0] sm:$0xff]
  %v1969 = vld [vmem:[%s3 + $0x4a8] sm:$0xff]
  %v1970 = vld [vmem:[%s3 + $0x4b0] sm:$0xff]
  %v1971 = vld [vmem:[%s3 + $0x4b8] sm:$0xff]
  %v1972 = vld [vmem:[%s3 + $0x4c0] sm:$0xff]
  %v1973 = vld [vmem:[%s3 + $0x4c8] sm:$0xff]
  %v1974 = vld [vmem:[%s3 + $0x4d0] sm:$0xff]
  %v1975 = vld [vmem:[%s3 + $0x4d8] sm:$0xff]
  %v1976 = vld [vmem:[%s3 + $0x4e0] sm:$0xff]
  %v1977 = vld [vmem:[%s3 + $0x4e8] sm:$0xff]
  %v1978 = vld [vmem:[%s3 + $0x4f0] sm:$0xff]
  %v1979 = vld [vmem:[%s3 + $0x4f8] sm:$0xff]
  %v1980 = vld [vmem:[%s3 + $0x500] sm:$0xff]
  %v1981 = vld [vmem:[%s3 + $0x508] sm:$0xff]
  %v1982 = vld [vmem:[%s3 + $0x510] sm:$0xff]
  %v1983 = vld [vmem:[%s3 + $0x518] sm:$0xff]
  %v1984 = vld [vmem:[%s3 + $0x520] sm:$0xff]
  %v1985 = vld [vmem:[%s3 + $0x528] sm:$0xff]
  %v1986 = vld [vmem:[%s3 + $0x530] sm:$0xff]
  %v1987 = vld [vmem:[%s3 + $0x538] sm:$0xff]
  %v1988 = vld [vmem:[%s3 + $0x540] sm:$0xff]
  %v1989 = vld [vmem:[%s3 + $0x548] sm:$0xff]
  %v1990 = vld [vmem:[%s3 + $0x550] sm:$0xff]
  %v1991 = vld [vmem:[%s3 + $0x558] sm:$0xff]
  %v1992 = vld [vmem:[%s3 + $0x560] sm:$0xff]
  %v1993 = vld [vmem:[%s3 + $0x568] sm:$0xff]
  %v1994 = vld [vmem:[%s3 + $0x570] sm:$0xff]
  %v1995 = vld [vmem:[%s3 + $0x578] sm:$0xff]
  %v1996 = vld [vmem:[%s3 + $0x580] sm:$0xff]
  %v1997 = vld [vmem:[%s3 + $0x588] sm:$0xff]
  %v1998 = vld [vmem:[%s3 + $0x590] sm:$0xff]
  %v1999 = vld [vmem:[%s3 + $0x598] sm:$0xff]
  %v2000 = vld [vmem:[%s3 + $0x5a0] sm:$0xff]
  %v2001 = vld [vmem:[%s3 + $0x5a8] sm:$0xff]
  %v2002 = vld [vmem:[%s3 + $0x5b0] sm:$0xff]
  %v2003 = vld [vmem:[%s3 + $0x5b8] sm:$0xff]
  %v2004 = vld [vmem:[%s3 + $0x5c0] sm:$0xff]
  %v2005 = vld [vmem:[%s3 + $0x5c8] sm:$0xff]
  %v2006 = vld [vmem:[%s3 + $0x5d0] sm:$0xff]
  %v2007 = vld [vmem:[%s3 + $0x5d8] sm:$0xff]
  %v2008 = vld [vmem:[%s3 + $0x5e0] sm:$0xff]
  %v2009 = vld [vmem:[%s3 + $0x5e8] sm:$0xff]
  %v2010 = vld [vmem:[%s3 + $0x5f0] sm:$0xff]
  %v2011 = vld [vmem:[%s3 + $0x5f8] sm:$0xff]
  %v2012 = vld [vmem:[%s3 + $0x600] sm:$0xff]
  %v2013 = vld [vmem:[%s3 + $0x608] sm:$0xff]
  %v2014 = vld [vmem:[%s3 + $0x610] sm:$0xff]
  %v2015 = vld [vmem:[%s3 + $0x618] sm:$0xff]
  %v2016 = vld [vmem:[%s3 + $0x620] sm:$0xff]
  %v2017 = vld [vmem:[%s3 + $0x628] sm:$0xff]
  %v2018 = vld [vmem:[%s3 + $0x630] sm:$0xff]
  %v2019 = vld [vmem:[%s3 + $0x638] sm:$0xff]
  %v2020 = vld [vmem:[%s3 + $0x640] sm:$0xff]
  %v2021 = vld [vmem:[%s3 + $0x648] sm:$0xff]
  %v2022 = vld [vmem:[%s3 + $0x650] sm:$0xff]
  %v2023 = vld [vmem:[%s3 + $0x658] sm:$0xff]
  %v2024 = vld [vmem:[%s3 + $0x660] sm:$0xff]
  %v2025 = vld [vmem:[%s3 + $0x668] sm:$0xff]
  %v2026 = vld [vmem:[%s3 + $0x670] sm:$0xff]
  %v2027 = vld [vmem:[%s3 + $0x678] sm:$0xff]
  %v2028 = vld [vmem:[%s3 + $0x680] sm:$0xff]
  %v2029 = vld [vmem:[%s3 + $0x688] sm:$0xff]
  %v2030 = vld [vmem:[%s3 + $0x690] sm:$0xff]
  %v2031 = vld [vmem:[%s3 + $0x698] sm:$0xff]
  %v2032 = vld [vmem:[%s3 + $0x6a0] sm:$0xff]
  %v2033 = vld [vmem:[%s3 + $0x6a8] sm:$0xff]
  %v2034 = vld [vmem:[%s3 + $0x6b0] sm:$0xff]
  %v2035 = vld [vmem:[%s3 + $0x6b8] sm:$0xff]
  %v2036 = vld [vmem:[%s3 + $0x6c0] sm:$0xff]
  %v2037 = vld [vmem:[%s3 + $0x6c8] sm:$0xff]
  %v2038 = vld [vmem:[%s3 + $0x6d0] sm:$0xff]
  %v2039 = vld [vmem:[%s3 + $0x6d8] sm:$0xff]
  %v2040 = vld [vmem:[%s3 + $0x6e0] sm:$0xff]
  %v2041 = vld [vmem:[%s3 + $0x6e8] sm:$0xff]
  %v2042 = vld [vmem:[%s3 + $0x6f0] sm:$0xff]
  %v2043 = vld [vmem:[%s3 + $0x6f8] sm:$0xff]
  %v2044 = vld [vmem:[%s3 + $0x700] sm:$0xff]
  %v2045 = vld [vmem:[%s3 + $0x708] sm:$0xff]
  %v2046 = vld [vmem:[%s3 + $0x710] sm:$0xff]
  %v2047 = vld [vmem:[%s3 + $0x718] sm:$0xff]
  %v2048 = vld [vmem:[%s3 + $0x720] sm:$0xff]
  %v2049 = vld [vmem:[%s3 + $0x728] sm:$0xff]
  %v2050 = vld [vmem:[%s3 + $0x730] sm:$0xff]
  %v2051 = vld [vmem:[%s3 + $0x738] sm:$0xff]
  %v2052 = vld [vmem:[%s3 + $0x740] sm:$0xff]
  %v2053 = vld [vmem:[%s3 + $0x748] sm:$0xff]
  %v2054 = vld [vmem:[%s3 + $0x750] sm:$0xff]
  %v2055 = vld [vmem:[%s3 + $0x758] sm:$0xff]
  %v2056 = vld [vmem:[%s3 + $0x760] sm:$0xff]
  %v2057 = vld [vmem:[%s3 + $0x768] sm:$0xff]
  %v2058 = vld [vmem:[%s3 + $0x770] sm:$0xff]
  %v2059 = vld [vmem:[%s3 + $0x778] sm:$0xff]
  %v2060 = vld [vmem:[%s3 + $0x780] sm:$0xff]
  %v2061 = vld [vmem:[%s3 + $0x788] sm:$0xff]
  %v2062 = vld [vmem:[%s3 + $0x790] sm:$0xff]
  %v2063 = vld [vmem:[%s3 + $0x798] sm:$0xff]
  %v2064 = vld [vmem:[%s3 + $0x7a0] sm:$0xff]
  %v2065 = vld [vmem:[%s3 + $0x7a8] sm:$0xff]
  %v2066 = vld [vmem:[%s3 + $0x7b0] sm:$0xff]
  %v2067 = vld [vmem:[%s3 + $0x7b8] sm:$0xff]
  %v2068 = vld [vmem:[%s3 + $0x7c0] sm:$0xff]
  %v2069 = vld [vmem:[%s3 + $0x7c8] sm:$0xff]
  %v2070 = vld [vmem:[%s3 + $0x7d0] sm:$0xff]
  %v2071 = vld [vmem:[%s3 + $0x7d8] sm:$0xff]
  %v2072 = vld [vmem:[%s3 + $0x7e0] sm:$0xff]
  %v2073 = vld [vmem:[%s3 + $0x7e8] sm:$0xff]
  %v2074 = vld [vmem:[%s3 + $0x7f0] sm:$0xff]
  %v2075 = vld [vmem:[%s3 + $0x7f8] sm:$0xff]
  %v2076 = vld [vmem:[%s4] sm:$0x1]
  %v2078 = vperm.slane %v2076, 0
  %2080 = vmatpush.msra.mxu0 %v1835
  %2081 = vmatpush.msra.mxu0 %v1834
  %2082 = vmatpush.msra.mxu0 %v1833
  %2083 = vmatpush.msra.mxu0 %v1832
  %2084 = vmatpush.msra.mxu0 %v1831
  %2085 = vmatpush.msra.mxu0 %v1830
  %2086 = vmatpush.msra.mxu0 %v1829
  %2087 = vmatpush.msra.mxu0 %v1828
  %2088 = vmatpush.msra.mxu0 %v1827
  %2089 = vmatpush.msra.mxu0 %v1826
  %2090 = vmatpush.msra.mxu0 %v1825
  %2091 = vmatpush.msra.mxu0 %v1824
  %2092 = vmatpush.msra.mxu0 %v1823
  %2093 = vmatpush.msra.mxu0 %v1822
  %2094 = vmatpush.msra.mxu0 %v1821
  %2095 = vmatpush.msra.mxu0 %v1820
  %2096 = vmatmul.f32.gmra.mxu0 %v1804
  %v2097 = vpop.f32.mrf.mxu0
  %v2098 = vadd.f32 %v2078, %v2097
  %2099 = vdwg.mxu0
  %2100 = vmatpush.msra.mxu0 %v1851
  %2101 = vmatpush.msra.mxu0 %v1850
  %2102 = vmatpush.msra.mxu0 %v1849
  %2103 = vmatpush.msra.mxu0 %v1848
  %2104 = vmatpush.msra.mxu0 %v1847
  %2105 = vmatpush.msra.mxu0 %v1846
  %2106 = vmatpush.msra.mxu0 %v1845
  %2107 = vmatpush.msra.mxu0 %v1844
  %2108 = vmatpush.msra.mxu0 %v1843
  %2109 = vmatpush.msra.mxu0 %v1842
  %2110 = vmatpush.msra.mxu0 %v1841
  %2111 = vmatpush.msra.mxu0 %v1840
  %2112 = vmatpush.msra.mxu0 %v1839
  %2113 = vmatpush.msra.mxu0 %v1838
  %2114 = vmatpush.msra.mxu0 %v1837
  %2115 = vmatpush.msra.mxu0 %v1836
  %2116 = vmatmul.f32.gmra.mxu0 %v1805
  %v2117 = vpop.f32.mrf.mxu0
  %v2118 = vadd.f32 %v2098, %v2117
  %2119 = vdwg.mxu0
  %2120 = vmatpush.msra.mxu0 %v1867
  %2121 = vmatpush.msra.mxu0 %v1866
  %2122 = vmatpush.msra.mxu0 %v1865
  %2123 = vmatpush.msra.mxu0 %v1864
  %2124 = vmatpush.msra.mxu0 %v1863
  %2125 = vmatpush.msra.mxu0 %v1862
  %2126 = vmatpush.msra.mxu0 %v1861
  %2127 = vmatpush.msra.mxu0 %v1860
  %2128 = vmatpush.msra.mxu0 %v1859
  %2129 = vmatpush.msra.mxu0 %v1858
  %2130 = vmatpush.msra.mxu0 %v1857
  %2131 = vmatpush.msra.mxu0 %v1856
  %2132 = vmatpush.msra.mxu0 %v1855
  %2133 = vmatpush.msra.mxu0 %v1854
  %2134 = vmatpush.msra.mxu0 %v1853
  %2135 = vmatpush.msra.mxu0 %v1852
  %2136 = vmatmul.f32.gmra.mxu0 %v1806
  %v2137 = vpop.f32.mrf.mxu0
  %v2138 = vadd.f32 %v2118, %v2137
  %2139 = vdwg.mxu0
  %2140 = vmatpush.msra.mxu0 %v1883
  %2141 = vmatpush.msra.mxu0 %v1882
  %2142 = vmatpush.msra.mxu0 %v1881
  %2143 = vmatpush.msra.mxu0 %v1880
  %2144 = vmatpush.msra.mxu0 %v1879
  %2145 = vmatpush.msra.mxu0 %v1878
  %2146 = vmatpush.msra.mxu0 %v1877
  %2147 = vmatpush.msra.mxu0 %v1876
  %2148 = vmatpush.msra.mxu0 %v1875
  %2149 = vmatpush.msra.mxu0 %v1874
  %2150 = vmatpush.msra.mxu0 %v1873
  %2151 = vmatpush.msra.mxu0 %v1872
  %2152 = vmatpush.msra.mxu0 %v1871
  %2153 = vmatpush.msra.mxu0 %v1870
  %2154 = vmatpush.msra.mxu0 %v1869
  %2155 = vmatpush.msra.mxu0 %v1868
  %2156 = vmatmul.f32.gmra.mxu0 %v1807
  %v2157 = vpop.f32.mrf.mxu0
  %v2158 = vadd.f32 %v2138, %v2157
  %2159 = vdwg.mxu0
  %2160 = vmatpush.msra.mxu0 %v1899
  %2161 = vmatpush.msra.mxu0 %v1898
  %2162 = vmatpush.msra.mxu0 %v1897
  %2163 = vmatpush.msra.mxu0 %v1896
  %2164 = vmatpush.msra.mxu0 %v1895
  %2165 = vmatpush.msra.mxu0 %v1894
  %2166 = vmatpush.msra.mxu0 %v1893
  %2167 = vmatpush.msra.mxu0 %v1892
  %2168 = vmatpush.msra.mxu0 %v1891
  %2169 = vmatpush.msra.mxu0 %v1890
  %2170 = vmatpush.msra.mxu0 %v1889
  %2171 = vmatpush.msra.mxu0 %v1888
  %2172 = vmatpush.msra.mxu0 %v1887
  %2173 = vmatpush.msra.mxu0 %v1886
  %2174 = vmatpush.msra.mxu0 %v1885
  %2175 = vmatpush.msra.mxu0 %v1884
  %2176 = vmatmul.f32.gmra.mxu0 %v1808
  %v2177 = vpop.f32.mrf.mxu0
  %v2178 = vadd.f32 %v2158, %v2177
  %2179 = vdwg.mxu0
  %2180 = vmatpush.msra.mxu0 %v1915
  %2181 = vmatpush.msra.mxu0 %v1914
  %2182 = vmatpush.msra.mxu0 %v1913
  %2183 = vmatpush.msra.mxu0 %v1912
  %2184 = vmatpush.msra.mxu0 %v1911
  %2185 = vmatpush.msra.mxu0 %v1910
  %2186 = vmatpush.msra.mxu0 %v1909
  %2187 = vmatpush.msra.mxu0 %v1908
  %2188 = vmatpush.msra.mxu0 %v1907
  %2189 = vmatpush.msra.mxu0 %v1906
  %2190 = vmatpush.msra.mxu0 %v1905
  %2191 = vmatpush.msra.mxu0 %v1904
  %2192 = vmatpush.msra.mxu0 %v1903
  %2193 = vmatpush.msra.mxu0 %v1902
  %2194 = vmatpush.msra.mxu0 %v1901
  %2195 = vmatpush.msra.mxu0 %v1900
  %2196 = vmatmul.f32.gmra.mxu0 %v1809
  %v2197 = vpop.f32.mrf.mxu0
  %v2198 = vadd.f32 %v2178, %v2197
  %2199 = vdwg.mxu0
  %2200 = vmatpush.msra.mxu0 %v1931
  %2201 = vmatpush.msra.mxu0 %v1930
  %2202 = vmatpush.msra.mxu0 %v1929
  %2203 = vmatpush.msra.mxu0 %v1928
  %2204 = vmatpush.msra.mxu0 %v1927
  %2205 = vmatpush.msra.mxu0 %v1926
  %2206 = vmatpush.msra.mxu0 %v1925
  %2207 = vmatpush.msra.mxu0 %v1924
  %2208 = vmatpush.msra.mxu0 %v1923
  %2209 = vmatpush.msra.mxu0 %v1922
  %2210 = vmatpush.msra.mxu0 %v1921
  %2211 = vmatpush.msra.mxu0 %v1920
  %2212 = vmatpush.msra.mxu0 %v1919
  %2213 = vmatpush.msra.mxu0 %v1918
  %2214 = vmatpush.msra.mxu0 %v1917
  %2215 = vmatpush.msra.mxu0 %v1916
  %2216 = vmatmul.f32.gmra.mxu0 %v1810
  %v2217 = vpop.f32.mrf.mxu0
  %v2218 = vadd.f32 %v2198, %v2217
  %2219 = vdwg.mxu0
  %2220 = vmatpush.msra.mxu0 %v1947
  %2221 = vmatpush.msra.mxu0 %v1946
  %2222 = vmatpush.msra.mxu0 %v1945
  %2223 = vmatpush.msra.mxu0 %v1944
  %2224 = vmatpush.msra.mxu0 %v1943
  %2225 = vmatpush.msra.mxu0 %v1942
  %2226 = vmatpush.msra.mxu0 %v1941
  %2227 = vmatpush.msra.mxu0 %v1940
  %2228 = vmatpush.msra.mxu0 %v1939
  %2229 = vmatpush.msra.mxu0 %v1938
  %2230 = vmatpush.msra.mxu0 %v1937
  %2231 = vmatpush.msra.mxu0 %v1936
  %2232 = vmatpush.msra.mxu0 %v1935
  %2233 = vmatpush.msra.mxu0 %v1934
  %2234 = vmatpush.msra.mxu0 %v1933
  %2235 = vmatpush.msra.mxu0 %v1932
  %2236 = vmatmul.f32.gmra.mxu0 %v1811
  %v2237 = vpop.f32.mrf.mxu0
  %v2238 = vadd.f32 %v2218, %v2237
  %2239 = vdwg.mxu0
  %2240 = vmatpush.msra.mxu0 %v1963
  %2241 = vmatpush.msra.mxu0 %v1962
  %2242 = vmatpush.msra.mxu0 %v1961
  %2243 = vmatpush.msra.mxu0 %v1960
  %2244 = vmatpush.msra.mxu0 %v1959
  %2245 = vmatpush.msra.mxu0 %v1958
  %2246 = vmatpush.msra.mxu0 %v1957
  %2247 = vmatpush.msra.mxu0 %v1956
  %2248 = vmatpush.msra.mxu0 %v1955
  %2249 = vmatpush.msra.mxu0 %v1954
  %2250 = vmatpush.msra.mxu0 %v1953
  %2251 = vmatpush.msra.mxu0 %v1952
  %2252 = vmatpush.msra.mxu0 %v1951
  %2253 = vmatpush.msra.mxu0 %v1950
  %2254 = vmatpush.msra.mxu0 %v1949
  %2255 = vmatpush.msra.mxu0 %v1948
  %2256 = vmatmul.f32.gmra.mxu0 %v1812
  %v2257 = vpop.f32.mrf.mxu0
  %v2258 = vadd.f32 %v2238, %v2257
  %2259 = vdwg.mxu0
  %2260 = vmatpush.msra.mxu0 %v1979
  %2261 = vmatpush.msra.mxu0 %v1978
  %2262 = vmatpush.msra.mxu0 %v1977
  %2263 = vmatpush.msra.mxu0 %v1976
  %2264 = vmatpush.msra.mxu0 %v1975
  %2265 = vmatpush.msra.mxu0 %v1974
  %2266 = vmatpush.msra.mxu0 %v1973
  %2267 = vmatpush.msra.mxu0 %v1972
  %2268 = vmatpush.msra.mxu0 %v1971
  %2269 = vmatpush.msra.mxu0 %v1970
  %2270 = vmatpush.msra.mxu0 %v1969
  %2271 = vmatpush.msra.mxu0 %v1968
  %2272 = vmatpush.msra.mxu0 %v1967
  %2273 = vmatpush.msra.mxu0 %v1966
  %2274 = vmatpush.msra.mxu0 %v1965
  %2275 = vmatpush.msra.mxu0 %v1964
  %2276 = vmatmul.f32.gmra.mxu0 %v1813
  %v2277 = vpop.f32.mrf.mxu0
  %v2278 = vadd.f32 %v2258, %v2277
  %2279 = vdwg.mxu0
  %2280 = vmatpush.msra.mxu0 %v1995
  %2281 = vmatpush.msra.mxu0 %v1994
  %2282 = vmatpush.msra.mxu0 %v1993
  %2283 = vmatpush.msra.mxu0 %v1992
  %2284 = vmatpush.msra.mxu0 %v1991
  %2285 = vmatpush.msra.mxu0 %v1990
  %2286 = vmatpush.msra.mxu0 %v1989
  %2287 = vmatpush.msra.mxu0 %v1988
  %2288 = vmatpush.msra.mxu0 %v1987
  %2289 = vmatpush.msra.mxu0 %v1986
  %2290 = vmatpush.msra.mxu0 %v1985
  %2291 = vmatpush.msra.mxu0 %v1984
  %2292 = vmatpush.msra.mxu0 %v1983
  %2293 = vmatpush.msra.mxu0 %v1982
  %2294 = vmatpush.msra.mxu0 %v1981
  %2295 = vmatpush.msra.mxu0 %v1980
  %2296 = vmatmul.f32.gmra.mxu0 %v1814
  %v2297 = vpop.f32.mrf.mxu0
  %v2298 = vadd.f32 %v2278, %v2297
  %2299 = vdwg.mxu0
  %2300 = vmatpush.msra.mxu0 %v2011
  %2301 = vmatpush.msra.mxu0 %v2010
  %2302 = vmatpush.msra.mxu0 %v2009
  %2303 = vmatpush.msra.mxu0 %v2008
  %2304 = vmatpush.msra.mxu0 %v2007
  %2305 = vmatpush.msra.mxu0 %v2006
  %2306 = vmatpush.msra.mxu0 %v2005
  %2307 = vmatpush.msra.mxu0 %v2004
  %2308 = vmatpush.msra.mxu0 %v2003
  %2309 = vmatpush.msra.mxu0 %v2002
  %2310 = vmatpush.msra.mxu0 %v2001
  %2311 = vmatpush.msra.mxu0 %v2000
  %2312 = vmatpush.msra.mxu0 %v1999
  %2313 = vmatpush.msra.mxu0 %v1998
  %2314 = vmatpush.msra.mxu0 %v1997
  %2315 = vmatpush.msra.mxu0 %v1996
  %2316 = vmatmul.f32.gmra.mxu0 %v1815
  %v2317 = vpop.f32.mrf.mxu0
  %v2318 = vadd.f32 %v2298, %v2317
  %2319 = vdwg.mxu0
  %2320 = vmatpush.msra.mxu0 %v2027
  %2321 = vmatpush.msra.mxu0 %v2026
  %2322 = vmatpush.msra.mxu0 %v2025
  %2323 = vmatpush.msra.mxu0 %v2024
  %2324 = vmatpush.msra.mxu0 %v2023
  %2325 = vmatpush.msra.mxu0 %v2022
  %2326 = vmatpush.msra.mxu0 %v2021
  %2327 = vmatpush.msra.mxu0 %v2020
  %2328 = vmatpush.msra.mxu0 %v2019
  %2329 = vmatpush.msra.mxu0 %v2018
  %2330 = vmatpush.msra.mxu0 %v2017
  %2331 = vmatpush.msra.mxu0 %v2016
  %2332 = vmatpush.msra.mxu0 %v2015
  %2333 = vmatpush.msra.mxu0 %v2014
  %2334 = vmatpush.msra.mxu0 %v2013
  %2335 = vmatpush.msra.mxu0 %v2012
  %2336 = vmatmul.f32.gmra.mxu0 %v1816
  %v2337 = vpop.f32.mrf.mxu0
  %v2338 = vadd.f32 %v2318, %v2337
  %2339 = vdwg.mxu0
  %2340 = vmatpush.msra.mxu0 %v2043
  %2341 = vmatpush.msra.mxu0 %v2042
  %2342 = vmatpush.msra.mxu0 %v2041
  %2343 = vmatpush.msra.mxu0 %v2040
  %2344 = vmatpush.msra.mxu0 %v2039
  %2345 = vmatpush.msra.mxu0 %v2038
  %2346 = vmatpush.msra.mxu0 %v2037
  %2347 = vmatpush.msra.mxu0 %v2036
  %2348 = vmatpush.msra.mxu0 %v2035
  %2349 = vmatpush.msra.mxu0 %v2034
  %2350 = vmatpush.msra.mxu0 %v2033
  %2351 = vmatpush.msra.mxu0 %v2032
  %2352 = vmatpush.msra.mxu0 %v2031
  %2353 = vmatpush.msra.mxu0 %v2030
  %2354 = vmatpush.msra.mxu0 %v2029
  %2355 = vmatpush.msra.mxu0 %v2028
  %2356 = vmatmul.f32.gmra.mxu0 %v1817
  %v2357 = vpop.f32.mrf.mxu0
  %v2358 = vadd.f32 %v2338, %v2357
  %2359 = vdwg.mxu0
  %2360 = vmatpush.msra.mxu0 %v2059
  %2361 = vmatpush.msra.mxu0 %v2058
  %2362 = vmatpush.msra.mxu0 %v2057
  %2363 = vmatpush.msra.mxu0 %v2056
  %2364 = vmatpush.msra.mxu0 %v2055
  %2365 = vmatpush.msra.mxu0 %v2054
  %2366 = vmatpush.msra.mxu0 %v2053
  %2367 = vmatpush.msra.mxu0 %v2052
  %2368 = vmatpush.msra.mxu0 %v2051
  %2369 = vmatpush.msra.mxu0 %v2050
  %2370 = vmatpush.msra.mxu0 %v2049
  %2371 = vmatpush.msra.mxu0 %v2048
  %2372 = vmatpush.msra.mxu0 %v2047
  %2373 = vmatpush.msra.mxu0 %v2046
  %2374 = vmatpush.msra.mxu0 %v2045
  %2375 = vmatpush.msra.mxu0 %v2044
  %2376 = vmatmul.f32.gmra.mxu0 %v1818
  %v2377 = vpop.f32.mrf.mxu0
  %v2378 = vadd.f32 %v2358, %v2377
  %2379 = vdwg.mxu0
  %2380 = vmatpush.msra.mxu0 %v2075
  %2381 = vmatpush.msra.mxu0 %v2074
  %2382 = vmatpush.msra.mxu0 %v2073
  %2383 = vmatpush.msra.mxu0 %v2072
  %2384 = vmatpush.msra.mxu0 %v2071
  %2385 = vmatpush.msra.mxu0 %v2070
  %2386 = vmatpush.msra.mxu0 %v2069
  %2387 = vmatpush.msra.mxu0 %v2068
  %2388 = vmatpush.msra.mxu0 %v2067
  %2389 = vmatpush.msra.mxu0 %v2066
  %2390 = vmatpush.msra.mxu0 %v2065
  %2391 = vmatpush.msra.mxu0 %v2064
  %2392 = vmatpush.msra.mxu0 %v2063
  %2393 = vmatpush.msra.mxu0 %v2062
  %2394 = vmatpush.msra.mxu0 %v2061
  %2395 = vmatpush.msra.mxu0 %v2060
  %2396 = vmatmul.f32.gmra.mxu0 %v1819
  %v2397 = vpop.f32.mrf.mxu0
  %v2398 = vadd.f32 %v2378, %v2397
  %2399 = vdwg.mxu0
  %2400 = vst [vmem:[%s5] sm:$0xff] %v2398
  // Predicated region
  $region22: #{wrapper_net_forward.1} parent=0 // pred_check
    _
  $region23: #{wrapper_net_forward.1} parent=0 // pred_check_branch
    %2402 = sbr.rel (0) target = $region25
  $region24: #{wrapper_net_forward.1} parent=0 // pred_region
    _
  $region25: #{wrapper_net_forward.1} parent=0 // pred_fallthru
    _
  // Predicated region
  $region26: #{wrapper_net_forward.1} parent=0 // pred_check
    _
  $region27: #{wrapper_net_forward.1} parent=0 // pred_check_branch
    %2404 = sbr.rel (0) target = $region29
  $region28: #{wrapper_net_forward.1} parent=0 // pred_region
    _
  $region29: #{wrapper_net_forward.1} parent=0 // pred_fallthru
    _

</llo_original>
